<compile_context>
chip_gen: v6e
topology: v6e:2x2x1
jax: 0.10.0
libtpu: 0.0.40
codegen_flags: <defaults>
</compile_context>

<pallas_src>
import functools

import jax
import jax.numpy as jnp
from jax import lax
from jax.experimental import pallas as pl
from jax.experimental.pallas import tpu as pltpu


# --------------------------------------------------------------------------
# Generation-aware scoped-VMEM limit
# --------------------------------------------------------------------------

_VMEM_LIMIT_CACHE = None


def _vmem_limit_bytes():
    """3/4 of physical per-core VMEM, clamped to [32, 96] MiB.

    v5e/v6e (128 MiB physical) -> 96 MiB; v7x (64 MiB physical) -> 48 MiB.
    """
    global _VMEM_LIMIT_CACHE
    if _VMEM_LIMIT_CACHE is None:
        try:
            cap = int(pltpu.get_tpu_info().vmem_capacity_bytes)
        except Exception:  # conservative fallback if the query is unavailable
            cap = 64 * 1024 * 1024
        _VMEM_LIMIT_CACHE = int(max(32 * 1024 * 1024,
                                    min(cap * 3 // 4, 96 * 1024 * 1024)))
    return _VMEM_LIMIT_CACHE


# --------------------------------------------------------------------------
# Row-tiled linear kernels (bf16 weights, f32 accumulation)
# --------------------------------------------------------------------------

def _linear_kernel(x_ref, w_ref, o_ref):
    o_ref[...] = jnp.dot(x_ref[...].astype(jnp.bfloat16), w_ref[...],
                         preferred_element_type=jnp.float32).astype(o_ref.dtype)


def _linear_bias_kernel(x_ref, w_ref, b_ref, o_ref):
    o_ref[...] = (jnp.dot(x_ref[...].astype(jnp.bfloat16), w_ref[...],
                          preferred_element_type=jnp.float32)
                  + b_ref[...]).astype(o_ref.dtype)


def linear_nobias(x2d, w, *, out_dtype=jnp.float32, tile_m=512):
    """(M, K) @ (K, N) bf16 -> (M, N), row-tiled, parallel grid."""
    M, K = x2d.shape
    N = w.shape[1]
    tm = min(M, tile_m)
    return pl.pallas_call(
        _linear_kernel,
        out_shape=jax.ShapeDtypeStruct((M, N), out_dtype),
        grid_spec=pltpu.PrefetchScalarGridSpec(
            num_scalar_prefetch=0,
            grid=(pl.cdiv(M, tm),),
            in_specs=[pl.BlockSpec((tm, K), lambda i: (i, 0)),
                      pl.BlockSpec((K, N), lambda i: (0, 0))],
            out_specs=pl.BlockSpec((tm, N), lambda i: (i, 0)),
        ),
        compiler_params=pltpu.CompilerParams(
            dimension_semantics=("parallel",),
            vmem_limit_bytes=_vmem_limit_bytes()),
    )(x2d, w)


def linear_bias(x2d, w, b, *, out_dtype=jnp.float32, tile_m=512):
    """(M, K) @ (K, N) bf16 + b(1, N) -> (M, N), row-tiled, parallel grid."""
    M, K = x2d.shape
    N = w.shape[1]
    tm = min(M, tile_m)
    return pl.pallas_call(
        _linear_bias_kernel,
        out_shape=jax.ShapeDtypeStruct((M, N), out_dtype),
        grid_spec=pltpu.PrefetchScalarGridSpec(
            num_scalar_prefetch=0,
            grid=(pl.cdiv(M, tm),),
            in_specs=[pl.BlockSpec((tm, K), lambda i: (i, 0)),
                      pl.BlockSpec((K, N), lambda i: (0, 0)),
                      pl.BlockSpec((1, N), lambda i: (0, 0))],
            out_specs=pl.BlockSpec((tm, N), lambda i: (i, 0)),
        ),
        compiler_params=pltpu.CompilerParams(
            dimension_semantics=("parallel",),
            vmem_limit_bytes=_vmem_limit_bytes()),
    )(x2d, w, b)


# --------------------------------------------------------------------------
# LSTM: recurrent sweep (input projection already hoisted out)
# --------------------------------------------------------------------------

def _lstm_recurrent_kernel(gx_ref, whh_ref, out_ref, h_sc, c_sc, *,
                           pool, unroll):
    """Recurrent part of an LSTM layer over one (batch-block, time-chunk).

    gx_ref:  (Tc, Bb, 4H) f32 -- precomputed x @ W_ih + b for this chunk.
    whh_ref: (H, 4H) bf16 recurrent weights (VMEM resident across the loop).
    out_ref: (Tc, Bb, H) bf16, or (Tc//2, Bb, H) with fused stride-2 max-pool.
    h_sc/c_sc: (Bb, H) f32 VMEM scratch carrying state across time chunks.
    Gate order matches torch.nn.LSTM: i, f, g, o.  Zero initial state
    (bridge_type='zero'), re-initialized at the first time chunk.
    """
    @pl.when(pl.program_id(1) == 0)
    def _():
        h_sc[...] = jnp.zeros_like(h_sc)
        c_sc[...] = jnp.zeros_like(c_sc)

    Tc = gx_ref.shape[0]
    H = whh_ref.shape[0]
    whh = whh_ref[...]                      # bf16, loaded once per chunk

    def cell(g_x, h, c):
        gates = g_x + jnp.dot(h.astype(jnp.bfloat16), whh,
                              preferred_element_type=jnp.float32)  # (Bb,4H) f32
        # TODO(synk): for small H (<128) these slices cross lane tiles; store
        # per-gate weight blocks instead when H stays below 128 in production.
        i = jax.nn.sigmoid(gates[:, 0 * H:1 * H])
        f = jax.nn.sigmoid(gates[:, 1 * H:2 * H])
        g = jnp.tanh(gates[:, 2 * H:3 * H])
        o = jax.nn.sigmoid(gates[:, 3 * H:4 * H])
        c_new = f * c + i * g
        h_new = o * jnp.tanh(c_new)
        return h_new, c_new

    h0 = h_sc[...]
    c0 = c_sc[...]

    if pool:
        def body(tp, carry):
            h, c = carry
            h1, c1 = cell(gx_ref[2 * tp], h, c)
            h2, c2 = cell(gx_ref[2 * tp + 1], h1, c1)
            out_ref[tp] = jnp.maximum(h1, h2).astype(out_ref.dtype)
            return (h2, c2)
        hN, cN = lax.fori_loop(0, Tc // 2, body, (h0, c0), unroll=unroll)
    else:
        def body(t, carry):
            h, c = carry
            h, c = cell(gx_ref[t], h, c)
            out_ref[t] = h.astype(out_ref.dtype)
            return (h, c)
        hN, cN = lax.fori_loop(0, Tc, body, (h0, c0), unroll=unroll)

    h_sc[...] = hN
    c_sc[...] = cN


def lstm_layer(x, w_ih, w_hh, b, *, pool=False, time_chunk=8):
    """x: (T, B, D) -> (T, B, H) bf16 (or (T//2, B, H) with stride-2 pooling).

    time_chunk is deliberately small here so the multi-chunk scratch carry is
    exercised at toy shapes; raise it (e.g. 128) for production T, keeping
    (2 double-buffered input chunks + output chunk) well under VMEM/4.
    """
    T, B, D = x.shape
    H = w_hh.shape[0]
    if pool:
        assert T % 2 == 0, "stride-2 temporal pooling requires even T"
    T_out = T // 2 if pool else T

    # 1) Non-recurrent input projection hoisted out of the time loop:
    #    one large-M MXU matmul over the whole sequence, bias folded in.
    gx = linear_bias(x.reshape(T * B, D), w_ih, b,
                     out_dtype=jnp.float32).reshape(T, B, 4 * H)

    # 2) Recurrent sweep.  Batch is split over a 'parallel' grid axis (2 TCs
    #    on v7x); time is chunked over an 'arbitrary' axis with h/c in scratch.
    nb = 2 if (B >= 16 and B % 16 == 0) else 1
    Bb = B // nb

    tc = min(T, max(2, time_chunk))
    if pool and tc % 2:
        tc += 1
    if T % tc != 0:
        tc = T                               # fall back to a single chunk
    ntc = T // tc
    tc_out = tc // 2 if pool else tc
    steps = tc // 2 if pool else tc
    unroll = True if steps <= 16 else 4      # partial unroll for long chunks

    kernel = functools.partial(_lstm_recurrent_kernel, pool=pool,
                               unroll=unroll)
    return pl.pallas_call(
        kernel,
        out_shape=jax.ShapeDtypeStruct((T_out, B, H), jnp.bfloat16),
        grid_spec=pltpu.PrefetchScalarGridSpec(
            num_scalar_prefetch=0,
            grid=(nb, ntc),
            in_specs=[
                pl.BlockSpec((tc, Bb, 4 * H), lambda bi, ti: (ti, bi, 0)),
                pl.BlockSpec((H, 4 * H), lambda bi, ti: (0, 0)),
            ],
            out_specs=pl.BlockSpec((tc_out, Bb, H), lambda bi, ti: (ti, bi, 0)),
            scratch_shapes=[pltpu.VMEM((Bb, H), jnp.float32),
                            pltpu.VMEM((Bb, H), jnp.float32)],
        ),
        compiler_params=pltpu.CompilerParams(
            dimension_semantics=("parallel", "arbitrary"),
            vmem_limit_bytes=_vmem_limit_bytes()),
    )(gx, w_hh)


# --------------------------------------------------------------------------
# Fused Luong 'general' global attention (scores + softmax + ctx + output)
# --------------------------------------------------------------------------

def _attention_kernel(y_ref, mem_ref, mask_ref, wch_ref, out_ref, align_ref):
    """Fused attention for a block of decoder timesteps.

    y_ref:    (B, tq, H) bf16  decoder hidden states.
    mem_ref:  (2, B, S, H) bf16; [0] = memory @ (W @ Wa^T) (score keys),
              [1] = memory @ (W @ Wc_c) (values pre-projected by Wc_c).
    mask_ref: (B, S) f32 additive length mask.
    wch_ref:  (H, H) bf16 decoder-half of the concat([ctx, h]) @ Wc projection.
    """
    y = y_ref[...]                                   # (B, tq, H) bf16
    mem_s = mem_ref[0]                               # (B, S, H) bf16
    mem_o = mem_ref[1]                               # (B, S, H) bf16

    scores = jnp.einsum('bqd,bsd->bqs', y, mem_s,
                        preferred_element_type=jnp.float32)       # (B, tq, S)
    scores = scores + mask_ref[...][:, None, :]
    m = jnp.max(scores, axis=-1, keepdims=True)
    e = jnp.exp(scores - m)
    denom = jnp.sum(e, axis=-1, keepdims=True)
    align = e * pl.reciprocal(denom, approx=True)                 # (B, tq, S)

    # ctx @ Wc_c == align @ (memory @ W @ Wc_c); Wc_c is pre-folded into mem_o.
    ctx_c = jnp.einsum('bqs,bsd->bqd', align.astype(jnp.bfloat16), mem_o,
                       preferred_element_type=jnp.float32)        # (B, tq, H)
    # h @ Wc_h as a batched matmul (broadcast weight keeps the MXU pattern
    # identical to the context einsum).
    B, _, H = y_ref.shape
    wch = jnp.broadcast_to(wch_ref[...], (B, H, H))
    yh = jnp.einsum('bqd,bdh->bqh', y, wch,
                    preferred_element_type=jnp.float32)           # (B, tq, H)

    out_ref[...] = jnp.tanh(ctx_c + yh)
    align_ref[...] = align


def attention_fused(y_bth, mem_b2sh, mask, wc_h, *, tile_q=256):
    """y_bth: (B, Tt, H) bf16; mem_b2sh: (2, B, S, H) bf16; mask: (B, S) f32."""
    B, Tt, H = y_bth.shape
    S = mem_b2sh.shape[2]
    tq = min(Tt, tile_q)
    # TODO(synk): for production S, tile the memory bank over S with an
    # online-softmax accumulator (flash-style) for v7x's 64 MiB VMEM, and pad
    # S to a multiple of 128 so the align store is lane-dense.
    return pl.pallas_call(
        _attention_kernel,
        out_shape=(jax.ShapeDtypeStruct((B, Tt, H), jnp.float32),
                   jax.ShapeDtypeStruct((B, Tt, S), jnp.float32)),
        grid_spec=pltpu.PrefetchScalarGridSpec(
            num_scalar_prefetch=0,
            grid=(pl.cdiv(Tt, tq),),
            in_specs=[
                pl.BlockSpec((B, tq, H), lambda i: (0, i, 0)),
                pl.BlockSpec((2, B, S, H), lambda i: (0, 0, 0, 0)),
                pl.BlockSpec((B, S), lambda i: (0, 0)),
                pl.BlockSpec((H, H), lambda i: (0, 0)),
            ],
            out_specs=[pl.BlockSpec((B, tq, H), lambda i: (0, i, 0)),
                       pl.BlockSpec((B, tq, S), lambda i: (0, i, 0))],
        ),
        compiler_params=pltpu.CompilerParams(
            dimension_semantics=("parallel",),
            vmem_limit_bytes=_vmem_limit_bytes()),
    )(y_bth, mem_b2sh, mask, wc_h)


# --------------------------------------------------------------------------
# Parameters (deterministic synthetic init) and the ASRModel forward pass
# --------------------------------------------------------------------------

def init_params(key, *, input_size, enc_rnn_size, enc_layers,
                dec_rnn_size, dec_layers, embedding_size, vocab_size,
                padding_idx):
    def normal(k, shape, scale=0.1, dtype=jnp.float32):
        return (scale * jax.random.normal(k, shape)).astype(dtype)

    bf16 = jnp.bfloat16
    keys = iter(jax.random.split(key, 64))
    params = {}

    enc = []
    d_in = input_size
    for _ in range(enc_layers):
        enc.append((normal(next(keys), (d_in, 4 * enc_rnn_size), dtype=bf16),
                    normal(next(keys), (enc_rnn_size, 4 * enc_rnn_size), dtype=bf16),
                    normal(next(keys), (1, 4 * enc_rnn_size))))  # b = b_ih + b_hh
        d_in = enc_rnn_size
    params['enc'] = enc

    params['W'] = normal(next(keys), (enc_rnn_size, dec_rnn_size), dtype=bf16)

    emb = normal(next(keys), (vocab_size, embedding_size))
    emb = emb.at[padding_idx].set(0.0)                # padding_idx row is zero
    params['emb'] = emb

    dec = []
    d_in = embedding_size
    for _ in range(dec_layers):
        dec.append((normal(next(keys), (d_in, 4 * dec_rnn_size), dtype=bf16),
                    normal(next(keys), (dec_rnn_size, 4 * dec_rnn_size), dtype=bf16),
                    normal(next(keys), (1, 4 * dec_rnn_size))))
        d_in = dec_rnn_size
    params['dec'] = dec

    params['wa'] = normal(next(keys), (dec_rnn_size, dec_rnn_size), dtype=bf16)
    # Wc split into the ctx-half and h-half of concat([ctx, h]) @ Wc.
    params['wc_c'] = normal(next(keys), (dec_rnn_size, dec_rnn_size), dtype=bf16)
    params['wc_h'] = normal(next(keys), (dec_rnn_size, dec_rnn_size), dtype=bf16)
    # Generator (Linear + LogSoftmax) only runs for scheduled sampling; with
    # init_sched_sampling_rate=0 it never executes in forward (defined, unused).
    params['gen'] = normal(next(keys), (dec_rnn_size, vocab_size))
    return params


def asr_forward(params, src, tgt, lengths):
    """Mirrors ASRModel.forward(src, tgt, lengths, bptt=False).

    src: (Ts, B, input_size) f32, tgt: (Tt, B) int32, lengths: (B,) int32.
    Returns (dec_out (Tt, B, dec_rnn_size), attns {'std': (Tt, B, Ts')}).
    """
    # ----- pad batch to the 8-row sublane count (sliced back at the end) -----
    B0 = src.shape[1]
    Bp = ((B0 + 7) // 8) * 8
    if Bp != B0:
        pad = Bp - B0
        src = jnp.pad(src, ((0, 0), (0, pad), (0, 0)))
        tgt = jnp.pad(tgt, ((0, 0), (0, pad)))
        lengths = jnp.pad(lengths, (0, pad))          # padded rows: length 0

    # ----- RNNEncoder: stacked LSTM with fused stride-2 temporal max-pool ----
    x = src
    new_lengths = lengths
    for (w_ih, w_hh, b) in params['enc']:
        x = lstm_layer(x, w_ih, w_hh, b, pool=True)   # (T/2, Bp, He) bf16
        new_lengths = new_lengths // 2
    memory_bank = x                                   # (S, Bp, He) bf16
    S, _, He = memory_bank.shape
    Hd = params['W'].shape[1]

    # ----- bridge_type='zero': zero decoder init state (inside LSTM kernel) --

    # ----- RNNDecoder: embedding -> stacked LSTM ------------------------------
    emb = params['emb'][tgt]                          # (Tt, Bp, E) gather (XLA)
    y = emb
    for (w_ih, w_hh, b) in params['dec']:
        y = lstm_layer(y, w_ih, w_hh, b, pool=False)  # (Tt, Bp, Hd) bf16
    Tt = y.shape[0]

    # ----- memory_bank = self.W(memory_bank), with Wa / Wc_c folded in -------
    # scores use   memory @ (W @ Wa^T)   and  ctx@Wc_c uses  memory @ (W @ Wc_c);
    # both come out of a single (S*Bp, He) @ (He, 2*Hd) MXU matmul.
    w_f32 = params['W'].astype(jnp.float32)
    w_score = jnp.dot(w_f32, params['wa'].astype(jnp.float32).T)
    w_ctx = jnp.dot(w_f32, params['wc_c'].astype(jnp.float32))
    w_cat = jnp.concatenate([w_score, w_ctx], axis=1).astype(jnp.bfloat16)
    mem2 = linear_nobias(memory_bank.reshape(S * Bp, He), w_cat,
                         out_dtype=jnp.bfloat16)          # (S*Bp, 2*Hd) bf16
    mem_b2sh = jnp.transpose(mem2.reshape(S, Bp, 2, Hd), (2, 1, 0, 3))

    # ----- fused Luong 'general' global attention over all decoder steps -----
    y_bth = jnp.transpose(y, (1, 0, 2))               # (Bp, Tt, Hd) bf16
    mask = jnp.where(jnp.arange(S)[None, :] < new_lengths[:, None],
                     0.0, -1e30).astype(jnp.float32)  # (Bp, S) additive

    attn_h_bth, align_bts = attention_fused(y_bth, mem_b2sh, mask,
                                            params['wc_h'])

    dec_out = jnp.transpose(attn_h_bth, (1, 0, 2))[:, :B0]    # (Tt, B, Hd)
    align = jnp.transpose(align_bts, (1, 0, 2))[:, :B0]       # (Tt, B, S)
    # TODO(synk): dropout (eval), the scheduled-sampling/generator branch
    # (rate=0) and input feeding are inactive in this forward and not modeled.
    return dec_out, {'std': align}


# --------------------------------------------------------------------------

if __name__ == "__main__":
    key = jax.random.PRNGKey(0)
    k_param, k_src, k_tgt = jax.random.split(key, 3)

    # Small, forward-consistent shapes.
    B = 2                 # batch
    Ts = 16               # source frames (pooled 16 -> 8 -> 4 by encoder)
    input_size = 8        # acoustic feature dim
    enc_rnn_size = 32
    dec_rnn_size = 32
    embedding_size = 32
    vocab_size = 16
    enc_layers = 2
    dec_layers = 2
    padding_idx = 1
    Tt = 8                # target length

    params = init_params(
        k_param,
        input_size=input_size, enc_rnn_size=enc_rnn_size,
        enc_layers=enc_layers, dec_rnn_size=dec_rnn_size,
        dec_layers=dec_layers, embedding_size=embedding_size,
        vocab_size=vocab_size, padding_idx=padding_idx)

    src = jax.random.normal(k_src, (Ts, B, input_size)).astype(jnp.float32)
    tgt = jax.random.randint(k_tgt, (Tt, B), 0, vocab_size).astype(jnp.int32)
    lengths = jnp.array([16, 12], dtype=jnp.int32)

    fwd = jax.jit(asr_forward)
    dec_out, attns = fwd(params, src, tgt, lengths)
    jax.block_until_ready(dec_out)
    jax.block_until_ready(attns['std'])

    assert dec_out.shape == (Tt, B, dec_rnn_size)
    assert attns['std'].shape == (Tt, B, Ts // (2 ** enc_layers))
    assert bool(jnp.all(jnp.isfinite(dec_out)))
    assert bool(jnp.all(jnp.isfinite(attns['std'])))
    print("KERNEL_OK")
</pallas_src>

<mosaic_0001>
module attributes {stable_mosaic.version = 11 : i64} {
  func.func @_lstm_recurrent_kernel(%arg0: i32, %arg1: i32, %arg2: memref<8x8x128xf32, #tpu.memory_space<vmem>>, %arg3: memref<32x128xbf16, #tpu.memory_space<vmem>>, %arg4: memref<4x8x32xbf16, #tpu.memory_space<vmem>>, %arg5: memref<8x32xf32, #tpu.memory_space<vmem>>, %arg6: memref<8x32xf32, #tpu.memory_space<vmem>>) attributes {dimension_semantics = [#tpu.dimension_semantics<parallel>, #tpu.dimension_semantics<arbitrary>], iteration_bounds = array<i64: 1, 2>, scalar_prefetch = 0 : i64, scratch_operands = 2 : i64, tpu.core_type = #tpu.core_type<tc>, window_params = [{transform_indices = @transform_0, window_bounds = array<i64: 8, 8, 128>}, {pipeline_mode = #tpu.pipeline_mode<synchronous>, transform_indices = @transform_1, window_bounds = array<i64: 32, 128>}, {transform_indices = @transform_2, window_bounds = array<i64: 4, 8, 32>}]} {
    %c0_i32 = arith.constant 0 : i32
    %0 = arith.cmpi eq, %arg1, %c0_i32 : i32
    %1 = arith.extui %0 : i1 to i32
    %c0_i32_0 = arith.constant 0 : i32
    %2 = arith.cmpi ne, %1, %c0_i32_0 : i32
    scf.if %2 {
      %cst_78 = arith.constant 0.000000e+00 : f32
      %292 = vector.broadcast %cst_78 : f32 to vector<8x32xf32>
      %c0_79 = arith.constant 0 : index
      %c0_80 = arith.constant 0 : index
      %293 = vector.load %arg5[%c0_79, %c0_80] : memref<8x32xf32, #tpu.memory_space<vmem>>, vector<8x32xf32>
      tpu.vector_store %arg5[%c0_79, %c0_80], %292 {strides = array<i32>} : memref<8x32xf32, #tpu.memory_space<vmem>>, vector<8x32xf32>,
      %cst_81 = arith.constant 0.000000e+00 : f32
      %294 = vector.broadcast %cst_81 : f32 to vector<8x32xf32>
      %c0_82 = arith.constant 0 : index
      %c0_83 = arith.constant 0 : index
      %295 = vector.load %arg6[%c0_82, %c0_83] : memref<8x32xf32, #tpu.memory_space<vmem>>, vector<8x32xf32>
      tpu.vector_store %arg6[%c0_82, %c0_83], %294 {strides = array<i32>} : memref<8x32xf32, #tpu.memory_space<vmem>>, vector<8x32xf32>,
    } else {
    }
    %c0 = arith.constant 0 : index
    %c0_1 = arith.constant 0 : index
    %3 = vector.load %arg3[%c0, %c0_1] : memref<32x128xbf16, #tpu.memory_space<vmem>>, vector<32x128xbf16>
    %c0_2 = arith.constant 0 : index
    %c0_3 = arith.constant 0 : index
    %4 = vector.load %arg5[%c0_2, %c0_3] : memref<8x32xf32, #tpu.memory_space<vmem>>, vector<8x32xf32>
    %c0_4 = arith.constant 0 : index
    %c0_5 = arith.constant 0 : index
    %5 = vector.load %arg6[%c0_4, %c0_5] : memref<8x32xf32, #tpu.memory_space<vmem>>, vector<8x32xf32>
    %c0_i32_6 = arith.constant 0 : i32
    %c2_i32 = arith.constant 2 : i32
    %6 = arith.muli %c2_i32, %c0_i32_6 : i32
    %7 = arith.index_cast %6 : i32 to index
    %c0_7 = arith.constant 0 : index
    %c0_8 = arith.constant 0 : index
    %8 = vector.load %arg2[%7, %c0_7, %c0_8] : memref<8x8x128xf32, #tpu.memory_space<vmem>>, vector<1x8x128xf32>
    %9 = vector.shape_cast %8 : vector<1x8x128xf32> to vector<8x128xf32>
    %10 = arith.truncf %4 : vector<8x32xf32> to vector<8x32xbf16>
    %cst = arith.constant dense<0.000000e+00> : vector<8x128xf32>
    %11 = tpu.matmul %10, %3, %cst {dimension_numbers = #tpu.dot_dimension_numbers<[1], [0], [0], [1], [0, 0, 1, 1], [], []>} : vector<8x32xbf16>, vector<32x128xbf16>, vector<8x128xf32> -> vector<8x128xf32>
    %12 = arith.addf %9, %11 : vector<8x128xf32>
    %13 = vector.extract_strided_slice %12 {offsets = [0, 0], sizes = [8, 32], strides = [1, 1]} : vector<8x128xf32> to vector<8x32xf32>
    %14 = arith.negf %13 : vector<8x32xf32>
    %15 = math.exp %14 : vector<8x32xf32>
    %cst_9 = arith.constant 1.000000e+00 : f32
    %16 = vector.broadcast %cst_9 : f32 to vector<8x32xf32>
    %17 = arith.addf %16, %15 : vector<8x32xf32>
    %18 = arith.divf %16, %17 : vector<8x32xf32>
    %19 = vector.extract_strided_slice %12 {offsets = [0, 32], sizes = [8, 32], strides = [1, 1]} : vector<8x128xf32> to vector<8x32xf32>
    %20 = arith.negf %19 : vector<8x32xf32>
    %21 = math.exp %20 : vector<8x32xf32>
    %cst_10 = arith.constant 1.000000e+00 : f32
    %22 = vector.broadcast %cst_10 : f32 to vector<8x32xf32>
    %23 = arith.addf %22, %21 : vector<8x32xf32>
    %24 = arith.divf %22, %23 : vector<8x32xf32>
    %25 = vector.extract_strided_slice %12 {offsets = [0, 64], sizes = [8, 32], strides = [1, 1]} : vector<8x128xf32> to vector<8x32xf32>
    %26 = math.tanh %25 : vector<8x32xf32>
    %27 = vector.extract_strided_slice %12 {offsets = [0, 96], sizes = [8, 32], strides = [1, 1]} : vector<8x128xf32> to vector<8x32xf32>
    %28 = arith.negf %27 : vector<8x32xf32>
    %29 = math.exp %28 : vector<8x32xf32>
    %cst_11 = arith.constant 1.000000e+00 : f32
    %30 = vector.broadcast %cst_11 : f32 to vector<8x32xf32>
    %31 = arith.addf %30, %29 : vector<8x32xf32>
    %32 = arith.divf %30, %31 : vector<8x32xf32>
    %33 = arith.mulf %24, %5 : vector<8x32xf32>
    %34 = arith.mulf %18, %26 : vector<8x32xf32>
    %35 = arith.addf %33, %34 : vector<8x32xf32>
    %36 = math.tanh %35 : vector<8x32xf32>
    %37 = arith.mulf %32, %36 : vector<8x32xf32>
    %c2_i32_12 = arith.constant 2 : i32
    %38 = arith.muli %c2_i32_12, %c0_i32_6 : i32
    %c1_i32 = arith.constant 1 : i32
    %39 = arith.addi %38, %c1_i32 : i32
    %40 = arith.index_cast %39 : i32 to index
    %c0_13 = arith.constant 0 : index
    %c0_14 = arith.constant 0 : index
    %41 = vector.load %arg2[%40, %c0_13, %c0_14] : memref<8x8x128xf32, #tpu.memory_space<vmem>>, vector<1x8x128xf32>
    %42 = vector.shape_cast %41 : vector<1x8x128xf32> to vector<8x128xf32>
    %43 = arith.truncf %37 : vector<8x32xf32> to vector<8x32xbf16>
    %cst_15 = arith.constant dense<0.000000e+00> : vector<8x128xf32>
    %44 = tpu.matmul %43, %3, %cst_15 {dimension_numbers = #tpu.dot_dimension_numbers<[1], [0], [0], [1], [0, 0, 1, 1], [], []>} : vector<8x32xbf16>, vector<32x128xbf16>, vector<8x128xf32> -> vector<8x128xf32>
    %45 = arith.addf %42, %44 : vector<8x128xf32>
    %46 = vector.extract_strided_slice %45 {offsets = [0, 0], sizes = [8, 32], strides = [1, 1]} : vector<8x128xf32> to vector<8x32xf32>
    %47 = arith.negf %46 : vector<8x32xf32>
    %48 = math.exp %47 : vector<8x32xf32>
    %cst_16 = arith.constant 1.000000e+00 : f32
    %49 = vector.broadcast %cst_16 : f32 to vector<8x32xf32>
    %50 = arith.addf %49, %48 : vector<8x32xf32>
    %51 = arith.divf %49, %50 : vector<8x32xf32>
    %52 = vector.extract_strided_slice %45 {offsets = [0, 32], sizes = [8, 32], strides = [1, 1]} : vector<8x128xf32> to vector<8x32xf32>
    %53 = arith.negf %52 : vector<8x32xf32>
    %54 = math.exp %53 : vector<8x32xf32>
    %cst_17 = arith.constant 1.000000e+00 : f32
    %55 = vector.broadcast %cst_17 : f32 to vector<8x32xf32>
    %56 = arith.addf %55, %54 : vector<8x32xf32>
    %57 = arith.divf %55, %56 : vector<8x32xf32>
    %58 = vector.extract_strided_slice %45 {offsets = [0, 64], sizes = [8, 32], strides = [1, 1]} : vector<8x128xf32> to vector<8x32xf32>
    %59 = math.tanh %58 : vector<8x32xf32>
    %60 = vector.extract_strided_slice %45 {offsets = [0, 96], sizes = [8, 32], strides = [1, 1]} : vector<8x128xf32> to vector<8x32xf32>
    %61 = arith.negf %60 : vector<8x32xf32>
    %62 = math.exp %61 : vector<8x32xf32>
    %cst_18 = arith.constant 1.000000e+00 : f32
    %63 = vector.broadcast %cst_18 : f32 to vector<8x32xf32>
    %64 = arith.addf %63, %62 : vector<8x32xf32>
    %65 = arith.divf %63, %64 : vector<8x32xf32>
    %66 = arith.mulf %57, %35 : vector<8x32xf32>
    %67 = arith.mulf %51, %59 : vector<8x32xf32>
    %68 = arith.addf %66, %67 : vector<8x32xf32>
    %69 = math.tanh %68 : vector<8x32xf32>
    %70 = arith.mulf %65, %69 : vector<8x32xf32>
    %71 = arith.maximumf %37, %70 : vector<8x32xf32>
    %72 = arith.truncf %71 : vector<8x32xf32> to vector<8x32xbf16>
    %73 = arith.index_cast %c0_i32_6 : i32 to index
    %c0_19 = arith.constant 0 : index
    %c0_20 = arith.constant 0 : index
    %74 = vector.load %arg4[%73, %c0_19, %c0_20] : memref<4x8x32xbf16, #tpu.memory_space<vmem>>, vector<1x8x32xbf16>
    %75 = vector.shape_cast %74 : vector<1x8x32xbf16> to vector<8x32xbf16>
    %76 = vector.shape_cast %72 : vector<8x32xbf16> to vector<1x8x32xbf16>
    tpu.vector_store %arg4[%73, %c0_19, %c0_20], %76 {strides = array<i32>} : memref<4x8x32xbf16, #tpu.memory_space<vmem>>, vector<1x8x32xbf16>,
    %c1_i32_21 = arith.constant 1 : i32
    %c2_i32_22 = arith.constant 2 : i32
    %77 = arith.muli %c2_i32_22, %c1_i32_21 : i32
    %78 = arith.index_cast %77 : i32 to index
    %c0_23 = arith.constant 0 : index
    %c0_24 = arith.constant 0 : index
    %79 = vector.load %arg2[%78, %c0_23, %c0_24] : memref<8x8x128xf32, #tpu.memory_space<vmem>>, vector<1x8x128xf32>
    %80 = vector.shape_cast %79 : vector<1x8x128xf32> to vector<8x128xf32>
    %81 = arith.truncf %70 : vector<8x32xf32> to vector<8x32xbf16>
    %cst_25 = arith.constant dense<0.000000e+00> : vector<8x128xf32>
    %82 = tpu.matmul %81, %3, %cst_25 {dimension_numbers = #tpu.dot_dimension_numbers<[1], [0], [0], [1], [0, 0, 1, 1], [], []>} : vector<8x32xbf16>, vector<32x128xbf16>, vector<8x128xf32> -> vector<8x128xf32>
    %83 = arith.addf %80, %82 : vector<8x128xf32>
    %84 = vector.extract_strided_slice %83 {offsets = [0, 0], sizes = [8, 32], strides = [1, 1]} : vector<8x128xf32> to vector<8x32xf32>
    %85 = arith.negf %84 : vector<8x32xf32>
    %86 = math.exp %85 : vector<8x32xf32>
    %cst_26 = arith.constant 1.000000e+00 : f32
    %87 = vector.broadcast %cst_26 : f32 to vector<8x32xf32>
    %88 = arith.addf %87, %86 : vector<8x32xf32>
    %89 = arith.divf %87, %88 : vector<8x32xf32>
    %90 = vector.extract_strided_slice %83 {offsets = [0, 32], sizes = [8, 32], strides = [1, 1]} : vector<8x128xf32> to vector<8x32xf32>
    %91 = arith.negf %90 : vector<8x32xf32>
    %92 = math.exp %91 : vector<8x32xf32>
    %cst_27 = arith.constant 1.000000e+00 : f32
    %93 = vector.broadcast %cst_27 : f32 to vector<8x32xf32>
    %94 = arith.addf %93, %92 : vector<8x32xf32>
    %95 = arith.divf %93, %94 : vector<8x32xf32>
    %96 = vector.extract_strided_slice %83 {offsets = [0, 64], sizes = [8, 32], strides = [1, 1]} : vector<8x128xf32> to vector<8x32xf32>
    %97 = math.tanh %96 : vector<8x32xf32>
    %98 = vector.extract_strided_slice %83 {offsets = [0, 96], sizes = [8, 32], strides = [1, 1]} : vector<8x128xf32> to vector<8x32xf32>
    %99 = arith.negf %98 : vector<8x32xf32>
    %100 = math.exp %99 : vector<8x32xf32>
    %cst_28 = arith.constant 1.000000e+00 : f32
    %101 = vector.broadcast %cst_28 : f32 to vector<8x32xf32>
    %102 = arith.addf %101, %100 : vector<8x32xf32>
    %103 = arith.divf %101, %102 : vector<8x32xf32>
    %104 = arith.mulf %95, %68 : vector<8x32xf32>
    %105 = arith.mulf %89, %97 : vector<8x32xf32>
    %106 = arith.addf %104, %105 : vector<8x32xf32>
    %107 = math.tanh %106 : vector<8x32xf32>
    %108 = arith.mulf %103, %107 : vector<8x32xf32>
    %c2_i32_29 = arith.constant 2 : i32
    %109 = arith.muli %c2_i32_29, %c1_i32_21 : i32
    %c1_i32_30 = arith.constant 1 : i32
    %110 = arith.addi %109, %c1_i32_30 : i32
    %111 = arith.index_cast %110 : i32 to index
    %c0_31 = arith.constant 0 : index
    %c0_32 = arith.constant 0 : index
    %112 = vector.load %arg2[%111, %c0_31, %c0_32] : memref<8x8x128xf32, #tpu.memory_space<vmem>>, vector<1x8x128xf32>
    %113 = vector.shape_cast %112 : vector<1x8x128xf32> to vector<8x128xf32>
    %114 = arith.truncf %108 : vector<8x32xf32> to vector<8x32xbf16>
    %cst_33 = arith.constant dense<0.000000e+00> : vector<8x128xf32>
    %115 = tpu.matmul %114, %3, %cst_33 {dimension_numbers = #tpu.dot_dimension_numbers<[1], [0], [0], [1], [0, 0, 1, 1], [], []>} : vector<8x32xbf16>, vector<32x128xbf16>, vector<8x128xf32> -> vector<8x128xf32>
    %116 = arith.addf %113, %115 : vector<8x128xf32>
    %117 = vector.extract_strided_slice %116 {offsets = [0, 0], sizes = [8, 32], strides = [1, 1]} : vector<8x128xf32> to vector<8x32xf32>
    %118 = arith.negf %117 : vector<8x32xf32>
    %119 = math.exp %118 : vector<8x32xf32>
    %cst_34 = arith.constant 1.000000e+00 : f32
    %120 = vector.broadcast %cst_34 : f32 to vector<8x32xf32>
    %121 = arith.addf %120, %119 : vector<8x32xf32>
    %122 = arith.divf %120, %121 : vector<8x32xf32>
    %123 = vector.extract_strided_slice %116 {offsets = [0, 32], sizes = [8, 32], strides = [1, 1]} : vector<8x128xf32> to vector<8x32xf32>
    %124 = arith.negf %123 : vector<8x32xf32>
    %125 = math.exp %124 : vector<8x32xf32>
    %cst_35 = arith.constant 1.000000e+00 : f32
    %126 = vector.broadcast %cst_35 : f32 to vector<8x32xf32>
    %127 = arith.addf %126, %125 : vector<8x32xf32>
    %128 = arith.divf %126, %127 : vector<8x32xf32>
    %129 = vector.extract_strided_slice %116 {offsets = [0, 64], sizes = [8, 32], strides = [1, 1]} : vector<8x128xf32> to vector<8x32xf32>
    %130 = math.tanh %129 : vector<8x32xf32>
    %131 = vector.extract_strided_slice %116 {offsets = [0, 96], sizes = [8, 32], strides = [1, 1]} : vector<8x128xf32> to vector<8x32xf32>
    %132 = arith.negf %131 : vector<8x32xf32>
    %133 = math.exp %132 : vector<8x32xf32>
    %cst_36 = arith.constant 1.000000e+00 : f32
    %134 = vector.broadcast %cst_36 : f32 to vector<8x32xf32>
    %135 = arith.addf %134, %133 : vector<8x32xf32>
    %136 = arith.divf %134, %135 : vector<8x32xf32>
    %137 = arith.mulf %128, %106 : vector<8x32xf32>
    %138 = arith.mulf %122, %130 : vector<8x32xf32>
    %139 = arith.addf %137, %138 : vector<8x32xf32>
    %140 = math.tanh %139 : vector<8x32xf32>
    %141 = arith.mulf %136, %140 : vector<8x32xf32>
    %142 = arith.maximumf %108, %141 : vector<8x32xf32>
    %143 = arith.truncf %142 : vector<8x32xf32> to vector<8x32xbf16>
    %144 = arith.index_cast %c1_i32_21 : i32 to index
    %c0_37 = arith.constant 0 : index
    %c0_38 = arith.constant 0 : index
    %145 = vector.load %arg4[%144, %c0_37, %c0_38] : memref<4x8x32xbf16, #tpu.memory_space<vmem>>, vector<1x8x32xbf16>
    %146 = vector.shape_cast %145 : vector<1x8x32xbf16> to vector<8x32xbf16>
    %147 = vector.shape_cast %143 : vector<8x32xbf16> to vector<1x8x32xbf16>
    tpu.vector_store %arg4[%144, %c0_37, %c0_38], %147 {strides = array<i32>} : memref<4x8x32xbf16, #tpu.memory_space<vmem>>, vector<1x8x32xbf16>,
    %c2_i32_39 = arith.constant 2 : i32
    %c2_i32_40 = arith.constant 2 : i32
    %148 = arith.muli %c2_i32_40, %c2_i32_39 : i32
    %149 = arith.index_cast %148 : i32 to index
    %c0_41 = arith.constant 0 : index
    %c0_42 = arith.constant 0 : index
    %150 = vector.load %arg2[%149, %c0_41, %c0_42] : memref<8x8x128xf32, #tpu.memory_space<vmem>>, vector<1x8x128xf32>
    %151 = vector.shape_cast %150 : vector<1x8x128xf32> to vector<8x128xf32>
    %152 = arith.truncf %141 : vector<8x32xf32> to vector<8x32xbf16>
    %cst_43 = arith.constant dense<0.000000e+00> : vector<8x128xf32>
    %153 = tpu.matmul %152, %3, %cst_43 {dimension_numbers = #tpu.dot_dimension_numbers<[1], [0], [0], [1], [0, 0, 1, 1], [], []>} : vector<8x32xbf16>, vector<32x128xbf16>, vector<8x128xf32> -> vector<8x128xf32>
    %154 = arith.addf %151, %153 : vector<8x128xf32>
    %155 = vector.extract_strided_slice %154 {offsets = [0, 0], sizes = [8, 32], strides = [1, 1]} : vector<8x128xf32> to vector<8x32xf32>
    %156 = arith.negf %155 : vector<8x32xf32>
    %157 = math.exp %156 : vector<8x32xf32>
    %cst_44 = arith.constant 1.000000e+00 : f32
    %158 = vector.broadcast %cst_44 : f32 to vector<8x32xf32>
    %159 = arith.addf %158, %157 : vector<8x32xf32>
    %160 = arith.divf %158, %159 : vector<8x32xf32>
    %161 = vector.extract_strided_slice %154 {offsets = [0, 32], sizes = [8, 32], strides = [1, 1]} : vector<8x128xf32> to vector<8x32xf32>
    %162 = arith.negf %161 : vector<8x32xf32>
    %163 = math.exp %162 : vector<8x32xf32>
    %cst_45 = arith.constant 1.000000e+00 : f32
    %164 = vector.broadcast %cst_45 : f32 to vector<8x32xf32>
    %165 = arith.addf %164, %163 : vector<8x32xf32>
    %166 = arith.divf %164, %165 : vector<8x32xf32>
    %167 = vector.extract_strided_slice %154 {offsets = [0, 64], sizes = [8, 32], strides = [1, 1]} : vector<8x128xf32> to vector<8x32xf32>
    %168 = math.tanh %167 : vector<8x32xf32>
    %169 = vector.extract_strided_slice %154 {offsets = [0, 96], sizes = [8, 32], strides = [1, 1]} : vector<8x128xf32> to vector<8x32xf32>
    %170 = arith.negf %169 : vector<8x32xf32>
    %171 = math.exp %170 : vector<8x32xf32>
    %cst_46 = arith.constant 1.000000e+00 : f32
    %172 = vector.broadcast %cst_46 : f32 to vector<8x32xf32>
    %173 = arith.addf %172, %171 : vector<8x32xf32>
    %174 = arith.divf %172, %173 : vector<8x32xf32>
    %175 = arith.mulf %166, %139 : vector<8x32xf32>
    %176 = arith.mulf %160, %168 : vector<8x32xf32>
    %177 = arith.addf %175, %176 : vector<8x32xf32>
    %178 = math.tanh %177 : vector<8x32xf32>
    %179 = arith.mulf %174, %178 : vector<8x32xf32>
    %c2_i32_47 = arith.constant 2 : i32
    %180 = arith.muli %c2_i32_47, %c2_i32_39 : i32
    %c1_i32_48 = arith.constant 1 : i32
    %181 = arith.addi %180, %c1_i32_48 : i32
    %182 = arith.index_cast %181 : i32 to index
    %c0_49 = arith.constant 0 : index
    %c0_50 = arith.constant 0 : index
    %183 = vector.load %arg2[%182, %c0_49, %c0_50] : memref<8x8x128xf32, #tpu.memory_space<vmem>>, vector<1x8x128xf32>
    %184 = vector.shape_cast %183 : vector<1x8x128xf32> to vector<8x128xf32>
    %185 = arith.truncf %179 : vector<8x32xf32> to vector<8x32xbf16>
    %cst_51 = arith.constant dense<0.000000e+00> : vector<8x128xf32>
    %186 = tpu.matmul %185, %3, %cst_51 {dimension_numbers = #tpu.dot_dimension_numbers<[1], [0], [0], [1], [0, 0, 1, 1], [], []>} : vector<8x32xbf16>, vector<32x128xbf16>, vector<8x128xf32> -> vector<8x128xf32>
    %187 = arith.addf %184, %186 : vector<8x128xf32>
    %188 = vector.extract_strided_slice %187 {offsets = [0, 0], sizes = [8, 32], strides = [1, 1]} : vector<8x128xf32> to vector<8x32xf32>
    %189 = arith.negf %188 : vector<8x32xf32>
    %190 = math.exp %189 : vector<8x32xf32>
    %cst_52 = arith.constant 1.000000e+00 : f32
    %191 = vector.broadcast %cst_52 : f32 to vector<8x32xf32>
    %192 = arith.addf %191, %190 : vector<8x32xf32>
    %193 = arith.divf %191, %192 : vector<8x32xf32>
    %194 = vector.extract_strided_slice %187 {offsets = [0, 32], sizes = [8, 32], strides = [1, 1]} : vector<8x128xf32> to vector<8x32xf32>
    %195 = arith.negf %194 : vector<8x32xf32>
    %196 = math.exp %195 : vector<8x32xf32>
    %cst_53 = arith.constant 1.000000e+00 : f32
    %197 = vector.broadcast %cst_53 : f32 to vector<8x32xf32>
    %198 = arith.addf %197, %196 : vector<8x32xf32>
    %199 = arith.divf %197, %198 : vector<8x32xf32>
    %200 = vector.extract_strided_slice %187 {offsets = [0, 64], sizes = [8, 32], strides = [1, 1]} : vector<8x128xf32> to vector<8x32xf32>
    %201 = math.tanh %200 : vector<8x32xf32>
    %202 = vector.extract_strided_slice %187 {offsets = [0, 96], sizes = [8, 32], strides = [1, 1]} : vector<8x128xf32> to vector<8x32xf32>
    %203 = arith.negf %202 : vector<8x32xf32>
    %204 = math.exp %203 : vector<8x32xf32>
    %cst_54 = arith.constant 1.000000e+00 : f32
    %205 = vector.broadcast %cst_54 : f32 to vector<8x32xf32>
    %206 = arith.addf %205, %204 : vector<8x32xf32>
    %207 = arith.divf %205, %206 : vector<8x32xf32>
    %208 = arith.mulf %199, %177 : vector<8x32xf32>
    %209 = arith.mulf %193, %201 : vector<8x32xf32>
    %210 = arith.addf %208, %209 : vector<8x32xf32>
    %211 = math.tanh %210 : vector<8x32xf32>
    %212 = arith.mulf %207, %211 : vector<8x32xf32>
    %213 = arith.maximumf %179, %212 : vector<8x32xf32>
    %214 = arith.truncf %213 : vector<8x32xf32> to vector<8x32xbf16>
    %215 = arith.index_cast %c2_i32_39 : i32 to index
    %c0_55 = arith.constant 0 : index
    %c0_56 = arith.constant 0 : index
    %216 = vector.load %arg4[%215, %c0_55, %c0_56] : memref<4x8x32xbf16, #tpu.memory_space<vmem>>, vector<1x8x32xbf16>
    %217 = vector.shape_cast %216 : vector<1x8x32xbf16> to vector<8x32xbf16>
    %218 = vector.shape_cast %214 : vector<8x32xbf16> to vector<1x8x32xbf16>
    tpu.vector_store %arg4[%215, %c0_55, %c0_56], %218 {strides = array<i32>} : memref<4x8x32xbf16, #tpu.memory_space<vmem>>, vector<1x8x32xbf16>,
    %c3_i32 = arith.constant 3 : i32
    %c2_i32_57 = arith.constant 2 : i32
    %219 = arith.muli %c2_i32_57, %c3_i32 : i32
    %220 = arith.index_cast %219 : i32 to index
    %c0_58 = arith.constant 0 : index
    %c0_59 = arith.constant 0 : index
    %221 = vector.load %arg2[%220, %c0_58, %c0_59] : memref<8x8x128xf32, #tpu.memory_space<vmem>>, vector<1x8x128xf32>
    %222 = vector.shape_cast %221 : vector<1x8x128xf32> to vector<8x128xf32>
    %223 = arith.truncf %212 : vector<8x32xf32> to vector<8x32xbf16>
    %cst_60 = arith.constant dense<0.000000e+00> : vector<8x128xf32>
    %224 = tpu.matmul %223, %3, %cst_60 {dimension_numbers = #tpu.dot_dimension_numbers<[1], [0], [0], [1], [0, 0, 1, 1], [], []>} : vector<8x32xbf16>, vector<32x128xbf16>, vector<8x128xf32> -> vector<8x128xf32>
    %225 = arith.addf %222, %224 : vector<8x128xf32>
    %226 = vector.extract_strided_slice %225 {offsets = [0, 0], sizes = [8, 32], strides = [1, 1]} : vector<8x128xf32> to vector<8x32xf32>
    %227 = arith.negf %226 : vector<8x32xf32>
    %228 = math.exp %227 : vector<8x32xf32>
    %cst_61 = arith.constant 1.000000e+00 : f32
    %229 = vector.broadcast %cst_61 : f32 to vector<8x32xf32>
    %230 = arith.addf %229, %228 : vector<8x32xf32>
    %231 = arith.divf %229, %230 : vector<8x32xf32>
    %232 = vector.extract_strided_slice %225 {offsets = [0, 32], sizes = [8, 32], strides = [1, 1]} : vector<8x128xf32> to vector<8x32xf32>
    %233 = arith.negf %232 : vector<8x32xf32>
    %234 = math.exp %233 : vector<8x32xf32>
    %cst_62 = arith.constant 1.000000e+00 : f32
    %235 = vector.broadcast %cst_62 : f32 to vector<8x32xf32>
    %236 = arith.addf %235, %234 : vector<8x32xf32>
    %237 = arith.divf %235, %236 : vector<8x32xf32>
    %238 = vector.extract_strided_slice %225 {offsets = [0, 64], sizes = [8, 32], strides = [1, 1]} : vector<8x128xf32> to vector<8x32xf32>
    %239 = math.tanh %238 : vector<8x32xf32>
    %240 = vector.extract_strided_slice %225 {offsets = [0, 96], sizes = [8, 32], strides = [1, 1]} : vector<8x128xf32> to vector<8x32xf32>
    %241 = arith.negf %240 : vector<8x32xf32>
    %242 = math.exp %241 : vector<8x32xf32>
    %cst_63 = arith.constant 1.000000e+00 : f32
    %243 = vector.broadcast %cst_63 : f32 to vector<8x32xf32>
    %244 = arith.addf %243, %242 : vector<8x32xf32>
    %245 = arith.divf %243, %244 : vector<8x32xf32>
    %246 = arith.mulf %237, %210 : vector<8x32xf32>
    %247 = arith.mulf %231, %239 : vector<8x32xf32>
    %248 = arith.addf %246, %247 : vector<8x32xf32>
    %249 = math.tanh %248 : vector<8x32xf32>
    %250 = arith.mulf %245, %249 : vector<8x32xf32>
    %c2_i32_64 = arith.constant 2 : i32
    %251 = arith.muli %c2_i32_64, %c3_i32 : i32
    %c1_i32_65 = arith.constant 1 : i32
    %252 = arith.addi %251, %c1_i32_65 : i32
    %253 = arith.index_cast %252 : i32 to index
    %c0_66 = arith.constant 0 : index
    %c0_67 = arith.constant 0 : index
    %254 = vector.load %arg2[%253, %c0_66, %c0_67] : memref<8x8x128xf32, #tpu.memory_space<vmem>>, vector<1x8x128xf32>
    %255 = vector.shape_cast %254 : vector<1x8x128xf32> to vector<8x128xf32>
    %256 = arith.truncf %250 : vector<8x32xf32> to vector<8x32xbf16>
    %cst_68 = arith.constant dense<0.000000e+00> : vector<8x128xf32>
    %257 = tpu.matmul %256, %3, %cst_68 {dimension_numbers = #tpu.dot_dimension_numbers<[1], [0], [0], [1], [0, 0, 1, 1], [], []>} : vector<8x32xbf16>, vector<32x128xbf16>, vector<8x128xf32> -> vector<8x128xf32>
    %258 = arith.addf %255, %257 : vector<8x128xf32>
    %259 = vector.extract_strided_slice %258 {offsets = [0, 0], sizes = [8, 32], strides = [1, 1]} : vector<8x128xf32> to vector<8x32xf32>
    %260 = arith.negf %259 : vector<8x32xf32>
    %261 = math.exp %260 : vector<8x32xf32>
    %cst_69 = arith.constant 1.000000e+00 : f32
    %262 = vector.broadcast %cst_69 : f32 to vector<8x32xf32>
    %263 = arith.addf %262, %261 : vector<8x32xf32>
    %264 = arith.divf %262, %263 : vector<8x32xf32>
    %265 = vector.extract_strided_slice %258 {offsets = [0, 32], sizes = [8, 32], strides = [1, 1]} : vector<8x128xf32> to vector<8x32xf32>
    %266 = arith.negf %265 : vector<8x32xf32>
    %267 = math.exp %266 : vector<8x32xf32>
    %cst_70 = arith.constant 1.000000e+00 : f32
    %268 = vector.broadcast %cst_70 : f32 to vector<8x32xf32>
    %269 = arith.addf %268, %267 : vector<8x32xf32>
    %270 = arith.divf %268, %269 : vector<8x32xf32>
    %271 = vector.extract_strided_slice %258 {offsets = [0, 64], sizes = [8, 32], strides = [1, 1]} : vector<8x128xf32> to vector<8x32xf32>
    %272 = math.tanh %271 : vector<8x32xf32>
    %273 = vector.extract_strided_slice %258 {offsets = [0, 96], sizes = [8, 32], strides = [1, 1]} : vector<8x128xf32> to vector<8x32xf32>
    %274 = arith.negf %273 : vector<8x32xf32>
    %275 = math.exp %274 : vector<8x32xf32>
    %cst_71 = arith.constant 1.000000e+00 : f32
    %276 = vector.broadcast %cst_71 : f32 to vector<8x32xf32>
    %277 = arith.addf %276, %275 : vector<8x32xf32>
    %278 = arith.divf %276, %277 : vector<8x32xf32>
    %279 = arith.mulf %270, %248 : vector<8x32xf32>
    %280 = arith.mulf %264, %272 : vector<8x32xf32>
    %281 = arith.addf %279, %280 : vector<8x32xf32>
    %282 = math.tanh %281 : vector<8x32xf32>
    %283 = arith.mulf %278, %282 : vector<8x32xf32>
    %284 = arith.maximumf %250, %283 : vector<8x32xf32>
    %285 = arith.truncf %284 : vector<8x32xf32> to vector<8x32xbf16>
    %286 = arith.index_cast %c3_i32 : i32 to index
    %c0_72 = arith.constant 0 : index
    %c0_73 = arith.constant 0 : index
    %287 = vector.load %arg4[%286, %c0_72, %c0_73] : memref<4x8x32xbf16, #tpu.memory_space<vmem>>, vector<1x8x32xbf16>
    %288 = vector.shape_cast %287 : vector<1x8x32xbf16> to vector<8x32xbf16>
    %289 = vector.shape_cast %285 : vector<8x32xbf16> to vector<1x8x32xbf16>
    tpu.vector_store %arg4[%286, %c0_72, %c0_73], %289 {strides = array<i32>} : memref<4x8x32xbf16, #tpu.memory_space<vmem>>, vector<1x8x32xbf16>,
    %c4_i32 = arith.constant 4 : i32
    %c0_74 = arith.constant 0 : index
    %c0_75 = arith.constant 0 : index
    %290 = vector.load %arg5[%c0_74, %c0_75] : memref<8x32xf32, #tpu.memory_space<vmem>>, vector<8x32xf32>
    tpu.vector_store %arg5[%c0_74, %c0_75], %283 {strides = array<i32>} : memref<8x32xf32, #tpu.memory_space<vmem>>, vector<8x32xf32>,
    %c0_76 = arith.constant 0 : index
    %c0_77 = arith.constant 0 : index
    %291 = vector.load %arg6[%c0_76, %c0_77] : memref<8x32xf32, #tpu.memory_space<vmem>>, vector<8x32xf32>
    tpu.vector_store %arg6[%c0_76, %c0_77], %281 {strides = array<i32>} : memref<8x32xf32, #tpu.memory_space<vmem>>, vector<8x32xf32>,
    return
  }
  func.func @transform_0(%arg0: i32, %arg1: i32) -> (i32, i32, i32) {
    %c0_i32 = arith.constant 0 : i32
    %c0_i32_0 = arith.constant 0 : i32
    return %arg1, %arg0, %c0_i32 : i32, i32, i32
  }
  func.func @transform_1(%arg0: i32, %arg1: i32) -> (i32, i32) {
    %c0_i32 = arith.constant 0 : i32
    %c0_i32_0 = arith.constant 0 : i32
    %c0_i32_1 = arith.constant 0 : i32
    return %c0_i32, %c0_i32_0 : i32, i32
  }
  func.func @transform_2(%arg0: i32, %arg1: i32) -> (i32, i32, i32) {
    %c0_i32 = arith.constant 0 : i32
    %c0_i32_0 = arith.constant 0 : i32
    return %arg1, %arg0, %c0_i32 : i32, i32, i32
  }
}

module attributes {stable_mosaic.version = 11 : i64} {
  func.func @_linear_bias_kernel(%arg0: i32, %arg1: memref<128x8xf32, #tpu.memory_space<vmem>>, %arg2: memref<8x128xbf16, #tpu.memory_space<vmem>>, %arg3: memref<1x128xf32, #tpu.memory_space<vmem>>, %arg4: memref<128x128xf32, #tpu.memory_space<vmem>>) attributes {dimension_semantics = [#tpu.dimension_semantics<parallel>], iteration_bounds = array<i64: 1>, scalar_prefetch = 0 : i64, scratch_operands = 0 : i64, tpu.core_type = #tpu.core_type<tc>, window_params = [{transform_indices = @transform_0, window_bounds = array<i64: 128, 8>}, {pipeline_mode = #tpu.pipeline_mode<synchronous>, transform_indices = @transform_1, window_bounds = array<i64: 8, 128>}, {pipeline_mode = #tpu.pipeline_mode<synchronous>, transform_indices = @transform_2, window_bounds = array<i64: 1, 128>}, {transform_indices = @transform_3, window_bounds = array<i64: 128, 128>}]} {
    %c0 = arith.constant 0 : index
    %c0_0 = arith.constant 0 : index
    %0 = vector.load %arg1[%c0, %c0_0] : memref<128x8xf32, #tpu.memory_space<vmem>>, vector<128x8xf32>
    %1 = arith.truncf %0 : vector<128x8xf32> to vector<128x8xbf16>
    %c0_1 = arith.constant 0 : index
    %c0_2 = arith.constant 0 : index
    %2 = vector.load %arg2[%c0_1, %c0_2] : memref<8x128xbf16, #tpu.memory_space<vmem>>, vector<8x128xbf16>
    %cst = arith.constant dense<0.000000e+00> : vector<128x128xf32>
    %3 = tpu.matmul %1, %2, %cst {dimension_numbers = #tpu.dot_dimension_numbers<[1], [0], [0], [1], [0, 0, 1, 1], [], []>} : vector<128x8xbf16>, vector<8x128xbf16>, vector<128x128xf32> -> vector<128x128xf32>
    %c0_3 = arith.constant 0 : index
    %c0_4 = arith.constant 0 : index
    %4 = vector.load %arg3[%c0_3, %c0_4] : memref<1x128xf32, #tpu.memory_space<vmem>>, vector<1x128xf32>
    %5 = vector.broadcast %4 : vector<1x128xf32> to vector<128x128xf32>
    %6 = arith.addf %3, %5 : vector<128x128xf32>
    %c0_5 = arith.constant 0 : index
    %c0_6 = arith.constant 0 : index
    %7 = vector.load %arg4[%c0_5, %c0_6] : memref<128x128xf32, #tpu.memory_space<vmem>>, vector<128x128xf32>
    tpu.vector_store %arg4[%c0_5, %c0_6], %6 {strides = array<i32>} : memref<128x128xf32, #tpu.memory_space<vmem>>, vector<128x128xf32>,
    return
  }
  func.func @transform_0(%arg0: i32) -> (i32, i32) {
    %c0_i32 = arith.constant 0 : i32
    %c0_i32_0 = arith.constant 0 : i32
    return %arg0, %c0_i32 : i32, i32
  }
  func.func @transform_1(%arg0: i32) -> (i32, i32) {
    %c0_i32 = arith.constant 0 : i32
    %c0_i32_0 = arith.constant 0 : i32
    %c0_i32_1 = arith.constant 0 : i32
    return %c0_i32, %c0_i32_0 : i32, i32
  }
  func.func @transform_2(%arg0: i32) -> (i32, i32) {
    %c0_i32 = arith.constant 0 : i32
    %c0_i32_0 = arith.constant 0 : i32
    %c0_i32_1 = arith.constant 0 : i32
    return %c0_i32, %c0_i32_0 : i32, i32
  }
  func.func @transform_3(%arg0: i32) -> (i32, i32) {
    %c0_i32 = arith.constant 0 : i32
    %c0_i32_0 = arith.constant 0 : i32
    return %arg0, %c0_i32 : i32, i32
  }
}

module attributes {stable_mosaic.version = 11 : i64} {
  func.func @_linear_bias_kernel(%arg0: i32, %arg1: memref<64x32xbf16, #tpu.memory_space<vmem>>, %arg2: memref<32x128xbf16, #tpu.memory_space<vmem>>, %arg3: memref<1x128xf32, #tpu.memory_space<vmem>>, %arg4: memref<64x128xf32, #tpu.memory_space<vmem>>) attributes {dimension_semantics = [#tpu.dimension_semantics<parallel>], iteration_bounds = array<i64: 1>, scalar_prefetch = 0 : i64, scratch_operands = 0 : i64, tpu.core_type = #tpu.core_type<tc>, window_params = [{transform_indices = @transform_0, window_bounds = array<i64: 64, 32>}, {pipeline_mode = #tpu.pipeline_mode<synchronous>, transform_indices = @transform_1, window_bounds = array<i64: 32, 128>}, {pipeline_mode = #tpu.pipeline_mode<synchronous>, transform_indices = @transform_2, window_bounds = array<i64: 1, 128>}, {transform_indices = @transform_3, window_bounds = array<i64: 64, 128>}]} {
    %c0 = arith.constant 0 : index
    %c0_0 = arith.constant 0 : index
    %0 = vector.load %arg1[%c0, %c0_0] : memref<64x32xbf16, #tpu.memory_space<vmem>>, vector<64x32xbf16>
    %c0_1 = arith.constant 0 : index
    %c0_2 = arith.constant 0 : index
    %1 = vector.load %arg2[%c0_1, %c0_2] : memref<32x128xbf16, #tpu.memory_space<vmem>>, vector<32x128xbf16>
    %cst = arith.constant dense<0.000000e+00> : vector<64x128xf32>
    %2 = tpu.matmul %0, %1, %cst {dimension_numbers = #tpu.dot_dimension_numbers<[1], [0], [0], [1], [0, 0, 1, 1], [], []>} : vector<64x32xbf16>, vector<32x128xbf16>, vector<64x128xf32> -> vector<64x128xf32>
    %c0_3 = arith.constant 0 : index
    %c0_4 = arith.constant 0 : index
    %3 = vector.load %arg3[%c0_3, %c0_4] : memref<1x128xf32, #tpu.memory_space<vmem>>, vector<1x128xf32>
    %4 = vector.broadcast %3 : vector<1x128xf32> to vector<64x128xf32>
    %5 = arith.addf %2, %4 : vector<64x128xf32>
    %c0_5 = arith.constant 0 : index
    %c0_6 = arith.constant 0 : index
    %6 = vector.load %arg4[%c0_5, %c0_6] : memref<64x128xf32, #tpu.memory_space<vmem>>, vector<64x128xf32>
    tpu.vector_store %arg4[%c0_5, %c0_6], %5 {strides = array<i32>} : memref<64x128xf32, #tpu.memory_space<vmem>>, vector<64x128xf32>,
    return
  }
  func.func @transform_0(%arg0: i32) -> (i32, i32) {
    %c0_i32 = arith.constant 0 : i32
    %c0_i32_0 = arith.constant 0 : i32
    return %arg0, %c0_i32 : i32, i32
  }
  func.func @transform_1(%arg0: i32) -> (i32, i32) {
    %c0_i32 = arith.constant 0 : i32
    %c0_i32_0 = arith.constant 0 : i32
    %c0_i32_1 = arith.constant 0 : i32
    return %c0_i32, %c0_i32_0 : i32, i32
  }
  func.func @transform_2(%arg0: i32) -> (i32, i32) {
    %c0_i32 = arith.constant 0 : i32
    %c0_i32_0 = arith.constant 0 : i32
    %c0_i32_1 = arith.constant 0 : i32
    return %c0_i32, %c0_i32_0 : i32, i32
  }
  func.func @transform_3(%arg0: i32) -> (i32, i32) {
    %c0_i32 = arith.constant 0 : i32
    %c0_i32_0 = arith.constant 0 : i32
    return %arg0, %c0_i32 : i32, i32
  }
}

module attributes {stable_mosaic.version = 11 : i64} {
  func.func @_lstm_recurrent_kernel(%arg0: i32, %arg1: i32, %arg2: memref<8x8x128xf32, #tpu.memory_space<vmem>>, %arg3: memref<32x128xbf16, #tpu.memory_space<vmem>>, %arg4: memref<4x8x32xbf16, #tpu.memory_space<vmem>>, %arg5: memref<8x32xf32, #tpu.memory_space<vmem>>, %arg6: memref<8x32xf32, #tpu.memory_space<vmem>>) attributes {dimension_semantics = [#tpu.dimension_semantics<parallel>, #tpu.dimension_semantics<arbitrary>], iteration_bounds = array<i64: 1, 1>, scalar_prefetch = 0 : i64, scratch_operands = 2 : i64, tpu.core_type = #tpu.core_type<tc>, window_params = [{transform_indices = @transform_0, window_bounds = array<i64: 8, 8, 128>}, {pipeline_mode = #tpu.pipeline_mode<synchronous>, transform_indices = @transform_1, window_bounds = array<i64: 32, 128>}, {transform_indices = @transform_2, window_bounds = array<i64: 4, 8, 32>}]} {
    %c0_i32 = arith.constant 0 : i32
    %0 = arith.cmpi eq, %arg1, %c0_i32 : i32
    %1 = arith.extui %0 : i1 to i32
    %c0_i32_0 = arith.constant 0 : i32
    %2 = arith.cmpi ne, %1, %c0_i32_0 : i32
    scf.if %2 {
      %cst_78 = arith.constant 0.000000e+00 : f32
      %292 = vector.broadcast %cst_78 : f32 to vector<8x32xf32>
      %c0_79 = arith.constant 0 : index
      %c0_80 = arith.constant 0 : index
      %293 = vector.load %arg5[%c0_79, %c0_80] : memref<8x32xf32, #tpu.memory_space<vmem>>, vector<8x32xf32>
      tpu.vector_store %arg5[%c0_79, %c0_80], %292 {strides = array<i32>} : memref<8x32xf32, #tpu.memory_space<vmem>>, vector<8x32xf32>,
      %cst_81 = arith.constant 0.000000e+00 : f32
      %294 = vector.broadcast %cst_81 : f32 to vector<8x32xf32>
      %c0_82 = arith.constant 0 : index
      %c0_83 = arith.constant 0 : index
      %295 = vector.load %arg6[%c0_82, %c0_83] : memref<8x32xf32, #tpu.memory_space<vmem>>, vector<8x32xf32>
      tpu.vector_store %arg6[%c0_82, %c0_83], %294 {strides = array<i32>} : memref<8x32xf32, #tpu.memory_space<vmem>>, vector<8x32xf32>,
    } else {
    }
    %c0 = arith.constant 0 : index
    %c0_1 = arith.constant 0 : index
    %3 = vector.load %arg3[%c0, %c0_1] : memref<32x128xbf16, #tpu.memory_space<vmem>>, vector<32x128xbf16>
    %c0_2 = arith.constant 0 : index
    %c0_3 = arith.constant 0 : index
    %4 = vector.load %arg5[%c0_2, %c0_3] : memref<8x32xf32, #tpu.memory_space<vmem>>, vector<8x32xf32>
    %c0_4 = arith.constant 0 : index
    %c0_5 = arith.constant 0 : index
    %5 = vector.load %arg6[%c0_4, %c0_5] : memref<8x32xf32, #tpu.memory_space<vmem>>, vector<8x32xf32>
    %c0_i32_6 = arith.constant 0 : i32
    %c2_i32 = arith.constant 2 : i32
    %6 = arith.muli %c2_i32, %c0_i32_6 : i32
    %7 = arith.index_cast %6 : i32 to index
    %c0_7 = arith.constant 0 : index
    %c0_8 = arith.constant 0 : index
    %8 = vector.load %arg2[%7, %c0_7, %c0_8] : memref<8x8x128xf32, #tpu.memory_space<vmem>>, vector<1x8x128xf32>
    %9 = vector.shape_cast %8 : vector<1x8x128xf32> to vector<8x128xf32>
    %10 = arith.truncf %4 : vector<8x32xf32> to vector<8x32xbf16>
    %cst = arith.constant dense<0.000000e+00> : vector<8x128xf32>
    %11 = tpu.matmul %10, %3, %cst {dimension_numbers = #tpu.dot_dimension_numbers<[1], [0], [0], [1], [0, 0, 1, 1], [], []>} : vector<8x32xbf16>, vector<32x128xbf16>, vector<8x128xf32> -> vector<8x128xf32>
    %12 = arith.addf %9, %11 : vector<8x128xf32>
    %13 = vector.extract_strided_slice %12 {offsets = [0, 0], sizes = [8, 32], strides = [1, 1]} : vector<8x128xf32> to vector<8x32xf32>
    %14 = arith.negf %13 : vector<8x32xf32>
    %15 = math.exp %14 : vector<8x32xf32>
    %cst_9 = arith.constant 1.000000e+00 : f32
    %16 = vector.broadcast %cst_9 : f32 to vector<8x32xf32>
    %17 = arith.addf %16, %15 : vector<8x32xf32>
    %18 = arith.divf %16, %17 : vector<8x32xf32>
    %19 = vector.extract_strided_slice %12 {offsets = [0, 32], sizes = [8, 32], strides = [1, 1]} : vector<8x128xf32> to vector<8x32xf32>
    %20 = arith.negf %19 : vector<8x32xf32>
    %21 = math.exp %20 : vector<8x32xf32>
    %cst_10 = arith.constant 1.000000e+00 : f32
    %22 = vector.broadcast %cst_10 : f32 to vector<8x32xf32>
    %23 = arith.addf %22, %21 : vector<8x32xf32>
    %24 = arith.divf %22, %23 : vector<8x32xf32>
    %25 = vector.extract_strided_slice %12 {offsets = [0, 64], sizes = [8, 32], strides = [1, 1]} : vector<8x128xf32> to vector<8x32xf32>
    %26 = math.tanh %25 : vector<8x32xf32>
    %27 = vector.extract_strided_slice %12 {offsets = [0, 96], sizes = [8, 32], strides = [1, 1]} : vector<8x128xf32> to vector<8x32xf32>
    %28 = arith.negf %27 : vector<8x32xf32>
    %29 = math.exp %28 : vector<8x32xf32>
    %cst_11 = arith.constant 1.000000e+00 : f32
    %30 = vector.broadcast %cst_11 : f32 to vector<8x32xf32>
    %31 = arith.addf %30, %29 : vector<8x32xf32>
    %32 = arith.divf %30, %31 : vector<8x32xf32>
    %33 = arith.mulf %24, %5 : vector<8x32xf32>
    %34 = arith.mulf %18, %26 : vector<8x32xf32>
    %35 = arith.addf %33, %34 : vector<8x32xf32>
    %36 = math.tanh %35 : vector<8x32xf32>
    %37 = arith.mulf %32, %36 : vector<8x32xf32>
    %c2_i32_12 = arith.constant 2 : i32
    %38 = arith.muli %c2_i32_12, %c0_i32_6 : i32
    %c1_i32 = arith.constant 1 : i32
    %39 = arith.addi %38, %c1_i32 : i32
    %40 = arith.index_cast %39 : i32 to index
    %c0_13 = arith.constant 0 : index
    %c0_14 = arith.constant 0 : index
    %41 = vector.load %arg2[%40, %c0_13, %c0_14] : memref<8x8x128xf32, #tpu.memory_space<vmem>>, vector<1x8x128xf32>
    %42 = vector.shape_cast %41 : vector<1x8x128xf32> to vector<8x128xf32>
    %43 = arith.truncf %37 : vector<8x32xf32> to vector<8x32xbf16>
    %cst_15 = arith.constant dense<0.000000e+00> : vector<8x128xf32>
    %44 = tpu.matmul %43, %3, %cst_15 {dimension_numbers = #tpu.dot_dimension_numbers<[1], [0], [0], [1], [0, 0, 1, 1], [], []>} : vector<8x32xbf16>, vector<32x128xbf16>, vector<8x128xf32> -> vector<8x128xf32>
    %45 = arith.addf %42, %44 : vector<8x128xf32>
    %46 = vector.extract_strided_slice %45 {offsets = [0, 0], sizes = [8, 32], strides = [1, 1]} : vector<8x128xf32> to vector<8x32xf32>
    %47 = arith.negf %46 : vector<8x32xf32>
    %48 = math.exp %47 : vector<8x32xf32>
    %cst_16 = arith.constant 1.000000e+00 : f32
    %49 = vector.broadcast %cst_16 : f32 to vector<8x32xf32>
    %50 = arith.addf %49, %48 : vector<8x32xf32>
    %51 = arith.divf %49, %50 : vector<8x32xf32>
    %52 = vector.extract_strided_slice %45 {offsets = [0, 32], sizes = [8, 32], strides = [1, 1]} : vector<8x128xf32> to vector<8x32xf32>
    %53 = arith.negf %52 : vector<8x32xf32>
    %54 = math.exp %53 : vector<8x32xf32>
    %cst_17 = arith.constant 1.000000e+00 : f32
    %55 = vector.broadcast %cst_17 : f32 to vector<8x32xf32>
    %56 = arith.addf %55, %54 : vector<8x32xf32>
    %57 = arith.divf %55, %56 : vector<8x32xf32>
    %58 = vector.extract_strided_slice %45 {offsets = [0, 64], sizes = [8, 32], strides = [1, 1]} : vector<8x128xf32> to vector<8x32xf32>
    %59 = math.tanh %58 : vector<8x32xf32>
    %60 = vector.extract_strided_slice %45 {offsets = [0, 96], sizes = [8, 32], strides = [1, 1]} : vector<8x128xf32> to vector<8x32xf32>
    %61 = arith.negf %60 : vector<8x32xf32>
    %62 = math.exp %61 : vector<8x32xf32>
    %cst_18 = arith.constant 1.000000e+00 : f32
    %63 = vector.broadcast %cst_18 : f32 to vector<8x32xf32>
    %64 = arith.addf %63, %62 : vector<8x32xf32>
    %65 = arith.divf %63, %64 : vector<8x32xf32>
    %66 = arith.mulf %57, %35 : vector<8x32xf32>
    %67 = arith.mulf %51, %59 : vector<8x32xf32>
    %68 = arith.addf %66, %67 : vector<8x32xf32>
    %69 = math.tanh %68 : vector<8x32xf32>
    %70 = arith.mulf %65, %69 : vector<8x32xf32>
    %71 = arith.maximumf %37, %70 : vector<8x32xf32>
    %72 = arith.truncf %71 : vector<8x32xf32> to vector<8x32xbf16>
    %73 = arith.index_cast %c0_i32_6 : i32 to index
    %c0_19 = arith.constant 0 : index
    %c0_20 = arith.constant 0 : index
    %74 = vector.load %arg4[%73, %c0_19, %c0_20] : memref<4x8x32xbf16, #tpu.memory_space<vmem>>, vector<1x8x32xbf16>
    %75 = vector.shape_cast %74 : vector<1x8x32xbf16> to vector<8x32xbf16>
    %76 = vector.shape_cast %72 : vector<8x32xbf16> to vector<1x8x32xbf16>
    tpu.vector_store %arg4[%73, %c0_19, %c0_20], %76 {strides = array<i32>} : memref<4x8x32xbf16, #tpu.memory_space<vmem>>, vector<1x8x32xbf16>,
    %c1_i32_21 = arith.constant 1 : i32
    %c2_i32_22 = arith.constant 2 : i32
    %77 = arith.muli %c2_i32_22, %c1_i32_21 : i32
    %78 = arith.index_cast %77 : i32 to index
    %c0_23 = arith.constant 0 : index
    %c0_24 = arith.constant 0 : index
    %79 = vector.load %arg2[%78, %c0_23, %c0_24] : memref<8x8x128xf32, #tpu.memory_space<vmem>>, vector<1x8x128xf32>
    %80 = vector.shape_cast %79 : vector<1x8x128xf32> to vector<8x128xf32>
    %81 = arith.truncf %70 : vector<8x32xf32> to vector<8x32xbf16>
    %cst_25 = arith.constant dense<0.000000e+00> : vector<8x128xf32>
    %82 = tpu.matmul %81, %3, %cst_25 {dimension_numbers = #tpu.dot_dimension_numbers<[1], [0], [0], [1], [0, 0, 1, 1], [], []>} : vector<8x32xbf16>, vector<32x128xbf16>, vector<8x128xf32> -> vector<8x128xf32>
    %83 = arith.addf %80, %82 : vector<8x128xf32>
    %84 = vector.extract_strided_slice %83 {offsets = [0, 0], sizes = [8, 32], strides = [1, 1]} : vector<8x128xf32> to vector<8x32xf32>
    %85 = arith.negf %84 : vector<8x32xf32>
    %86 = math.exp %85 : vector<8x32xf32>
    %cst_26 = arith.constant 1.000000e+00 : f32
    %87 = vector.broadcast %cst_26 : f32 to vector<8x32xf32>
    %88 = arith.addf %87, %86 : vector<8x32xf32>
    %89 = arith.divf %87, %88 : vector<8x32xf32>
    %90 = vector.extract_strided_slice %83 {offsets = [0, 32], sizes = [8, 32], strides = [1, 1]} : vector<8x128xf32> to vector<8x32xf32>
    %91 = arith.negf %90 : vector<8x32xf32>
    %92 = math.exp %91 : vector<8x32xf32>
    %cst_27 = arith.constant 1.000000e+00 : f32
    %93 = vector.broadcast %cst_27 : f32 to vector<8x32xf32>
    %94 = arith.addf %93, %92 : vector<8x32xf32>
    %95 = arith.divf %93, %94 : vector<8x32xf32>
    %96 = vector.extract_strided_slice %83 {offsets = [0, 64], sizes = [8, 32], strides = [1, 1]} : vector<8x128xf32> to vector<8x32xf32>
    %97 = math.tanh %96 : vector<8x32xf32>
    %98 = vector.extract_strided_slice %83 {offsets = [0, 96], sizes = [8, 32], strides = [1, 1]} : vector<8x128xf32> to vector<8x32xf32>
    %99 = arith.negf %98 : vector<8x32xf32>
    %100 = math.exp %99 : vector<8x32xf32>
    %cst_28 = arith.constant 1.000000e+00 : f32
    %101 = vector.broadcast %cst_28 : f32 to vector<8x32xf32>
    %102 = arith.addf %101, %100 : vector<8x32xf32>
    %103 = arith.divf %101, %102 : vector<8x32xf32>
    %104 = arith.mulf %95, %68 : vector<8x32xf32>
    %105 = arith.mulf %89, %97 : vector<8x32xf32>
    %106 = arith.addf %104, %105 : vector<8x32xf32>
    %107 = math.tanh %106 : vector<8x32xf32>
    %108 = arith.mulf %103, %107 : vector<8x32xf32>
    %c2_i32_29 = arith.constant 2 : i32
    %109 = arith.muli %c2_i32_29, %c1_i32_21 : i32
    %c1_i32_30 = arith.constant 1 : i32
    %110 = arith.addi %109, %c1_i32_30 : i32
    %111 = arith.index_cast %110 : i32 to index
    %c0_31 = arith.constant 0 : index
    %c0_32 = arith.constant 0 : index
    %112 = vector.load %arg2[%111, %c0_31, %c0_32] : memref<8x8x128xf32, #tpu.memory_space<vmem>>, vector<1x8x128xf32>
    %113 = vector.shape_cast %112 : vector<1x8x128xf32> to vector<8x128xf32>
    %114 = arith.truncf %108 : vector<8x32xf32> to vector<8x32xbf16>
    %cst_33 = arith.constant dense<0.000000e+00> : vector<8x128xf32>
    %115 = tpu.matmul %114, %3, %cst_33 {dimension_numbers = #tpu.dot_dimension_numbers<[1], [0], [0], [1], [0, 0, 1, 1], [], []>} : vector<8x32xbf16>, vector<32x128xbf16>, vector<8x128xf32> -> vector<8x128xf32>
    %116 = arith.addf %113, %115 : vector<8x128xf32>
    %117 = vector.extract_strided_slice %116 {offsets = [0, 0], sizes = [8, 32], strides = [1, 1]} : vector<8x128xf32> to vector<8x32xf32>
    %118 = arith.negf %117 : vector<8x32xf32>
    %119 = math.exp %118 : vector<8x32xf32>
    %cst_34 = arith.constant 1.000000e+00 : f32
    %120 = vector.broadcast %cst_34 : f32 to vector<8x32xf32>
    %121 = arith.addf %120, %119 : vector<8x32xf32>
    %122 = arith.divf %120, %121 : vector<8x32xf32>
    %123 = vector.extract_strided_slice %116 {offsets = [0, 32], sizes = [8, 32], strides = [1, 1]} : vector<8x128xf32> to vector<8x32xf32>
    %124 = arith.negf %123 : vector<8x32xf32>
    %125 = math.exp %124 : vector<8x32xf32>
    %cst_35 = arith.constant 1.000000e+00 : f32
    %126 = vector.broadcast %cst_35 : f32 to vector<8x32xf32>
    %127 = arith.addf %126, %125 : vector<8x32xf32>
    %128 = arith.divf %126, %127 : vector<8x32xf32>
    %129 = vector.extract_strided_slice %116 {offsets = [0, 64], sizes = [8, 32], strides = [1, 1]} : vector<8x128xf32> to vector<8x32xf32>
    %130 = math.tanh %129 : vector<8x32xf32>
    %131 = vector.extract_strided_slice %116 {offsets = [0, 96], sizes = [8, 32], strides = [1, 1]} : vector<8x128xf32> to vector<8x32xf32>
    %132 = arith.negf %131 : vector<8x32xf32>
    %133 = math.exp %132 : vector<8x32xf32>
    %cst_36 = arith.constant 1.000000e+00 : f32
    %134 = vector.broadcast %cst_36 : f32 to vector<8x32xf32>
    %135 = arith.addf %134, %133 : vector<8x32xf32>
    %136 = arith.divf %134, %135 : vector<8x32xf32>
    %137 = arith.mulf %128, %106 : vector<8x32xf32>
    %138 = arith.mulf %122, %130 : vector<8x32xf32>
    %139 = arith.addf %137, %138 : vector<8x32xf32>
    %140 = math.tanh %139 : vector<8x32xf32>
    %141 = arith.mulf %136, %140 : vector<8x32xf32>
    %142 = arith.maximumf %108, %141 : vector<8x32xf32>
    %143 = arith.truncf %142 : vector<8x32xf32> to vector<8x32xbf16>
    %144 = arith.index_cast %c1_i32_21 : i32 to index
    %c0_37 = arith.constant 0 : index
    %c0_38 = arith.constant 0 : index
    %145 = vector.load %arg4[%144, %c0_37, %c0_38] : memref<4x8x32xbf16, #tpu.memory_space<vmem>>, vector<1x8x32xbf16>
    %146 = vector.shape_cast %145 : vector<1x8x32xbf16> to vector<8x32xbf16>
    %147 = vector.shape_cast %143 : vector<8x32xbf16> to vector<1x8x32xbf16>
    tpu.vector_store %arg4[%144, %c0_37, %c0_38], %147 {strides = array<i32>} : memref<4x8x32xbf16, #tpu.memory_space<vmem>>, vector<1x8x32xbf16>,
    %c2_i32_39 = arith.constant 2 : i32
    %c2_i32_40 = arith.constant 2 : i32
    %148 = arith.muli %c2_i32_40, %c2_i32_39 : i32
    %149 = arith.index_cast %148 : i32 to index
    %c0_41 = arith.constant 0 : index
    %c0_42 = arith.constant 0 : index
    %150 = vector.load %arg2[%149, %c0_41, %c0_42] : memref<8x8x128xf32, #tpu.memory_space<vmem>>, vector<1x8x128xf32>
    %151 = vector.shape_cast %150 : vector<1x8x128xf32> to vector<8x128xf32>
    %152 = arith.truncf %141 : vector<8x32xf32> to vector<8x32xbf16>
    %cst_43 = arith.constant dense<0.000000e+00> : vector<8x128xf32>
    %153 = tpu.matmul %152, %3, %cst_43 {dimension_numbers = #tpu.dot_dimension_numbers<[1], [0], [0], [1], [0, 0, 1, 1], [], []>} : vector<8x32xbf16>, vector<32x128xbf16>, vector<8x128xf32> -> vector<8x128xf32>
    %154 = arith.addf %151, %153 : vector<8x128xf32>
    %155 = vector.extract_strided_slice %154 {offsets = [0, 0], sizes = [8, 32], strides = [1, 1]} : vector<8x128xf32> to vector<8x32xf32>
    %156 = arith.negf %155 : vector<8x32xf32>
    %157 = math.exp %156 : vector<8x32xf32>
    %cst_44 = arith.constant 1.000000e+00 : f32
    %158 = vector.broadcast %cst_44 : f32 to vector<8x32xf32>
    %159 = arith.addf %158, %157 : vector<8x32xf32>
    %160 = arith.divf %158, %159 : vector<8x32xf32>
    %161 = vector.extract_strided_slice %154 {offsets = [0, 32], sizes = [8, 32], strides = [1, 1]} : vector<8x128xf32> to vector<8x32xf32>
    %162 = arith.negf %161 : vector<8x32xf32>
    %163 = math.exp %162 : vector<8x32xf32>
    %cst_45 = arith.constant 1.000000e+00 : f32
    %164 = vector.broadcast %cst_45 : f32 to vector<8x32xf32>
    %165 = arith.addf %164, %163 : vector<8x32xf32>
    %166 = arith.divf %164, %165 : vector<8x32xf32>
    %167 = vector.extract_strided_slice %154 {offsets = [0, 64], sizes = [8, 32], strides = [1, 1]} : vector<8x128xf32> to vector<8x32xf32>
    %168 = math.tanh %167 : vector<8x32xf32>
    %169 = vector.extract_strided_slice %154 {offsets = [0, 96], sizes = [8, 32], strides = [1, 1]} : vector<8x128xf32> to vector<8x32xf32>
    %170 = arith.negf %169 : vector<8x32xf32>
    %171 = math.exp %170 : vector<8x32xf32>
    %cst_46 = arith.constant 1.000000e+00 : f32
    %172 = vector.broadcast %cst_46 : f32 to vector<8x32xf32>
    %173 = arith.addf %172, %171 : vector<8x32xf32>
    %174 = arith.divf %172, %173 : vector<8x32xf32>
    %175 = arith.mulf %166, %139 : vector<8x32xf32>
    %176 = arith.mulf %160, %168 : vector<8x32xf32>
    %177 = arith.addf %175, %176 : vector<8x32xf32>
    %178 = math.tanh %177 : vector<8x32xf32>
    %179 = arith.mulf %174, %178 : vector<8x32xf32>
    %c2_i32_47 = arith.constant 2 : i32
    %180 = arith.muli %c2_i32_47, %c2_i32_39 : i32
    %c1_i32_48 = arith.constant 1 : i32
    %181 = arith.addi %180, %c1_i32_48 : i32
    %182 = arith.index_cast %181 : i32 to index
    %c0_49 = arith.constant 0 : index
    %c0_50 = arith.constant 0 : index
    %183 = vector.load %arg2[%182, %c0_49, %c0_50] : memref<8x8x128xf32, #tpu.memory_space<vmem>>, vector<1x8x128xf32>
    %184 = vector.shape_cast %183 : vector<1x8x128xf32> to vector<8x128xf32>
    %185 = arith.truncf %179 : vector<8x32xf32> to vector<8x32xbf16>
    %cst_51 = arith.constant dense<0.000000e+00> : vector<8x128xf32>
    %186 = tpu.matmul %185, %3, %cst_51 {dimension_numbers = #tpu.dot_dimension_numbers<[1], [0], [0], [1], [0, 0, 1, 1], [], []>} : vector<8x32xbf16>, vector<32x128xbf16>, vector<8x128xf32> -> vector<8x128xf32>
    %187 = arith.addf %184, %186 : vector<8x128xf32>
    %188 = vector.extract_strided_slice %187 {offsets = [0, 0], sizes = [8, 32], strides = [1, 1]} : vector<8x128xf32> to vector<8x32xf32>
    %189 = arith.negf %188 : vector<8x32xf32>
    %190 = math.exp %189 : vector<8x32xf32>
    %cst_52 = arith.constant 1.000000e+00 : f32
    %191 = vector.broadcast %cst_52 : f32 to vector<8x32xf32>
    %192 = arith.addf %191, %190 : vector<8x32xf32>
    %193 = arith.divf %191, %192 : vector<8x32xf32>
    %194 = vector.extract_strided_slice %187 {offsets = [0, 32], sizes = [8, 32], strides = [1, 1]} : vector<8x128xf32> to vector<8x32xf32>
    %195 = arith.negf %194 : vector<8x32xf32>
    %196 = math.exp %195 : vector<8x32xf32>
    %cst_53 = arith.constant 1.000000e+00 : f32
    %197 = vector.broadcast %cst_53 : f32 to vector<8x32xf32>
    %198 = arith.addf %197, %196 : vector<8x32xf32>
    %199 = arith.divf %197, %198 : vector<8x32xf32>
    %200 = vector.extract_strided_slice %187 {offsets = [0, 64], sizes = [8, 32], strides = [1, 1]} : vector<8x128xf32> to vector<8x32xf32>
    %201 = math.tanh %200 : vector<8x32xf32>
    %202 = vector.extract_strided_slice %187 {offsets = [0, 96], sizes = [8, 32], strides = [1, 1]} : vector<8x128xf32> to vector<8x32xf32>
    %203 = arith.negf %202 : vector<8x32xf32>
    %204 = math.exp %203 : vector<8x32xf32>
    %cst_54 = arith.constant 1.000000e+00 : f32
    %205 = vector.broadcast %cst_54 : f32 to vector<8x32xf32>
    %206 = arith.addf %205, %204 : vector<8x32xf32>
    %207 = arith.divf %205, %206 : vector<8x32xf32>
    %208 = arith.mulf %199, %177 : vector<8x32xf32>
    %209 = arith.mulf %193, %201 : vector<8x32xf32>
    %210 = arith.addf %208, %209 : vector<8x32xf32>
    %211 = math.tanh %210 : vector<8x32xf32>
    %212 = arith.mulf %207, %211 : vector<8x32xf32>
    %213 = arith.maximumf %179, %212 : vector<8x32xf32>
    %214 = arith.truncf %213 : vector<8x32xf32> to vector<8x32xbf16>
    %215 = arith.index_cast %c2_i32_39 : i32 to index
    %c0_55 = arith.constant 0 : index
    %c0_56 = arith.constant 0 : index
    %216 = vector.load %arg4[%215, %c0_55, %c0_56] : memref<4x8x32xbf16, #tpu.memory_space<vmem>>, vector<1x8x32xbf16>
    %217 = vector.shape_cast %216 : vector<1x8x32xbf16> to vector<8x32xbf16>
    %218 = vector.shape_cast %214 : vector<8x32xbf16> to vector<1x8x32xbf16>
    tpu.vector_store %arg4[%215, %c0_55, %c0_56], %218 {strides = array<i32>} : memref<4x8x32xbf16, #tpu.memory_space<vmem>>, vector<1x8x32xbf16>,
    %c3_i32 = arith.constant 3 : i32
    %c2_i32_57 = arith.constant 2 : i32
    %219 = arith.muli %c2_i32_57, %c3_i32 : i32
    %220 = arith.index_cast %219 : i32 to index
    %c0_58 = arith.constant 0 : index
    %c0_59 = arith.constant 0 : index
    %221 = vector.load %arg2[%220, %c0_58, %c0_59] : memref<8x8x128xf32, #tpu.memory_space<vmem>>, vector<1x8x128xf32>
    %222 = vector.shape_cast %221 : vector<1x8x128xf32> to vector<8x128xf32>
    %223 = arith.truncf %212 : vector<8x32xf32> to vector<8x32xbf16>
    %cst_60 = arith.constant dense<0.000000e+00> : vector<8x128xf32>
    %224 = tpu.matmul %223, %3, %cst_60 {dimension_numbers = #tpu.dot_dimension_numbers<[1], [0], [0], [1], [0, 0, 1, 1], [], []>} : vector<8x32xbf16>, vector<32x128xbf16>, vector<8x128xf32> -> vector<8x128xf32>
    %225 = arith.addf %222, %224 : vector<8x128xf32>
    %226 = vector.extract_strided_slice %225 {offsets = [0, 0], sizes = [8, 32], strides = [1, 1]} : vector<8x128xf32> to vector<8x32xf32>
    %227 = arith.negf %226 : vector<8x32xf32>
    %228 = math.exp %227 : vector<8x32xf32>
    %cst_61 = arith.constant 1.000000e+00 : f32
    %229 = vector.broadcast %cst_61 : f32 to vector<8x32xf32>
    %230 = arith.addf %229, %228 : vector<8x32xf32>
    %231 = arith.divf %229, %230 : vector<8x32xf32>
    %232 = vector.extract_strided_slice %225 {offsets = [0, 32], sizes = [8, 32], strides = [1, 1]} : vector<8x128xf32> to vector<8x32xf32>
    %233 = arith.negf %232 : vector<8x32xf32>
    %234 = math.exp %233 : vector<8x32xf32>
    %cst_62 = arith.constant 1.000000e+00 : f32
    %235 = vector.broadcast %cst_62 : f32 to vector<8x32xf32>
    %236 = arith.addf %235, %234 : vector<8x32xf32>
    %237 = arith.divf %235, %236 : vector<8x32xf32>
    %238 = vector.extract_strided_slice %225 {offsets = [0, 64], sizes = [8, 32], strides = [1, 1]} : vector<8x128xf32> to vector<8x32xf32>
    %239 = math.tanh %238 : vector<8x32xf32>
    %240 = vector.extract_strided_slice %225 {offsets = [0, 96], sizes = [8, 32], strides = [1, 1]} : vector<8x128xf32> to vector<8x32xf32>
    %241 = arith.negf %240 : vector<8x32xf32>
    %242 = math.exp %241 : vector<8x32xf32>
    %cst_63 = arith.constant 1.000000e+00 : f32
    %243 = vector.broadcast %cst_63 : f32 to vector<8x32xf32>
    %244 = arith.addf %243, %242 : vector<8x32xf32>
    %245 = arith.divf %243, %244 : vector<8x32xf32>
    %246 = arith.mulf %237, %210 : vector<8x32xf32>
    %247 = arith.mulf %231, %239 : vector<8x32xf32>
    %248 = arith.addf %246, %247 : vector<8x32xf32>
    %249 = math.tanh %248 : vector<8x32xf32>
    %250 = arith.mulf %245, %249 : vector<8x32xf32>
    %c2_i32_64 = arith.constant 2 : i32
    %251 = arith.muli %c2_i32_64, %c3_i32 : i32
    %c1_i32_65 = arith.constant 1 : i32
    %252 = arith.addi %251, %c1_i32_65 : i32
    %253 = arith.index_cast %252 : i32 to index
    %c0_66 = arith.constant 0 : index
    %c0_67 = arith.constant 0 : index
    %254 = vector.load %arg2[%253, %c0_66, %c0_67] : memref<8x8x128xf32, #tpu.memory_space<vmem>>, vector<1x8x128xf32>
    %255 = vector.shape_cast %254 : vector<1x8x128xf32> to vector<8x128xf32>
    %256 = arith.truncf %250 : vector<8x32xf32> to vector<8x32xbf16>
    %cst_68 = arith.constant dense<0.000000e+00> : vector<8x128xf32>
    %257 = tpu.matmul %256, %3, %cst_68 {dimension_numbers = #tpu.dot_dimension_numbers<[1], [0], [0], [1], [0, 0, 1, 1], [], []>} : vector<8x32xbf16>, vector<32x128xbf16>, vector<8x128xf32> -> vector<8x128xf32>
    %258 = arith.addf %255, %257 : vector<8x128xf32>
    %259 = vector.extract_strided_slice %258 {offsets = [0, 0], sizes = [8, 32], strides = [1, 1]} : vector<8x128xf32> to vector<8x32xf32>
    %260 = arith.negf %259 : vector<8x32xf32>
    %261 = math.exp %260 : vector<8x32xf32>
    %cst_69 = arith.constant 1.000000e+00 : f32
    %262 = vector.broadcast %cst_69 : f32 to vector<8x32xf32>
    %263 = arith.addf %262, %261 : vector<8x32xf32>
    %264 = arith.divf %262, %263 : vector<8x32xf32>
    %265 = vector.extract_strided_slice %258 {offsets = [0, 32], sizes = [8, 32], strides = [1, 1]} : vector<8x128xf32> to vector<8x32xf32>
    %266 = arith.negf %265 : vector<8x32xf32>
    %267 = math.exp %266 : vector<8x32xf32>
    %cst_70 = arith.constant 1.000000e+00 : f32
    %268 = vector.broadcast %cst_70 : f32 to vector<8x32xf32>
    %269 = arith.addf %268, %267 : vector<8x32xf32>
    %270 = arith.divf %268, %269 : vector<8x32xf32>
    %271 = vector.extract_strided_slice %258 {offsets = [0, 64], sizes = [8, 32], strides = [1, 1]} : vector<8x128xf32> to vector<8x32xf32>
    %272 = math.tanh %271 : vector<8x32xf32>
    %273 = vector.extract_strided_slice %258 {offsets = [0, 96], sizes = [8, 32], strides = [1, 1]} : vector<8x128xf32> to vector<8x32xf32>
    %274 = arith.negf %273 : vector<8x32xf32>
    %275 = math.exp %274 : vector<8x32xf32>
    %cst_71 = arith.constant 1.000000e+00 : f32
    %276 = vector.broadcast %cst_71 : f32 to vector<8x32xf32>
    %277 = arith.addf %276, %275 : vector<8x32xf32>
    %278 = arith.divf %276, %277 : vector<8x32xf32>
    %279 = arith.mulf %270, %248 : vector<8x32xf32>
    %280 = arith.mulf %264, %272 : vector<8x32xf32>
    %281 = arith.addf %279, %280 : vector<8x32xf32>
    %282 = math.tanh %281 : vector<8x32xf32>
    %283 = arith.mulf %278, %282 : vector<8x32xf32>
    %284 = arith.maximumf %250, %283 : vector<8x32xf32>
    %285 = arith.truncf %284 : vector<8x32xf32> to vector<8x32xbf16>
    %286 = arith.index_cast %c3_i32 : i32 to index
    %c0_72 = arith.constant 0 : index
    %c0_73 = arith.constant 0 : index
    %287 = vector.load %arg4[%286, %c0_72, %c0_73] : memref<4x8x32xbf16, #tpu.memory_space<vmem>>, vector<1x8x32xbf16>
    %288 = vector.shape_cast %287 : vector<1x8x32xbf16> to vector<8x32xbf16>
    %289 = vector.shape_cast %285 : vector<8x32xbf16> to vector<1x8x32xbf16>
    tpu.vector_store %arg4[%286, %c0_72, %c0_73], %289 {strides = array<i32>} : memref<4x8x32xbf16, #tpu.memory_space<vmem>>, vector<1x8x32xbf16>,
    %c4_i32 = arith.constant 4 : i32
    %c0_74 = arith.constant 0 : index
    %c0_75 = arith.constant 0 : index
    %290 = vector.load %arg5[%c0_74, %c0_75] : memref<8x32xf32, #tpu.memory_space<vmem>>, vector<8x32xf32>
    tpu.vector_store %arg5[%c0_74, %c0_75], %283 {strides = array<i32>} : memref<8x32xf32, #tpu.memory_space<vmem>>, vector<8x32xf32>,
    %c0_76 = arith.constant 0 : index
    %c0_77 = arith.constant 0 : index
    %291 = vector.load %arg6[%c0_76, %c0_77] : memref<8x32xf32, #tpu.memory_space<vmem>>, vector<8x32xf32>
    tpu.vector_store %arg6[%c0_76, %c0_77], %281 {strides = array<i32>} : memref<8x32xf32, #tpu.memory_space<vmem>>, vector<8x32xf32>,
    return
  }
  func.func @transform_0(%arg0: i32, %arg1: i32) -> (i32, i32, i32) {
    %c0_i32 = arith.constant 0 : i32
    %c0_i32_0 = arith.constant 0 : i32
    return %arg1, %arg0, %c0_i32 : i32, i32, i32
  }
  func.func @transform_1(%arg0: i32, %arg1: i32) -> (i32, i32) {
    %c0_i32 = arith.constant 0 : i32
    %c0_i32_0 = arith.constant 0 : i32
    %c0_i32_1 = arith.constant 0 : i32
    return %c0_i32, %c0_i32_0 : i32, i32
  }
  func.func @transform_2(%arg0: i32, %arg1: i32) -> (i32, i32, i32) {
    %c0_i32 = arith.constant 0 : i32
    %c0_i32_0 = arith.constant 0 : i32
    return %arg1, %arg0, %c0_i32 : i32, i32, i32
  }
}

module attributes {stable_mosaic.version = 11 : i64} {
  func.func @_linear_kernel(%arg0: i32, %arg1: memref<32x32xbf16, #tpu.memory_space<vmem>>, %arg2: memref<32x64xbf16, #tpu.memory_space<vmem>>, %arg3: memref<32x64xbf16, #tpu.memory_space<vmem>>) attributes {dimension_semantics = [#tpu.dimension_semantics<parallel>], iteration_bounds = array<i64: 1>, scalar_prefetch = 0 : i64, scratch_operands = 0 : i64, tpu.core_type = #tpu.core_type<tc>, window_params = [{transform_indices = @transform_0, window_bounds = array<i64: 32, 32>}, {pipeline_mode = #tpu.pipeline_mode<synchronous>, transform_indices = @transform_1, window_bounds = array<i64: 32, 64>}, {transform_indices = @transform_2, window_bounds = array<i64: 32, 64>}]} {
    %c0 = arith.constant 0 : index
    %c0_0 = arith.constant 0 : index
    %0 = vector.load %arg1[%c0, %c0_0] : memref<32x32xbf16, #tpu.memory_space<vmem>>, vector<32x32xbf16>
    %c0_1 = arith.constant 0 : index
    %c0_2 = arith.constant 0 : index
    %1 = vector.load %arg2[%c0_1, %c0_2] : memref<32x64xbf16, #tpu.memory_space<vmem>>, vector<32x64xbf16>
    %cst = arith.constant dense<0.000000e+00> : vector<32x64xf32>
    %2 = tpu.matmul %0, %1, %cst {dimension_numbers = #tpu.dot_dimension_numbers<[1], [0], [0], [1], [0, 0, 1, 1], [], []>} : vector<32x32xbf16>, vector<32x64xbf16>, vector<32x64xf32> -> vector<32x64xf32>
    %3 = arith.truncf %2 : vector<32x64xf32> to vector<32x64xbf16>
    %c0_3 = arith.constant 0 : index
    %c0_4 = arith.constant 0 : index
    %4 = vector.load %arg3[%c0_3, %c0_4] : memref<32x64xbf16, #tpu.memory_space<vmem>>, vector<32x64xbf16>
    tpu.vector_store %arg3[%c0_3, %c0_4], %3 {strides = array<i32>} : memref<32x64xbf16, #tpu.memory_space<vmem>>, vector<32x64xbf16>,
    return
  }
  func.func @transform_0(%arg0: i32) -> (i32, i32) {
    %c0_i32 = arith.constant 0 : i32
    %c0_i32_0 = arith.constant 0 : i32
    return %arg0, %c0_i32 : i32, i32
  }
  func.func @transform_1(%arg0: i32) -> (i32, i32) {
    %c0_i32 = arith.constant 0 : i32
    %c0_i32_0 = arith.constant 0 : i32
    %c0_i32_1 = arith.constant 0 : i32
    return %c0_i32, %c0_i32_0 : i32, i32
  }
  func.func @transform_2(%arg0: i32) -> (i32, i32) {
    %c0_i32 = arith.constant 0 : i32
    %c0_i32_0 = arith.constant 0 : i32
    return %arg0, %c0_i32 : i32, i32
  }
}

module attributes {stable_mosaic.version = 11 : i64} {
  func.func @_linear_bias_kernel(%arg0: i32, %arg1: memref<64x32xf32, #tpu.memory_space<vmem>>, %arg2: memref<32x128xbf16, #tpu.memory_space<vmem>>, %arg3: memref<1x128xf32, #tpu.memory_space<vmem>>, %arg4: memref<64x128xf32, #tpu.memory_space<vmem>>) attributes {dimension_semantics = [#tpu.dimension_semantics<parallel>], iteration_bounds = array<i64: 1>, scalar_prefetch = 0 : i64, scratch_operands = 0 : i64, tpu.core_type = #tpu.core_type<tc>, window_params = [{transform_indices = @transform_0, window_bounds = array<i64: 64, 32>}, {pipeline_mode = #tpu.pipeline_mode<synchronous>, transform_indices = @transform_1, window_bounds = array<i64: 32, 128>}, {pipeline_mode = #tpu.pipeline_mode<synchronous>, transform_indices = @transform_2, window_bounds = array<i64: 1, 128>}, {transform_indices = @transform_3, window_bounds = array<i64: 64, 128>}]} {
    %c0 = arith.constant 0 : index
    %c0_0 = arith.constant 0 : index
    %0 = vector.load %arg1[%c0, %c0_0] : memref<64x32xf32, #tpu.memory_space<vmem>>, vector<64x32xf32>
    %1 = arith.truncf %0 : vector<64x32xf32> to vector<64x32xbf16>
    %c0_1 = arith.constant 0 : index
    %c0_2 = arith.constant 0 : index
    %2 = vector.load %arg2[%c0_1, %c0_2] : memref<32x128xbf16, #tpu.memory_space<vmem>>, vector<32x128xbf16>
    %cst = arith.constant dense<0.000000e+00> : vector<64x128xf32>
    %3 = tpu.matmul %1, %2, %cst {dimension_numbers = #tpu.dot_dimension_numbers<[1], [0], [0], [1], [0, 0, 1, 1], [], []>} : vector<64x32xbf16>, vector<32x128xbf16>, vector<64x128xf32> -> vector<64x128xf32>
    %c0_3 = arith.constant 0 : index
    %c0_4 = arith.constant 0 : index
    %4 = vector.load %arg3[%c0_3, %c0_4] : memref<1x128xf32, #tpu.memory_space<vmem>>, vector<1x128xf32>
    %5 = vector.broadcast %4 : vector<1x128xf32> to vector<64x128xf32>
    %6 = arith.addf %3, %5 : vector<64x128xf32>
    %c0_5 = arith.constant 0 : index
    %c0_6 = arith.constant 0 : index
    %7 = vector.load %arg4[%c0_5, %c0_6] : memref<64x128xf32, #tpu.memory_space<vmem>>, vector<64x128xf32>
    tpu.vector_store %arg4[%c0_5, %c0_6], %6 {strides = array<i32>} : memref<64x128xf32, #tpu.memory_space<vmem>>, vector<64x128xf32>,
    return
  }
  func.func @transform_0(%arg0: i32) -> (i32, i32) {
    %c0_i32 = arith.constant 0 : i32
    %c0_i32_0 = arith.constant 0 : i32
    return %arg0, %c0_i32 : i32, i32
  }
  func.func @transform_1(%arg0: i32) -> (i32, i32) {
    %c0_i32 = arith.constant 0 : i32
    %c0_i32_0 = arith.constant 0 : i32
    %c0_i32_1 = arith.constant 0 : i32
    return %c0_i32, %c0_i32_0 : i32, i32
  }
  func.func @transform_2(%arg0: i32) -> (i32, i32) {
    %c0_i32 = arith.constant 0 : i32
    %c0_i32_0 = arith.constant 0 : i32
    %c0_i32_1 = arith.constant 0 : i32
    return %c0_i32, %c0_i32_0 : i32, i32
  }
  func.func @transform_3(%arg0: i32) -> (i32, i32) {
    %c0_i32 = arith.constant 0 : i32
    %c0_i32_0 = arith.constant 0 : i32
    return %arg0, %c0_i32 : i32, i32
  }
}

module attributes {stable_mosaic.version = 11 : i64} {
  func.func @_lstm_recurrent_kernel(%arg0: i32, %arg1: i32, %arg2: memref<8x8x128xf32, #tpu.memory_space<vmem>>, %arg3: memref<32x128xbf16, #tpu.memory_space<vmem>>, %arg4: memref<8x8x32xbf16, #tpu.memory_space<vmem>>, %arg5: memref<8x32xf32, #tpu.memory_space<vmem>>, %arg6: memref<8x32xf32, #tpu.memory_space<vmem>>) attributes {dimension_semantics = [#tpu.dimension_semantics<parallel>, #tpu.dimension_semantics<arbitrary>], iteration_bounds = array<i64: 1, 1>, scalar_prefetch = 0 : i64, scratch_operands = 2 : i64, tpu.core_type = #tpu.core_type<tc>, window_params = [{transform_indices = @transform_0, window_bounds = array<i64: 8, 8, 128>}, {pipeline_mode = #tpu.pipeline_mode<synchronous>, transform_indices = @transform_1, window_bounds = array<i64: 32, 128>}, {transform_indices = @transform_2, window_bounds = array<i64: 8, 8, 32>}]} {
    %c0_i32 = arith.constant 0 : i32
    %0 = arith.cmpi eq, %arg1, %c0_i32 : i32
    %1 = arith.extui %0 : i1 to i32
    %c0_i32_0 = arith.constant 0 : i32
    %2 = arith.cmpi ne, %1, %c0_i32_0 : i32
    scf.if %2 {
      %cst_74 = arith.constant 0.000000e+00 : f32
      %296 = vector.broadcast %cst_74 : f32 to vector<8x32xf32>
      %c0_75 = arith.constant 0 : index
      %c0_76 = arith.constant 0 : index
      %297 = vector.load %arg5[%c0_75, %c0_76] : memref<8x32xf32, #tpu.memory_space<vmem>>, vector<8x32xf32>
      tpu.vector_store %arg5[%c0_75, %c0_76], %296 {strides = array<i32>} : memref<8x32xf32, #tpu.memory_space<vmem>>, vector<8x32xf32>,
      %cst_77 = arith.constant 0.000000e+00 : f32
      %298 = vector.broadcast %cst_77 : f32 to vector<8x32xf32>
      %c0_78 = arith.constant 0 : index
      %c0_79 = arith.constant 0 : index
      %299 = vector.load %arg6[%c0_78, %c0_79] : memref<8x32xf32, #tpu.memory_space<vmem>>, vector<8x32xf32>
      tpu.vector_store %arg6[%c0_78, %c0_79], %298 {strides = array<i32>} : memref<8x32xf32, #tpu.memory_space<vmem>>, vector<8x32xf32>,
    } else {
    }
    %c0 = arith.constant 0 : index
    %c0_1 = arith.constant 0 : index
    %3 = vector.load %arg3[%c0, %c0_1] : memref<32x128xbf16, #tpu.memory_space<vmem>>, vector<32x128xbf16>
    %c0_2 = arith.constant 0 : index
    %c0_3 = arith.constant 0 : index
    %4 = vector.load %arg5[%c0_2, %c0_3] : memref<8x32xf32, #tpu.memory_space<vmem>>, vector<8x32xf32>
    %c0_4 = arith.constant 0 : index
    %c0_5 = arith.constant 0 : index
    %5 = vector.load %arg6[%c0_4, %c0_5] : memref<8x32xf32, #tpu.memory_space<vmem>>, vector<8x32xf32>
    %c0_i32_6 = arith.constant 0 : i32
    %6 = arith.index_cast %c0_i32_6 : i32 to index
    %c0_7 = arith.constant 0 : index
    %c0_8 = arith.constant 0 : index
    %7 = vector.load %arg2[%6, %c0_7, %c0_8] : memref<8x8x128xf32, #tpu.memory_space<vmem>>, vector<1x8x128xf32>
    %8 = vector.shape_cast %7 : vector<1x8x128xf32> to vector<8x128xf32>
    %9 = arith.truncf %4 : vector<8x32xf32> to vector<8x32xbf16>
    %cst = arith.constant dense<0.000000e+00> : vector<8x128xf32>
    %10 = tpu.matmul %9, %3, %cst {dimension_numbers = #tpu.dot_dimension_numbers<[1], [0], [0], [1], [0, 0, 1, 1], [], []>} : vector<8x32xbf16>, vector<32x128xbf16>, vector<8x128xf32> -> vector<8x128xf32>
    %11 = arith.addf %8, %10 : vector<8x128xf32>
    %12 = vector.extract_strided_slice %11 {offsets = [0, 0], sizes = [8, 32], strides = [1, 1]} : vector<8x128xf32> to vector<8x32xf32>
    %13 = arith.negf %12 : vector<8x32xf32>
    %14 = math.exp %13 : vector<8x32xf32>
    %cst_9 = arith.constant 1.000000e+00 : f32
    %15 = vector.broadcast %cst_9 : f32 to vector<8x32xf32>
    %16 = arith.addf %15, %14 : vector<8x32xf32>
    %17 = arith.divf %15, %16 : vector<8x32xf32>
    %18 = vector.extract_strided_slice %11 {offsets = [0, 32], sizes = [8, 32], strides = [1, 1]} : vector<8x128xf32> to vector<8x32xf32>
    %19 = arith.negf %18 : vector<8x32xf32>
    %20 = math.exp %19 : vector<8x32xf32>
    %cst_10 = arith.constant 1.000000e+00 : f32
    %21 = vector.broadcast %cst_10 : f32 to vector<8x32xf32>
    %22 = arith.addf %21, %20 : vector<8x32xf32>
    %23 = arith.divf %21, %22 : vector<8x32xf32>
    %24 = vector.extract_strided_slice %11 {offsets = [0, 64], sizes = [8, 32], strides = [1, 1]} : vector<8x128xf32> to vector<8x32xf32>
    %25 = math.tanh %24 : vector<8x32xf32>
    %26 = vector.extract_strided_slice %11 {offsets = [0, 96], sizes = [8, 32], strides = [1, 1]} : vector<8x128xf32> to vector<8x32xf32>
    %27 = arith.negf %26 : vector<8x32xf32>
    %28 = math.exp %27 : vector<8x32xf32>
    %cst_11 = arith.constant 1.000000e+00 : f32
    %29 = vector.broadcast %cst_11 : f32 to vector<8x32xf32>
    %30 = arith.addf %29, %28 : vector<8x32xf32>
    %31 = arith.divf %29, %30 : vector<8x32xf32>
    %32 = arith.mulf %23, %5 : vector<8x32xf32>
    %33 = arith.mulf %17, %25 : vector<8x32xf32>
    %34 = arith.addf %32, %33 : vector<8x32xf32>
    %35 = math.tanh %34 : vector<8x32xf32>
    %36 = arith.mulf %31, %35 : vector<8x32xf32>
    %37 = arith.truncf %36 : vector<8x32xf32> to vector<8x32xbf16>
    %38 = arith.index_cast %c0_i32_6 : i32 to index
    %c0_12 = arith.constant 0 : index
    %c0_13 = arith.constant 0 : index
    %39 = vector.load %arg4[%38, %c0_12, %c0_13] : memref<8x8x32xbf16, #tpu.memory_space<vmem>>, vector<1x8x32xbf16>
    %40 = vector.shape_cast %39 : vector<1x8x32xbf16> to vector<8x32xbf16>
    %41 = vector.shape_cast %37 : vector<8x32xbf16> to vector<1x8x32xbf16>
    tpu.vector_store %arg4[%38, %c0_12, %c0_13], %41 {strides = array<i32>} : memref<8x8x32xbf16, #tpu.memory_space<vmem>>, vector<1x8x32xbf16>,
    %c1_i32 = arith.constant 1 : i32
    %42 = arith.index_cast %c1_i32 : i32 to index
    %c0_14 = arith.constant 0 : index
    %c0_15 = arith.constant 0 : index
    %43 = vector.load %arg2[%42, %c0_14, %c0_15] : memref<8x8x128xf32, #tpu.memory_space<vmem>>, vector<1x8x128xf32>
    %44 = vector.shape_cast %43 : vector<1x8x128xf32> to vector<8x128xf32>
    %45 = arith.truncf %36 : vector<8x32xf32> to vector<8x32xbf16>
    %cst_16 = arith.constant dense<0.000000e+00> : vector<8x128xf32>
    %46 = tpu.matmul %45, %3, %cst_16 {dimension_numbers = #tpu.dot_dimension_numbers<[1], [0], [0], [1], [0, 0, 1, 1], [], []>} : vector<8x32xbf16>, vector<32x128xbf16>, vector<8x128xf32> -> vector<8x128xf32>
    %47 = arith.addf %44, %46 : vector<8x128xf32>
    %48 = vector.extract_strided_slice %47 {offsets = [0, 0], sizes = [8, 32], strides = [1, 1]} : vector<8x128xf32> to vector<8x32xf32>
    %49 = arith.negf %48 : vector<8x32xf32>
    %50 = math.exp %49 : vector<8x32xf32>
    %cst_17 = arith.constant 1.000000e+00 : f32
    %51 = vector.broadcast %cst_17 : f32 to vector<8x32xf32>
    %52 = arith.addf %51, %50 : vector<8x32xf32>
    %53 = arith.divf %51, %52 : vector<8x32xf32>
    %54 = vector.extract_strided_slice %47 {offsets = [0, 32], sizes = [8, 32], strides = [1, 1]} : vector<8x128xf32> to vector<8x32xf32>
    %55 = arith.negf %54 : vector<8x32xf32>
    %56 = math.exp %55 : vector<8x32xf32>
    %cst_18 = arith.constant 1.000000e+00 : f32
    %57 = vector.broadcast %cst_18 : f32 to vector<8x32xf32>
    %58 = arith.addf %57, %56 : vector<8x32xf32>
    %59 = arith.divf %57, %58 : vector<8x32xf32>
    %60 = vector.extract_strided_slice %47 {offsets = [0, 64], sizes = [8, 32], strides = [1, 1]} : vector<8x128xf32> to vector<8x32xf32>
    %61 = math.tanh %60 : vector<8x32xf32>
    %62 = vector.extract_strided_slice %47 {offsets = [0, 96], sizes = [8, 32], strides = [1, 1]} : vector<8x128xf32> to vector<8x32xf32>
    %63 = arith.negf %62 : vector<8x32xf32>
    %64 = math.exp %63 : vector<8x32xf32>
    %cst_19 = arith.constant 1.000000e+00 : f32
    %65 = vector.broadcast %cst_19 : f32 to vector<8x32xf32>
    %66 = arith.addf %65, %64 : vector<8x32xf32>
    %67 = arith.divf %65, %66 : vector<8x32xf32>
    %68 = arith.mulf %59, %34 : vector<8x32xf32>
    %69 = arith.mulf %53, %61 : vector<8x32xf32>
    %70 = arith.addf %68, %69 : vector<8x32xf32>
    %71 = math.tanh %70 : vector<8x32xf32>
    %72 = arith.mulf %67, %71 : vector<8x32xf32>
    %73 = arith.truncf %72 : vector<8x32xf32> to vector<8x32xbf16>
    %74 = arith.index_cast %c1_i32 : i32 to index
    %c0_20 = arith.constant 0 : index
    %c0_21 = arith.constant 0 : index
    %75 = vector.load %arg4[%74, %c0_20, %c0_21] : memref<8x8x32xbf16, #tpu.memory_space<vmem>>, vector<1x8x32xbf16>
    %76 = vector.shape_cast %75 : vector<1x8x32xbf16> to vector<8x32xbf16>
    %77 = vector.shape_cast %73 : vector<8x32xbf16> to vector<1x8x32xbf16>
    tpu.vector_store %arg4[%74, %c0_20, %c0_21], %77 {strides = array<i32>} : memref<8x8x32xbf16, #tpu.memory_space<vmem>>, vector<1x8x32xbf16>,
    %c2_i32 = arith.constant 2 : i32
    %78 = arith.index_cast %c2_i32 : i32 to index
    %c0_22 = arith.constant 0 : index
    %c0_23 = arith.constant 0 : index
    %79 = vector.load %arg2[%78, %c0_22, %c0_23] : memref<8x8x128xf32, #tpu.memory_space<vmem>>, vector<1x8x128xf32>
    %80 = vector.shape_cast %79 : vector<1x8x128xf32> to vector<8x128xf32>
    %81 = arith.truncf %72 : vector<8x32xf32> to vector<8x32xbf16>
    %cst_24 = arith.constant dense<0.000000e+00> : vector<8x128xf32>
    %82 = tpu.matmul %81, %3, %cst_24 {dimension_numbers = #tpu.dot_dimension_numbers<[1], [0], [0], [1], [0, 0, 1, 1], [], []>} : vector<8x32xbf16>, vector<32x128xbf16>, vector<8x128xf32> -> vector<8x128xf32>
    %83 = arith.addf %80, %82 : vector<8x128xf32>
    %84 = vector.extract_strided_slice %83 {offsets = [0, 0], sizes = [8, 32], strides = [1, 1]} : vector<8x128xf32> to vector<8x32xf32>
    %85 = arith.negf %84 : vector<8x32xf32>
    %86 = math.exp %85 : vector<8x32xf32>
    %cst_25 = arith.constant 1.000000e+00 : f32
    %87 = vector.broadcast %cst_25 : f32 to vector<8x32xf32>
    %88 = arith.addf %87, %86 : vector<8x32xf32>
    %89 = arith.divf %87, %88 : vector<8x32xf32>
    %90 = vector.extract_strided_slice %83 {offsets = [0, 32], sizes = [8, 32], strides = [1, 1]} : vector<8x128xf32> to vector<8x32xf32>
    %91 = arith.negf %90 : vector<8x32xf32>
    %92 = math.exp %91 : vector<8x32xf32>
    %cst_26 = arith.constant 1.000000e+00 : f32
    %93 = vector.broadcast %cst_26 : f32 to vector<8x32xf32>
    %94 = arith.addf %93, %92 : vector<8x32xf32>
    %95 = arith.divf %93, %94 : vector<8x32xf32>
    %96 = vector.extract_strided_slice %83 {offsets = [0, 64], sizes = [8, 32], strides = [1, 1]} : vector<8x128xf32> to vector<8x32xf32>
    %97 = math.tanh %96 : vector<8x32xf32>
    %98 = vector.extract_strided_slice %83 {offsets = [0, 96], sizes = [8, 32], strides = [1, 1]} : vector<8x128xf32> to vector<8x32xf32>
    %99 = arith.negf %98 : vector<8x32xf32>
    %100 = math.exp %99 : vector<8x32xf32>
    %cst_27 = arith.constant 1.000000e+00 : f32
    %101 = vector.broadcast %cst_27 : f32 to vector<8x32xf32>
    %102 = arith.addf %101, %100 : vector<8x32xf32>
    %103 = arith.divf %101, %102 : vector<8x32xf32>
    %104 = arith.mulf %95, %70 : vector<8x32xf32>
    %105 = arith.mulf %89, %97 : vector<8x32xf32>
    %106 = arith.addf %104, %105 : vector<8x32xf32>
    %107 = math.tanh %106 : vector<8x32xf32>
    %108 = arith.mulf %103, %107 : vector<8x32xf32>
    %109 = arith.truncf %108 : vector<8x32xf32> to vector<8x32xbf16>
    %110 = arith.index_cast %c2_i32 : i32 to index
    %c0_28 = arith.constant 0 : index
    %c0_29 = arith.constant 0 : index
    %111 = vector.load %arg4[%110, %c0_28, %c0_29] : memref<8x8x32xbf16, #tpu.memory_space<vmem>>, vector<1x8x32xbf16>
    %112 = vector.shape_cast %111 : vector<1x8x32xbf16> to vector<8x32xbf16>
    %113 = vector.shape_cast %109 : vector<8x32xbf16> to vector<1x8x32xbf16>
    tpu.vector_store %arg4[%110, %c0_28, %c0_29], %113 {strides = array<i32>} : memref<8x8x32xbf16, #tpu.memory_space<vmem>>, vector<1x8x32xbf16>,
    %c3_i32 = arith.constant 3 : i32
    %114 = arith.index_cast %c3_i32 : i32 to index
    %c0_30 = arith.constant 0 : index
    %c0_31 = arith.constant 0 : index
    %115 = vector.load %arg2[%114, %c0_30, %c0_31] : memref<8x8x128xf32, #tpu.memory_space<vmem>>, vector<1x8x128xf32>
    %116 = vector.shape_cast %115 : vector<1x8x128xf32> to vector<8x128xf32>
    %117 = arith.truncf %108 : vector<8x32xf32> to vector<8x32xbf16>
    %cst_32 = arith.constant dense<0.000000e+00> : vector<8x128xf32>
    %118 = tpu.matmul %117, %3, %cst_32 {dimension_numbers = #tpu.dot_dimension_numbers<[1], [0], [0], [1], [0, 0, 1, 1], [], []>} : vector<8x32xbf16>, vector<32x128xbf16>, vector<8x128xf32> -> vector<8x128xf32>
    %119 = arith.addf %116, %118 : vector<8x128xf32>
    %120 = vector.extract_strided_slice %119 {offsets = [0, 0], sizes = [8, 32], strides = [1, 1]} : vector<8x128xf32> to vector<8x32xf32>
    %121 = arith.negf %120 : vector<8x32xf32>
    %122 = math.exp %121 : vector<8x32xf32>
    %cst_33 = arith.constant 1.000000e+00 : f32
    %123 = vector.broadcast %cst_33 : f32 to vector<8x32xf32>
    %124 = arith.addf %123, %122 : vector<8x32xf32>
    %125 = arith.divf %123, %124 : vector<8x32xf32>
    %126 = vector.extract_strided_slice %119 {offsets = [0, 32], sizes = [8, 32], strides = [1, 1]} : vector<8x128xf32> to vector<8x32xf32>
    %127 = arith.negf %126 : vector<8x32xf32>
    %128 = math.exp %127 : vector<8x32xf32>
    %cst_34 = arith.constant 1.000000e+00 : f32
    %129 = vector.broadcast %cst_34 : f32 to vector<8x32xf32>
    %130 = arith.addf %129, %128 : vector<8x32xf32>
    %131 = arith.divf %129, %130 : vector<8x32xf32>
    %132 = vector.extract_strided_slice %119 {offsets = [0, 64], sizes = [8, 32], strides = [1, 1]} : vector<8x128xf32> to vector<8x32xf32>
    %133 = math.tanh %132 : vector<8x32xf32>
    %134 = vector.extract_strided_slice %119 {offsets = [0, 96], sizes = [8, 32], strides = [1, 1]} : vector<8x128xf32> to vector<8x32xf32>
    %135 = arith.negf %134 : vector<8x32xf32>
    %136 = math.exp %135 : vector<8x32xf32>
    %cst_35 = arith.constant 1.000000e+00 : f32
    %137 = vector.broadcast %cst_35 : f32 to vector<8x32xf32>
    %138 = arith.addf %137, %136 : vector<8x32xf32>
    %139 = arith.divf %137, %138 : vector<8x32xf32>
    %140 = arith.mulf %131, %106 : vector<8x32xf32>
    %141 = arith.mulf %125, %133 : vector<8x32xf32>
    %142 = arith.addf %140, %141 : vector<8x32xf32>
    %143 = math.tanh %142 : vector<8x32xf32>
    %144 = arith.mulf %139, %143 : vector<8x32xf32>
    %145 = arith.truncf %144 : vector<8x32xf32> to vector<8x32xbf16>
    %146 = arith.index_cast %c3_i32 : i32 to index
    %c0_36 = arith.constant 0 : index
    %c0_37 = arith.constant 0 : index
    %147 = vector.load %arg4[%146, %c0_36, %c0_37] : memref<8x8x32xbf16, #tpu.memory_space<vmem>>, vector<1x8x32xbf16>
    %148 = vector.shape_cast %147 : vector<1x8x32xbf16> to vector<8x32xbf16>
    %149 = vector.shape_cast %145 : vector<8x32xbf16> to vector<1x8x32xbf16>
    tpu.vector_store %arg4[%146, %c0_36, %c0_37], %149 {strides = array<i32>} : memref<8x8x32xbf16, #tpu.memory_space<vmem>>, vector<1x8x32xbf16>,
    %c4_i32 = arith.constant 4 : i32
    %150 = arith.index_cast %c4_i32 : i32 to index
    %c0_38 = arith.constant 0 : index
    %c0_39 = arith.constant 0 : index
    %151 = vector.load %arg2[%150, %c0_38, %c0_39] : memref<8x8x128xf32, #tpu.memory_space<vmem>>, vector<1x8x128xf32>
    %152 = vector.shape_cast %151 : vector<1x8x128xf32> to vector<8x128xf32>
    %153 = arith.truncf %144 : vector<8x32xf32> to vector<8x32xbf16>
    %cst_40 = arith.constant dense<0.000000e+00> : vector<8x128xf32>
    %154 = tpu.matmul %153, %3, %cst_40 {dimension_numbers = #tpu.dot_dimension_numbers<[1], [0], [0], [1], [0, 0, 1, 1], [], []>} : vector<8x32xbf16>, vector<32x128xbf16>, vector<8x128xf32> -> vector<8x128xf32>
    %155 = arith.addf %152, %154 : vector<8x128xf32>
    %156 = vector.extract_strided_slice %155 {offsets = [0, 0], sizes = [8, 32], strides = [1, 1]} : vector<8x128xf32> to vector<8x32xf32>
    %157 = arith.negf %156 : vector<8x32xf32>
    %158 = math.exp %157 : vector<8x32xf32>
    %cst_41 = arith.constant 1.000000e+00 : f32
    %159 = vector.broadcast %cst_41 : f32 to vector<8x32xf32>
    %160 = arith.addf %159, %158 : vector<8x32xf32>
    %161 = arith.divf %159, %160 : vector<8x32xf32>
    %162 = vector.extract_strided_slice %155 {offsets = [0, 32], sizes = [8, 32], strides = [1, 1]} : vector<8x128xf32> to vector<8x32xf32>
    %163 = arith.negf %162 : vector<8x32xf32>
    %164 = math.exp %163 : vector<8x32xf32>
    %cst_42 = arith.constant 1.000000e+00 : f32
    %165 = vector.broadcast %cst_42 : f32 to vector<8x32xf32>
    %166 = arith.addf %165, %164 : vector<8x32xf32>
    %167 = arith.divf %165, %166 : vector<8x32xf32>
    %168 = vector.extract_strided_slice %155 {offsets = [0, 64], sizes = [8, 32], strides = [1, 1]} : vector<8x128xf32> to vector<8x32xf32>
    %169 = math.tanh %168 : vector<8x32xf32>
    %170 = vector.extract_strided_slice %155 {offsets = [0, 96], sizes = [8, 32], strides = [1, 1]} : vector<8x128xf32> to vector<8x32xf32>
    %171 = arith.negf %170 : vector<8x32xf32>
    %172 = math.exp %171 : vector<8x32xf32>
    %cst_43 = arith.constant 1.000000e+00 : f32
    %173 = vector.broadcast %cst_43 : f32 to vector<8x32xf32>
    %174 = arith.addf %173, %172 : vector<8x32xf32>
    %175 = arith.divf %173, %174 : vector<8x32xf32>
    %176 = arith.mulf %167, %142 : vector<8x32xf32>
    %177 = arith.mulf %161, %169 : vector<8x32xf32>
    %178 = arith.addf %176, %177 : vector<8x32xf32>
    %179 = math.tanh %178 : vector<8x32xf32>
    %180 = arith.mulf %175, %179 : vector<8x32xf32>
    %181 = arith.truncf %180 : vector<8x32xf32> to vector<8x32xbf16>
    %182 = arith.index_cast %c4_i32 : i32 to index
    %c0_44 = arith.constant 0 : index
    %c0_45 = arith.constant 0 : index
    %183 = vector.load %arg4[%182, %c0_44, %c0_45] : memref<8x8x32xbf16, #tpu.memory_space<vmem>>, vector<1x8x32xbf16>
    %184 = vector.shape_cast %183 : vector<1x8x32xbf16> to vector<8x32xbf16>
    %185 = vector.shape_cast %181 : vector<8x32xbf16> to vector<1x8x32xbf16>
    tpu.vector_store %arg4[%182, %c0_44, %c0_45], %185 {strides = array<i32>} : memref<8x8x32xbf16, #tpu.memory_space<vmem>>, vector<1x8x32xbf16>,
    %c5_i32 = arith.constant 5 : i32
    %186 = arith.index_cast %c5_i32 : i32 to index
    %c0_46 = arith.constant 0 : index
    %c0_47 = arith.constant 0 : index
    %187 = vector.load %arg2[%186, %c0_46, %c0_47] : memref<8x8x128xf32, #tpu.memory_space<vmem>>, vector<1x8x128xf32>
    %188 = vector.shape_cast %187 : vector<1x8x128xf32> to vector<8x128xf32>
    %189 = arith.truncf %180 : vector<8x32xf32> to vector<8x32xbf16>
    %cst_48 = arith.constant dense<0.000000e+00> : vector<8x128xf32>
    %190 = tpu.matmul %189, %3, %cst_48 {dimension_numbers = #tpu.dot_dimension_numbers<[1], [0], [0], [1], [0, 0, 1, 1], [], []>} : vector<8x32xbf16>, vector<32x128xbf16>, vector<8x128xf32> -> vector<8x128xf32>
    %191 = arith.addf %188, %190 : vector<8x128xf32>
    %192 = vector.extract_strided_slice %191 {offsets = [0, 0], sizes = [8, 32], strides = [1, 1]} : vector<8x128xf32> to vector<8x32xf32>
    %193 = arith.negf %192 : vector<8x32xf32>
    %194 = math.exp %193 : vector<8x32xf32>
    %cst_49 = arith.constant 1.000000e+00 : f32
    %195 = vector.broadcast %cst_49 : f32 to vector<8x32xf32>
    %196 = arith.addf %195, %194 : vector<8x32xf32>
    %197 = arith.divf %195, %196 : vector<8x32xf32>
    %198 = vector.extract_strided_slice %191 {offsets = [0, 32], sizes = [8, 32], strides = [1, 1]} : vector<8x128xf32> to vector<8x32xf32>
    %199 = arith.negf %198 : vector<8x32xf32>
    %200 = math.exp %199 : vector<8x32xf32>
    %cst_50 = arith.constant 1.000000e+00 : f32
    %201 = vector.broadcast %cst_50 : f32 to vector<8x32xf32>
    %202 = arith.addf %201, %200 : vector<8x32xf32>
    %203 = arith.divf %201, %202 : vector<8x32xf32>
    %204 = vector.extract_strided_slice %191 {offsets = [0, 64], sizes = [8, 32], strides = [1, 1]} : vector<8x128xf32> to vector<8x32xf32>
    %205 = math.tanh %204 : vector<8x32xf32>
    %206 = vector.extract_strided_slice %191 {offsets = [0, 96], sizes = [8, 32], strides = [1, 1]} : vector<8x128xf32> to vector<8x32xf32>
    %207 = arith.negf %206 : vector<8x32xf32>
    %208 = math.exp %207 : vector<8x32xf32>
    %cst_51 = arith.constant 1.000000e+00 : f32
    %209 = vector.broadcast %cst_51 : f32 to vector<8x32xf32>
    %210 = arith.addf %209, %208 : vector<8x32xf32>
    %211 = arith.divf %209, %210 : vector<8x32xf32>
    %212 = arith.mulf %203, %178 : vector<8x32xf32>
    %213 = arith.mulf %197, %205 : vector<8x32xf32>
    %214 = arith.addf %212, %213 : vector<8x32xf32>
    %215 = math.tanh %214 : vector<8x32xf32>
    %216 = arith.mulf %211, %215 : vector<8x32xf32>
    %217 = arith.truncf %216 : vector<8x32xf32> to vector<8x32xbf16>
    %218 = arith.index_cast %c5_i32 : i32 to index
    %c0_52 = arith.constant 0 : index
    %c0_53 = arith.constant 0 : index
    %219 = vector.load %arg4[%218, %c0_52, %c0_53] : memref<8x8x32xbf16, #tpu.memory_space<vmem>>, vector<1x8x32xbf16>
    %220 = vector.shape_cast %219 : vector<1x8x32xbf16> to vector<8x32xbf16>
    %221 = vector.shape_cast %217 : vector<8x32xbf16> to vector<1x8x32xbf16>
    tpu.vector_store %arg4[%218, %c0_52, %c0_53], %221 {strides = array<i32>} : memref<8x8x32xbf16, #tpu.memory_space<vmem>>, vector<1x8x32xbf16>,
    %c6_i32 = arith.constant 6 : i32
    %222 = arith.index_cast %c6_i32 : i32 to index
    %c0_54 = arith.constant 0 : index
    %c0_55 = arith.constant 0 : index
    %223 = vector.load %arg2[%222, %c0_54, %c0_55] : memref<8x8x128xf32, #tpu.memory_space<vmem>>, vector<1x8x128xf32>
    %224 = vector.shape_cast %223 : vector<1x8x128xf32> to vector<8x128xf32>
    %225 = arith.truncf %216 : vector<8x32xf32> to vector<8x32xbf16>
    %cst_56 = arith.constant dense<0.000000e+00> : vector<8x128xf32>
    %226 = tpu.matmul %225, %3, %cst_56 {dimension_numbers = #tpu.dot_dimension_numbers<[1], [0], [0], [1], [0, 0, 1, 1], [], []>} : vector<8x32xbf16>, vector<32x128xbf16>, vector<8x128xf32> -> vector<8x128xf32>
    %227 = arith.addf %224, %226 : vector<8x128xf32>
    %228 = vector.extract_strided_slice %227 {offsets = [0, 0], sizes = [8, 32], strides = [1, 1]} : vector<8x128xf32> to vector<8x32xf32>
    %229 = arith.negf %228 : vector<8x32xf32>
    %230 = math.exp %229 : vector<8x32xf32>
    %cst_57 = arith.constant 1.000000e+00 : f32
    %231 = vector.broadcast %cst_57 : f32 to vector<8x32xf32>
    %232 = arith.addf %231, %230 : vector<8x32xf32>
    %233 = arith.divf %231, %232 : vector<8x32xf32>
    %234 = vector.extract_strided_slice %227 {offsets = [0, 32], sizes = [8, 32], strides = [1, 1]} : vector<8x128xf32> to vector<8x32xf32>
    %235 = arith.negf %234 : vector<8x32xf32>
    %236 = math.exp %235 : vector<8x32xf32>
    %cst_58 = arith.constant 1.000000e+00 : f32
    %237 = vector.broadcast %cst_58 : f32 to vector<8x32xf32>
    %238 = arith.addf %237, %236 : vector<8x32xf32>
    %239 = arith.divf %237, %238 : vector<8x32xf32>
    %240 = vector.extract_strided_slice %227 {offsets = [0, 64], sizes = [8, 32], strides = [1, 1]} : vector<8x128xf32> to vector<8x32xf32>
    %241 = math.tanh %240 : vector<8x32xf32>
    %242 = vector.extract_strided_slice %227 {offsets = [0, 96], sizes = [8, 32], strides = [1, 1]} : vector<8x128xf32> to vector<8x32xf32>
    %243 = arith.negf %242 : vector<8x32xf32>
    %244 = math.exp %243 : vector<8x32xf32>
    %cst_59 = arith.constant 1.000000e+00 : f32
    %245 = vector.broadcast %cst_59 : f32 to vector<8x32xf32>
    %246 = arith.addf %245, %244 : vector<8x32xf32>
    %247 = arith.divf %245, %246 : vector<8x32xf32>
    %248 = arith.mulf %239, %214 : vector<8x32xf32>
    %249 = arith.mulf %233, %241 : vector<8x32xf32>
    %250 = arith.addf %248, %249 : vector<8x32xf32>
    %251 = math.tanh %250 : vector<8x32xf32>
    %252 = arith.mulf %247, %251 : vector<8x32xf32>
    %253 = arith.truncf %252 : vector<8x32xf32> to vector<8x32xbf16>
    %254 = arith.index_cast %c6_i32 : i32 to index
    %c0_60 = arith.constant 0 : index
    %c0_61 = arith.constant 0 : index
    %255 = vector.load %arg4[%254, %c0_60, %c0_61] : memref<8x8x32xbf16, #tpu.memory_space<vmem>>, vector<1x8x32xbf16>
    %256 = vector.shape_cast %255 : vector<1x8x32xbf16> to vector<8x32xbf16>
    %257 = vector.shape_cast %253 : vector<8x32xbf16> to vector<1x8x32xbf16>
    tpu.vector_store %arg4[%254, %c0_60, %c0_61], %257 {strides = array<i32>} : memref<8x8x32xbf16, #tpu.memory_space<vmem>>, vector<1x8x32xbf16>,
    %c7_i32 = arith.constant 7 : i32
    %258 = arith.index_cast %c7_i32 : i32 to index
    %c0_62 = arith.constant 0 : index
    %c0_63 = arith.constant 0 : index
    %259 = vector.load %arg2[%258, %c0_62, %c0_63] : memref<8x8x128xf32, #tpu.memory_space<vmem>>, vector<1x8x128xf32>
    %260 = vector.shape_cast %259 : vector<1x8x128xf32> to vector<8x128xf32>
    %261 = arith.truncf %252 : vector<8x32xf32> to vector<8x32xbf16>
    %cst_64 = arith.constant dense<0.000000e+00> : vector<8x128xf32>
    %262 = tpu.matmul %261, %3, %cst_64 {dimension_numbers = #tpu.dot_dimension_numbers<[1], [0], [0], [1], [0, 0, 1, 1], [], []>} : vector<8x32xbf16>, vector<32x128xbf16>, vector<8x128xf32> -> vector<8x128xf32>
    %263 = arith.addf %260, %262 : vector<8x128xf32>
    %264 = vector.extract_strided_slice %263 {offsets = [0, 0], sizes = [8, 32], strides = [1, 1]} : vector<8x128xf32> to vector<8x32xf32>
    %265 = arith.negf %264 : vector<8x32xf32>
    %266 = math.exp %265 : vector<8x32xf32>
    %cst_65 = arith.constant 1.000000e+00 : f32
    %267 = vector.broadcast %cst_65 : f32 to vector<8x32xf32>
    %268 = arith.addf %267, %266 : vector<8x32xf32>
    %269 = arith.divf %267, %268 : vector<8x32xf32>
    %270 = vector.extract_strided_slice %263 {offsets = [0, 32], sizes = [8, 32], strides = [1, 1]} : vector<8x128xf32> to vector<8x32xf32>
    %271 = arith.negf %270 : vector<8x32xf32>
    %272 = math.exp %271 : vector<8x32xf32>
    %cst_66 = arith.constant 1.000000e+00 : f32
    %273 = vector.broadcast %cst_66 : f32 to vector<8x32xf32>
    %274 = arith.addf %273, %272 : vector<8x32xf32>
    %275 = arith.divf %273, %274 : vector<8x32xf32>
    %276 = vector.extract_strided_slice %263 {offsets = [0, 64], sizes = [8, 32], strides = [1, 1]} : vector<8x128xf32> to vector<8x32xf32>
    %277 = math.tanh %276 : vector<8x32xf32>
    %278 = vector.extract_strided_slice %263 {offsets = [0, 96], sizes = [8, 32], strides = [1, 1]} : vector<8x128xf32> to vector<8x32xf32>
    %279 = arith.negf %278 : vector<8x32xf32>
    %280 = math.exp %279 : vector<8x32xf32>
    %cst_67 = arith.constant 1.000000e+00 : f32
    %281 = vector.broadcast %cst_67 : f32 to vector<8x32xf32>
    %282 = arith.addf %281, %280 : vector<8x32xf32>
    %283 = arith.divf %281, %282 : vector<8x32xf32>
    %284 = arith.mulf %275, %250 : vector<8x32xf32>
    %285 = arith.mulf %269, %277 : vector<8x32xf32>
    %286 = arith.addf %284, %285 : vector<8x32xf32>
    %287 = math.tanh %286 : vector<8x32xf32>
    %288 = arith.mulf %283, %287 : vector<8x32xf32>
    %289 = arith.truncf %288 : vector<8x32xf32> to vector<8x32xbf16>
    %290 = arith.index_cast %c7_i32 : i32 to index
    %c0_68 = arith.constant 0 : index
    %c0_69 = arith.constant 0 : index
    %291 = vector.load %arg4[%290, %c0_68, %c0_69] : memref<8x8x32xbf16, #tpu.memory_space<vmem>>, vector<1x8x32xbf16>
    %292 = vector.shape_cast %291 : vector<1x8x32xbf16> to vector<8x32xbf16>
    %293 = vector.shape_cast %289 : vector<8x32xbf16> to vector<1x8x32xbf16>
    tpu.vector_store %arg4[%290, %c0_68, %c0_69], %293 {strides = array<i32>} : memref<8x8x32xbf16, #tpu.memory_space<vmem>>, vector<1x8x32xbf16>,
    %c8_i32 = arith.constant 8 : i32
    %c0_70 = arith.constant 0 : index
    %c0_71 = arith.constant 0 : index
    %294 = vector.load %arg5[%c0_70, %c0_71] : memref<8x32xf32, #tpu.memory_space<vmem>>, vector<8x32xf32>
    tpu.vector_store %arg5[%c0_70, %c0_71], %288 {strides = array<i32>} : memref<8x32xf32, #tpu.memory_space<vmem>>, vector<8x32xf32>,
    %c0_72 = arith.constant 0 : index
    %c0_73 = arith.constant 0 : index
    %295 = vector.load %arg6[%c0_72, %c0_73] : memref<8x32xf32, #tpu.memory_space<vmem>>, vector<8x32xf32>
    tpu.vector_store %arg6[%c0_72, %c0_73], %286 {strides = array<i32>} : memref<8x32xf32, #tpu.memory_space<vmem>>, vector<8x32xf32>,
    return
  }
  func.func @transform_0(%arg0: i32, %arg1: i32) -> (i32, i32, i32) {
    %c0_i32 = arith.constant 0 : i32
    %c0_i32_0 = arith.constant 0 : i32
    return %arg1, %arg0, %c0_i32 : i32, i32, i32
  }
  func.func @transform_1(%arg0: i32, %arg1: i32) -> (i32, i32) {
    %c0_i32 = arith.constant 0 : i32
    %c0_i32_0 = arith.constant 0 : i32
    %c0_i32_1 = arith.constant 0 : i32
    return %c0_i32, %c0_i32_0 : i32, i32
  }
  func.func @transform_2(%arg0: i32, %arg1: i32) -> (i32, i32, i32) {
    %c0_i32 = arith.constant 0 : i32
    %c0_i32_0 = arith.constant 0 : i32
    return %arg1, %arg0, %c0_i32 : i32, i32, i32
  }
}

module attributes {stable_mosaic.version = 11 : i64} {
  func.func @_attention_kernel(%arg0: i32, %arg1: memref<8x8x32xbf16, #tpu.memory_space<vmem>>, %arg2: memref<2x8x4x32xbf16, #tpu.memory_space<vmem>>, %arg3: memref<8x4xf32, #tpu.memory_space<vmem>>, %arg4: memref<32x32xbf16, #tpu.memory_space<vmem>>, %arg5: memref<8x8x32xf32, #tpu.memory_space<vmem>>, %arg6: memref<8x8x4xf32, #tpu.memory_space<vmem>>) attributes {dimension_semantics = [#tpu.dimension_semantics<parallel>], iteration_bounds = array<i64: 1>, scalar_prefetch = 0 : i64, scratch_operands = 0 : i64, tpu.core_type = #tpu.core_type<tc>, window_params = [{transform_indices = @transform_0, window_bounds = array<i64: 8, 8, 32>}, {pipeline_mode = #tpu.pipeline_mode<synchronous>, transform_indices = @transform_1, window_bounds = array<i64: 2, 8, 4, 32>}, {pipeline_mode = #tpu.pipeline_mode<synchronous>, transform_indices = @transform_2, window_bounds = array<i64: 8, 4>}, {pipeline_mode = #tpu.pipeline_mode<synchronous>, transform_indices = @transform_3, window_bounds = array<i64: 32, 32>}, {transform_indices = @transform_4, window_bounds = array<i64: 8, 8, 32>}, {transform_indices = @transform_5, window_bounds = array<i64: 8, 8, 4>}]} {
    %c0 = arith.constant 0 : index
    %c0_0 = arith.constant 0 : index
    %c0_1 = arith.constant 0 : index
    %0 = vector.load %arg1[%c0, %c0_0, %c0_1] : memref<8x8x32xbf16, #tpu.memory_space<vmem>>, vector<8x8x32xbf16>
    %c0_2 = arith.constant 0 : index
    %c0_3 = arith.constant 0 : index
    %c0_4 = arith.constant 0 : index
    %c0_5 = arith.constant 0 : index
    %1 = vector.load %arg2[%c0_2, %c0_3, %c0_4, %c0_5] : memref<2x8x4x32xbf16, #tpu.memory_space<vmem>>, vector<1x8x4x32xbf16>
    %2 = vector.shape_cast %1 : vector<1x8x4x32xbf16> to vector<8x4x32xbf16>
    %c1 = arith.constant 1 : index
    %c0_6 = arith.constant 0 : index
    %c0_7 = arith.constant 0 : index
    %c0_8 = arith.constant 0 : index
    %3 = vector.load %arg2[%c1, %c0_6, %c0_7, %c0_8] : memref<2x8x4x32xbf16, #tpu.memory_space<vmem>>, vector<1x8x4x32xbf16>
    %4 = vector.shape_cast %3 : vector<1x8x4x32xbf16> to vector<8x4x32xbf16>
    "tpu.trace_start"() <{level = 10 : i32, message = "bqd,bsd->bqs"}> : () -> ()
    %cst = arith.constant dense<0.000000e+00> : vector<8x8x4xf32>
    %5 = tpu.matmul %0, %2, %cst {dimension_numbers = #tpu.dot_dimension_numbers<[2], [2], [1], [1], [0, 0, 0, 1, 1, 1], [0], [0]>} : vector<8x8x32xbf16>, vector<8x4x32xbf16>, vector<8x8x4xf32> -> vector<8x8x4xf32>
    "tpu.trace_stop"() : () -> ()
    %c0_9 = arith.constant 0 : index
    %c0_10 = arith.constant 0 : index
    %6 = vector.load %arg3[%c0_9, %c0_10] : memref<8x4xf32, #tpu.memory_space<vmem>>, vector<8x4xf32>
    %7 = vector.shape_cast %6 : vector<8x4xf32> to vector<8x1x4xf32>
    %8 = vector.broadcast %7 : vector<8x1x4xf32> to vector<8x8x4xf32>
    %9 = arith.addf %5, %8 : vector<8x8x4xf32>
    %cst_11 = arith.constant dense<0xFF800000> : vector<8x8xf32>
    %10 = vector.multi_reduction <maximumf>, %9, %cst_11 [2] : vector<8x8x4xf32> to vector<8x8xf32>
    %11 = vector.shape_cast %10 : vector<8x8xf32> to vector<8x8x1xf32>
    %12 = vector.broadcast %11 : vector<8x8x1xf32> to vector<8x8x4xf32>
    %13 = arith.subf %9, %12 : vector<8x8x4xf32>
    %14 = math.exp %13 : vector<8x8x4xf32>
    %cst_12 = arith.constant dense<0.000000e+00> : vector<8x8xf32>
    %15 = vector.multi_reduction <add>, %14, %cst_12 [2] : vector<8x8x4xf32> to vector<8x8xf32>
    %16 = vector.shape_cast %15 : vector<8x8xf32> to vector<8x8x1xf32>
    %17 = tpu.reciprocal %16 {approx = true} : vector<8x8x1xf32> -> vector<8x8x1xf32>
    %18 = vector.broadcast %17 : vector<8x8x1xf32> to vector<8x8x4xf32>
    %19 = arith.mulf %14, %18 : vector<8x8x4xf32>
    %20 = arith.truncf %19 : vector<8x8x4xf32> to vector<8x8x4xbf16>
    "tpu.trace_start"() <{level = 10 : i32, message = "bqs,bsd->bqd"}> : () -> ()
    %cst_13 = arith.constant dense<0.000000e+00> : vector<8x8x32xf32>
    %21 = tpu.matmul %20, %4, %cst_13 {dimension_numbers = #tpu.dot_dimension_numbers<[2], [1], [1], [2], [0, 0, 0, 1, 1, 2], [0], [0]>} : vector<8x8x4xbf16>, vector<8x4x32xbf16>, vector<8x8x32xf32> -> vector<8x8x32xf32>
    "tpu.trace_stop"() : () -> ()
    %c0_14 = arith.constant 0 : index
    %c0_15 = arith.constant 0 : index
    %22 = vector.load %arg4[%c0_14, %c0_15] : memref<32x32xbf16, #tpu.memory_space<vmem>>, vector<32x32xbf16>
    %23 = vector.shape_cast %22 : vector<32x32xbf16> to vector<1x32x32xbf16>
    %24 = vector.broadcast %23 : vector<1x32x32xbf16> to vector<8x32x32xbf16>
    "tpu.trace_start"() <{level = 10 : i32, message = "bqd,bdh->bqh"}> : () -> ()
    %cst_16 = arith.constant dense<0.000000e+00> : vector<8x8x32xf32>
    %25 = tpu.matmul %0, %24, %cst_16 {dimension_numbers = #tpu.dot_dimension_numbers<[2], [1], [1], [2], [0, 0, 0, 1, 1, 2], [0], [0]>} : vector<8x8x32xbf16>, vector<8x32x32xbf16>, vector<8x8x32xf32> -> vector<8x8x32xf32>
    "tpu.trace_stop"() : () -> ()
    %26 = arith.addf %21, %25 : vector<8x8x32xf32>
    %27 = math.tanh %26 : vector<8x8x32xf32>
    %c0_17 = arith.constant 0 : index
    %c0_18 = arith.constant 0 : index
    %c0_19 = arith.constant 0 : index
    %28 = vector.load %arg5[%c0_17, %c0_18, %c0_19] : memref<8x8x32xf32, #tpu.memory_space<vmem>>, vector<8x8x32xf32>
    tpu.vector_store %arg5[%c0_17, %c0_18, %c0_19], %27 {strides = array<i32>} : memref<8x8x32xf32, #tpu.memory_space<vmem>>, vector<8x8x32xf32>,
    %c0_20 = arith.constant 0 : index
    %c0_21 = arith.constant 0 : index
    %c0_22 = arith.constant 0 : index
    %29 = vector.load %arg6[%c0_20, %c0_21, %c0_22] : memref<8x8x4xf32, #tpu.memory_space<vmem>>, vector<8x8x4xf32>
    tpu.vector_store %arg6[%c0_20, %c0_21, %c0_22], %19 {strides = array<i32>} : memref<8x8x4xf32, #tpu.memory_space<vmem>>, vector<8x8x4xf32>,
    return
  }
  func.func @transform_0(%arg0: i32) -> (i32, i32, i32) {
    %c0_i32 = arith.constant 0 : i32
    %c0_i32_0 = arith.constant 0 : i32
    %c0_i32_1 = arith.constant 0 : i32
    return %c0_i32, %arg0, %c0_i32_0 : i32, i32, i32
  }
  func.func @transform_1(%arg0: i32) -> (i32, i32, i32, i32) {
    %c0_i32 = arith.constant 0 : i32
    %c0_i32_0 = arith.constant 0 : i32
    %c0_i32_1 = arith.constant 0 : i32
    %c0_i32_2 = arith.constant 0 : i32
    %c0_i32_3 = arith.constant 0 : i32
    return %c0_i32, %c0_i32_0, %c0_i32_1, %c0_i32_2 : i32, i32, i32, i32
  }
  func.func @transform_2(%arg0: i32) -> (i32, i32) {
    %c0_i32 = arith.constant 0 : i32
    %c0_i32_0 = arith.constant 0 : i32
    %c0_i32_1 = arith.constant 0 : i32
    return %c0_i32, %c0_i32_0 : i32, i32
  }
  func.func @transform_3(%arg0: i32) -> (i32, i32) {
    %c0_i32 = arith.constant 0 : i32
    %c0_i32_0 = arith.constant 0 : i32
    %c0_i32_1 = arith.constant 0 : i32
    return %c0_i32, %c0_i32_0 : i32, i32
  }
  func.func @transform_4(%arg0: i32) -> (i32, i32, i32) {
    %c0_i32 = arith.constant 0 : i32
    %c0_i32_0 = arith.constant 0 : i32
    %c0_i32_1 = arith.constant 0 : i32
    return %c0_i32, %arg0, %c0_i32_0 : i32, i32, i32
  }
  func.func @transform_5(%arg0: i32) -> (i32, i32, i32) {
    %c0_i32 = arith.constant 0 : i32
    %c0_i32_0 = arith.constant 0 : i32
    %c0_i32_1 = arith.constant 0 : i32
    return %c0_i32, %arg0, %c0_i32_0 : i32, i32, i32
  }
}

</mosaic_0001>

<llo_original>
// kernel: asr_forward.12
$region0: #{asr_forward.12}
  #allocation0 [shape = 'u32[]', space=smem, size = 0x4, offset = 0x4, fixed_abs, tag = 'smem constant byte address 0x4 - core index']
  #allocation1 [shape = 'u32[144,128]{1,0:T(1,128)}', space=vmem, size = 0x12000, scoped, tag = 'internal scratch']
  %s0 = inlined_call_operand.vmem [shape: bf16[64,32], index: 0, kind: input, shape index: {}]
  %s1 = inlined_call_operand.vmem [shape: bf16[32,128], index: 1, kind: input, shape index: {}]
  %s2 = inlined_call_operand.vmem [shape: f32[1,128], index: 2, kind: input, shape index: {}]
  %s3 = inlined_call_operand.vmem [shape: f32[64,128], index: 3, kind: output, shape index: {}]
  %s4 = sld [smem:[#allocation0]]
  $region22: #{asr_forward.12} parent=0
    _
  %s6 = ssub.s32 1, %s4
  %s7 = scalar_select 0, %s6, %s4
  // Predicated region
  $region2: #{asr_forward.12} parent=0 // pred_check
    _
  $region3: #{asr_forward.12} parent=0 // pred_check_branch
    %9 = sbr.rel (0) target = $region5
  $region4: #{asr_forward.12} parent=0 // pred_region
    _
  $region5: #{asr_forward.12} parent=0 // pred_fallthru
    _
  // Predicated region
  $region6: #{asr_forward.12} parent=0 // pred_check
    _
  $region7: #{asr_forward.12} parent=0 // pred_check_branch
    %11 = sbr.rel (0) target = $region9
  $region8: #{asr_forward.12} parent=0 // pred_region
    _
  $region9: #{asr_forward.12} parent=0 // pred_fallthru
    _
  // Predicated region
  $region10: #{asr_forward.12} parent=0 // pred_check
    _
  $region11: #{asr_forward.12} parent=0 // pred_check_branch
    %13 = sbr.rel (0) target = $region13
  $region12: #{asr_forward.12} parent=0 // pred_region
    _
  $region13: #{asr_forward.12} parent=0 // pred_fallthru
    _
  %v15 = vld [vmem:[%s0] sm:$0xf]
  %v16 = vld [vmem:[%s0 + $0x4] sm:$0xf]
  %v17 = vld [vmem:[%s0 + $0x8] sm:$0xf]
  %v18 = vld [vmem:[%s0 + $0xc] sm:$0xf]
  %v19 = vld [vmem:[%s0 + $0x10] sm:$0xf]
  %v20 = vld [vmem:[%s0 + $0x14] sm:$0xf]
  %v21 = vld [vmem:[%s0 + $0x18] sm:$0xf]
  %v22 = vld [vmem:[%s0 + $0x1c] sm:$0xf]
  %v23 = vld [vmem:[%s1] sm:$0xf]
  %v24 = vld [vmem:[%s1 + $0x4] sm:$0xf]
  %v25 = vld [vmem:[%s1 + $0x8] sm:$0xf]
  %v26 = vld [vmem:[%s1 + $0xc] sm:$0xf]
  %v27 = vld [vmem:[%s2] sm:$0x1]
  %v29 = vlaneseq
  %v30 = vshrl.u32 %v29, 7
  %v31 = vsub.s32 0, %v30
  %v32 = vrot.slane %v27, %v31
  %v42 = vunpack.c.l.b16 %v15
  %v43 = vunpack.c.l.b16 %v16
  %v44 = vunpack.c.l.b16 %v17
  %v45 = vunpack.c.l.b16 %v18
  %v46 = vunpack.c.l.b16 %v19
  %v47 = vunpack.c.l.b16 %v20
  %v48 = vunpack.c.l.b16 %v21
  %v49 = vunpack.c.l.b16 %v22
  %v50 = vpack.c.b16 %v43, %v42
  %v51 = vpack.c.b16 %v45, %v44
  %v52 = vpack.c.b16 %v47, %v46
  %v53 = vpack.c.b16 %v49, %v48
  %v58 = vunpack.c.l.b16 %v23
  %v59 = vunpack.c.l.b16 %v24
  %v60 = vunpack.c.l.b16 %v25
  %v61 = vunpack.c.l.b16 %v26
  %v62 = vpack.c.b16 %v59, %v58
  %v63 = vpack.c.b16 %v61, %v60
  %vm66 = vcmask 261120
  %v68 = vsel %vm66, %v50, 0
  %v71 = vsel %vm66, %v51, 0
  %v74 = vsel %vm66, %v52, 0
  %v77 = vsel %vm66, %v53, 0
  %79 = vmatprep.subr.bf16.mxu0 0
  %80 = vmatpush1.bf16.msra.mxu0 0
  %81 = vmatprep.subr.bf16.mxu0 0
  %82 = vmatpush1.bf16.msra.mxu0 0
  %83 = vmatprep.subr.bf16.mxu0 0
  %84 = vmatpush1.bf16.msra.mxu0 0
  %85 = vmatprep.subr.bf16.mxu0 0
  %86 = vmatpush1.bf16.msra.mxu0 0
  %87 = vmatprep.subr.bf16.mxu0 0
  %88 = vmatpush1.bf16.msra.mxu0 0
  %89 = vmatprep.subr.bf16.mxu0 0
  %90 = vmatpush1.bf16.msra.mxu0 0
  %91 = vmatprep.subr.bf16.mxu0 0
  %92 = vmatpush1.bf16.msra.mxu0 %v63
  %93 = vmatprep.subr.bf16.mxu0 0
  %94 = vmatpush1.bf16.msra.mxu0 %v62
  %95 = vmatprep.subr.bf16.mxu0 0
  %96 = vmatpush2.bf16.msra.mxu0 0
  %97 = vmatprep.subr.bf16.mxu0 0
  %98 = vmatpush2.bf16.msra.mxu0 0
  %99 = vmatprep.subr.bf16.mxu0 0
  %100 = vmatpush2.bf16.msra.mxu0 0
  %101 = vmatprep.subr.bf16.mxu0 0
  %102 = vmatpush2.bf16.msra.mxu0 0
  %103 = vmatprep.subr.bf16.mxu0 0
  %104 = vmatpush2.bf16.msra.mxu0 0
  %105 = vmatprep.subr.bf16.mxu0 0
  %106 = vmatpush2.bf16.msra.mxu0 0
  %107 = vmatprep.subr.bf16.mxu0 0
  %108 = vmatpush2.bf16.msra.mxu0 0
  %109 = vmatprep.subr.bf16.mxu0 0
  %110 = vmatpush2.bf16.msra.mxu0 0
  %111 = vmatprep.mubr.bf16.mxu0 0
  %112 = vmatmul.mubr.bf16.gmra.mxu0 %v68
  %v113 = vpop.f32.mrf.mxu0
  %v114 = vadd.f32 %v32, %v113
  %v115 = vpop.f32.mrf.mxu0
  %v116 = vpop.f32.mrf.mxu0
  %v117 = vadd.f32 %v32, %v116
  %v118 = vpop.f32.mrf.mxu0
  %119 = vmatprep.mubr.bf16.mxu0 0
  %120 = vmatmul.mubr.bf16.gmra.mxu0 %v71
  %v121 = vpop.f32.mrf.mxu0
  %v122 = vadd.f32 %v32, %v121
  %v123 = vpop.f32.mrf.mxu0
  %v124 = vpop.f32.mrf.mxu0
  %v125 = vadd.f32 %v32, %v124
  %v126 = vpop.f32.mrf.mxu0
  %127 = vmatprep.mubr.bf16.mxu0 0
  %128 = vmatmul.mubr.bf16.gmra.mxu0 %v74
  %v129 = vpop.f32.mrf.mxu0
  %v130 = vadd.f32 %v32, %v129
  %v131 = vpop.f32.mrf.mxu0
  %v132 = vpop.f32.mrf.mxu0
  %v133 = vadd.f32 %v32, %v132
  %v134 = vpop.f32.mrf.mxu0
  %135 = vmatprep.mubr.bf16.mxu0 0
  %136 = vmatmul.mubr.bf16.gmra.mxu0 %v77
  %v137 = vpop.f32.mrf.mxu0
  %v138 = vadd.f32 %v32, %v137
  %v139 = vpop.f32.mrf.mxu0
  %v140 = vpop.f32.mrf.mxu0
  %v141 = vadd.f32 %v32, %v140
  %v142 = vpop.f32.mrf.mxu0
  %143 = vdwg.mxu0
  %144 = vst [vmem:[%s3] sm:$0xff] %v114
  %145 = vst [vmem:[%s3 + $0x8] sm:$0xff] %v117
  %146 = vst [vmem:[%s3 + $0x10] sm:$0xff] %v122
  %147 = vst [vmem:[%s3 + $0x18] sm:$0xff] %v125
  %148 = vst [vmem:[%s3 + $0x20] sm:$0xff] %v130
  %149 = vst [vmem:[%s3 + $0x28] sm:$0xff] %v133
  %150 = vst [vmem:[%s3 + $0x30] sm:$0xff] %v138
  %151 = vst [vmem:[%s3 + $0x38] sm:$0xff] %v141
  // Predicated region
  $region14: #{asr_forward.12} parent=0 // pred_check
    _
  $region15: #{asr_forward.12} parent=0 // pred_check_branch
    %153 = sbr.rel (0) target = $region17
  $region16: #{asr_forward.12} parent=0 // pred_region
    _
  $region17: #{asr_forward.12} parent=0 // pred_fallthru
    _
  // Predicated region
  $region18: #{asr_forward.12} parent=0 // pred_check
    _
  $region19: #{asr_forward.12} parent=0 // pred_check_branch
    %155 = sbr.rel (0) target = $region21
  $region20: #{asr_forward.12} parent=0 // pred_region
    _
  $region21: #{asr_forward.12} parent=0 // pred_fallthru
    _

// kernel: asr_forward.10
$region0: #{asr_forward.10}
  #allocation0 [shape = 'u32[]', space=smem, size = 0x4, offset = 0x4, fixed_abs, tag = 'smem constant byte address 0x4 - core index']
  #allocation1 [shape = 'u32[144,128]{1,0:T(1,128)}', space=vmem, size = 0x12000, scoped, tag = 'internal scratch']
  %s0 = inlined_call_operand.vmem [shape: f32[128,8], index: 0, kind: input, shape index: {}]
  %s1 = inlined_call_operand.vmem [shape: bf16[8,128], index: 1, kind: input, shape index: {}]
  %s2 = inlined_call_operand.vmem [shape: f32[1,128], index: 2, kind: input, shape index: {}]
  %s3 = inlined_call_operand.vmem [shape: f32[128,128], index: 3, kind: output, shape index: {}]
  %s4 = sld [smem:[#allocation0]]
  $region22: #{asr_forward.10} parent=0
    _
  %s6 = ssub.s32 1, %s4
  %s7 = scalar_select 0, %s6, %s4
  // Predicated region
  $region2: #{asr_forward.10} parent=0 // pred_check
    _
  $region3: #{asr_forward.10} parent=0 // pred_check_branch
    %9 = sbr.rel (0) target = $region5
  $region4: #{asr_forward.10} parent=0 // pred_region
    _
  $region5: #{asr_forward.10} parent=0 // pred_fallthru
    _
  // Predicated region
  $region6: #{asr_forward.10} parent=0 // pred_check
    _
  $region7: #{asr_forward.10} parent=0 // pred_check_branch
    %11 = sbr.rel (0) target = $region9
  $region8: #{asr_forward.10} parent=0 // pred_region
    _
  $region9: #{asr_forward.10} parent=0 // pred_fallthru
    _
  // Predicated region
  $region10: #{asr_forward.10} parent=0 // pred_check
    _
  $region11: #{asr_forward.10} parent=0 // pred_check_branch
    %13 = sbr.rel (0) target = $region13
  $region12: #{asr_forward.10} parent=0 // pred_region
    _
  $region13: #{asr_forward.10} parent=0 // pred_fallthru
    _
  %v15 = vld [vmem:[%s0] sm:$0xff]
  %v16 = vld [vmem:[%s0 + $0x8] sm:$0xff]
  %v17 = vld [vmem:[%s0 + $0x10] sm:$0xff]
  %v18 = vld [vmem:[%s0 + $0x18] sm:$0xff]
  %v19 = vld [vmem:[%s0 + $0x20] sm:$0xff]
  %v20 = vld [vmem:[%s0 + $0x28] sm:$0xff]
  %v21 = vld [vmem:[%s0 + $0x30] sm:$0xff]
  %v22 = vld [vmem:[%s0 + $0x38] sm:$0xff]
  %v23 = vld [vmem:[%s0 + $0x40] sm:$0xff]
  %v24 = vld [vmem:[%s0 + $0x48] sm:$0xff]
  %v25 = vld [vmem:[%s0 + $0x50] sm:$0xff]
  %v26 = vld [vmem:[%s0 + $0x58] sm:$0xff]
  %v27 = vld [vmem:[%s0 + $0x60] sm:$0xff]
  %v28 = vld [vmem:[%s0 + $0x68] sm:$0xff]
  %v29 = vld [vmem:[%s0 + $0x70] sm:$0xff]
  %v30 = vld [vmem:[%s0 + $0x78] sm:$0xff]
  %v31 = vpack.c.bf16 %v16, %v15
  %v32 = vpack.c.bf16 %v18, %v17
  %v33 = vpack.c.bf16 %v20, %v19
  %v34 = vpack.c.bf16 %v22, %v21
  %v35 = vpack.c.bf16 %v24, %v23
  %v36 = vpack.c.bf16 %v26, %v25
  %v37 = vpack.c.bf16 %v28, %v27
  %v38 = vpack.c.bf16 %v30, %v29
  %v39 = vld [vmem:[%s1] sm:$0xf]
  %v40 = vld [vmem:[%s2] sm:$0x1]
  %v42 = vlaneseq
  %v43 = vshrl.u32 %v42, 7
  %v44 = vsub.s32 0, %v43
  %v45 = vrot.slane %v40, %v44
  %vm47 = vcmask 64512
  %v49 = vsel %vm47, %v31, 0
  %v52 = vsel %vm47, %v32, 0
  %v55 = vsel %vm47, %v33, 0
  %v58 = vsel %vm47, %v34, 0
  %v61 = vsel %vm47, %v35, 0
  %v64 = vsel %vm47, %v36, 0
  %v67 = vsel %vm47, %v37, 0
  %v70 = vsel %vm47, %v38, 0
  %vm72 = vcmask 1043456
  %v74 = vsel %vm72, %v39, 0
  %76 = vmatprep.subr.bf16.mxu0 0
  %77 = vmatpush1.bf16.msra.mxu0 0
  %78 = vmatprep.subr.bf16.mxu0 0
  %79 = vmatpush1.bf16.msra.mxu0 0
  %80 = vmatprep.subr.bf16.mxu0 0
  %81 = vmatpush1.bf16.msra.mxu0 0
  %82 = vmatprep.subr.bf16.mxu0 0
  %83 = vmatpush1.bf16.msra.mxu0 0
  %84 = vmatprep.subr.bf16.mxu0 0
  %85 = vmatpush1.bf16.msra.mxu0 0
  %86 = vmatprep.subr.bf16.mxu0 0
  %87 = vmatpush1.bf16.msra.mxu0 0
  %88 = vmatprep.subr.bf16.mxu0 0
  %89 = vmatpush1.bf16.msra.mxu0 0
  %90 = vmatprep.subr.bf16.mxu0 0
  %91 = vmatpush1.bf16.msra.mxu0 %v74
  %92 = vmatprep.subr.bf16.mxu0 0
  %93 = vmatpush2.bf16.msra.mxu0 0
  %94 = vmatprep.subr.bf16.mxu0 0
  %95 = vmatpush2.bf16.msra.mxu0 0
  %96 = vmatprep.subr.bf16.mxu0 0
  %97 = vmatpush2.bf16.msra.mxu0 0
  %98 = vmatprep.subr.bf16.mxu0 0
  %99 = vmatpush2.bf16.msra.mxu0 0
  %100 = vmatprep.subr.bf16.mxu0 0
  %101 = vmatpush2.bf16.msra.mxu0 0
  %102 = vmatprep.subr.bf16.mxu0 0
  %103 = vmatpush2.bf16.msra.mxu0 0
  %104 = vmatprep.subr.bf16.mxu0 0
  %105 = vmatpush2.bf16.msra.mxu0 0
  %106 = vmatprep.subr.bf16.mxu0 0
  %107 = vmatpush2.bf16.msra.mxu0 0
  %108 = vmatprep.mubr.bf16.mxu0 0
  %109 = vmatmul.mubr.bf16.gmra.mxu0 %v49
  %v110 = vpop.f32.mrf.mxu0
  %v111 = vadd.f32 %v45, %v110
  %v112 = vpop.f32.mrf.mxu0
  %v113 = vpop.f32.mrf.mxu0
  %v114 = vadd.f32 %v45, %v113
  %v115 = vpop.f32.mrf.mxu0
  %116 = vmatprep.mubr.bf16.mxu0 0
  %117 = vmatmul.mubr.bf16.gmra.mxu0 %v52
  %v118 = vpop.f32.mrf.mxu0
  %v119 = vadd.f32 %v45, %v118
  %v120 = vpop.f32.mrf.mxu0
  %v121 = vpop.f32.mrf.mxu0
  %v122 = vadd.f32 %v45, %v121
  %v123 = vpop.f32.mrf.mxu0
  %124 = vmatprep.mubr.bf16.mxu0 0
  %125 = vmatmul.mubr.bf16.gmra.mxu0 %v55
  %v126 = vpop.f32.mrf.mxu0
  %v127 = vadd.f32 %v45, %v126
  %v128 = vpop.f32.mrf.mxu0
  %v129 = vpop.f32.mrf.mxu0
  %v130 = vadd.f32 %v45, %v129
  %v131 = vpop.f32.mrf.mxu0
  %132 = vmatprep.mubr.bf16.mxu0 0
  %133 = vmatmul.mubr.bf16.gmra.mxu0 %v58
  %v134 = vpop.f32.mrf.mxu0
  %v135 = vadd.f32 %v45, %v134
  %v136 = vpop.f32.mrf.mxu0
  %v137 = vpop.f32.mrf.mxu0
  %v138 = vadd.f32 %v45, %v137
  %v139 = vpop.f32.mrf.mxu0
  %140 = vmatprep.mubr.bf16.mxu0 0
  %141 = vmatmul.mubr.bf16.gmra.mxu0 %v61
  %v142 = vpop.f32.mrf.mxu0
  %v143 = vadd.f32 %v45, %v142
  %v144 = vpop.f32.mrf.mxu0
  %v145 = vpop.f32.mrf.mxu0
  %v146 = vadd.f32 %v45, %v145
  %v147 = vpop.f32.mrf.mxu0
  %148 = vmatprep.mubr.bf16.mxu0 0
  %149 = vmatmul.mubr.bf16.gmra.mxu0 %v64
  %v150 = vpop.f32.mrf.mxu0
  %v151 = vadd.f32 %v45, %v150
  %v152 = vpop.f32.mrf.mxu0
  %v153 = vpop.f32.mrf.mxu0
  %v154 = vadd.f32 %v45, %v153
  %v155 = vpop.f32.mrf.mxu0
  %156 = vmatprep.mubr.bf16.mxu0 0
  %157 = vmatmul.mubr.bf16.gmra.mxu0 %v67
  %v158 = vpop.f32.mrf.mxu0
  %v159 = vadd.f32 %v45, %v158
  %v160 = vpop.f32.mrf.mxu0
  %v161 = vpop.f32.mrf.mxu0
  %v162 = vadd.f32 %v45, %v161
  %v163 = vpop.f32.mrf.mxu0
  %164 = vmatprep.mubr.bf16.mxu0 0
  %165 = vmatmul.mubr.bf16.gmra.mxu0 %v70
  %v166 = vpop.f32.mrf.mxu0
  %v167 = vadd.f32 %v45, %v166
  %v168 = vpop.f32.mrf.mxu0
  %v169 = vpop.f32.mrf.mxu0
  %v170 = vadd.f32 %v45, %v169
  %v171 = vpop.f32.mrf.mxu0
  %172 = vdwg.mxu0
  %173 = vst [vmem:[%s3] sm:$0xff] %v111
  %174 = vst [vmem:[%s3 + $0x8] sm:$0xff] %v114
  %175 = vst [vmem:[%s3 + $0x10] sm:$0xff] %v119
  %176 = vst [vmem:[%s3 + $0x18] sm:$0xff] %v122
  %177 = vst [vmem:[%s3 + $0x20] sm:$0xff] %v127
  %178 = vst [vmem:[%s3 + $0x28] sm:$0xff] %v130
  %179 = vst [vmem:[%s3 + $0x30] sm:$0xff] %v135
  %180 = vst [vmem:[%s3 + $0x38] sm:$0xff] %v138
  %181 = vst [vmem:[%s3 + $0x40] sm:$0xff] %v143
  %182 = vst [vmem:[%s3 + $0x48] sm:$0xff] %v146
  %183 = vst [vmem:[%s3 + $0x50] sm:$0xff] %v151
  %184 = vst [vmem:[%s3 + $0x58] sm:$0xff] %v154
  %185 = vst [vmem:[%s3 + $0x60] sm:$0xff] %v159
  %186 = vst [vmem:[%s3 + $0x68] sm:$0xff] %v162
  %187 = vst [vmem:[%s3 + $0x70] sm:$0xff] %v167
  %188 = vst [vmem:[%s3 + $0x78] sm:$0xff] %v170
  // Predicated region
  $region14: #{asr_forward.10} parent=0 // pred_check
    _
  $region15: #{asr_forward.10} parent=0 // pred_check_branch
    %190 = sbr.rel (0) target = $region17
  $region16: #{asr_forward.10} parent=0 // pred_region
    _
  $region17: #{asr_forward.10} parent=0 // pred_fallthru
    _
  // Predicated region
  $region18: #{asr_forward.10} parent=0 // pred_check
    _
  $region19: #{asr_forward.10} parent=0 // pred_check_branch
    %192 = sbr.rel (0) target = $region21
  $region20: #{asr_forward.10} parent=0 // pred_region
    _
  $region21: #{asr_forward.10} parent=0 // pred_fallthru
    _

// kernel: asr_forward.11
$region0: #{asr_forward.11}
  #allocation0 [shape = 'u32[]', space=smem, size = 0x4, offset = 0x4, fixed_abs, tag = 'smem constant byte address 0x4 - core index']
  #allocation1 [shape = 'u32[144,128]{1,0:T(1,128)}', space=vmem, size = 0x12000, scoped, tag = 'internal scratch']
  #allocation2 [shape = 'f32[8,32]{1,0:T(8,128)}', space=vmem, size = 0x1000, scoped, tag = 'scratch operand']
  #allocation3 [shape = 'f32[8,32]{1,0:T(8,128)}', space=vmem, size = 0x1000, scoped, tag = 'scratch operand']
  %s0 = inlined_call_operand.vmem [shape: f32[16,8,128], index: 0, kind: input, shape index: {}]
  %s1 = inlined_call_operand.vmem [shape: bf16[32,128], index: 1, kind: input, shape index: {}]
  %s2 = inlined_call_operand.vmem [shape: bf16[8,8,32], index: 2, kind: output, shape index: {}]
  %s3 = sld [smem:[#allocation0]]
  $region45: #{asr_forward.11} parent=0
    _
  %s5 = ssub.s32 1, %s3
  %s6 = scalar_select 0, %s5, %s3
  loop: start=0, step=1, limit=4
  $region2: #{asr_forward.11} parent=0 // loop_pre_header
    _
  $region3: #{asr_forward.11} parent=0 // loop_header
    %s8 = sphi 0, %s12
    %p9 = scmp.ge.s32.totalorder %s8, 4
    %s15 = sphi 0, %s27
    %s16 = sphi 0, %s23
    %s17 = sphi 0, %s15
    %s18 = sphi 0, %s16
    %s19 = sphi 0, %s17
    %s20 = sphi 0, %s18
    %s32 = sphi 0, %s34
    %s35 = sphi 0, %s32
    %s36 = sphi 0, %s35
    %s52 = sphi 0, %s36
    %s56 = sphi 0, %s56
    %s58 = sphi 0, %s56
    %s59 = sphi 0, %s58
    %s73 = sphi 0, %s59
    %s81 = sphi 0, %s83
    %s84 = sphi 0, %s81
    %s85 = sphi 0, %s84
    %s101 = sphi 0, %s85
  $region4: #{asr_forward.11} parent=0 // loop_header_branch
    %11 = sbr.rel (%p9) target = $region8
  $region5: #{asr_forward.11} parent=0 // loop_body
    %s13 = ssub.s32 %s8, 1
    %s14 = ssub.s32 %s8, 2
    %s21 = sadd.s32 1, %s16
    %p22 = scmp.ge.s32.totalorder %s21, 2
    %s23 = scalar_select %p22, 0, %s21
    %s24 = sadd.s32 1, %s15
    %s25 = scalar_select %p22, %s24, %s15
    %p26 = scmp.ge.s32.totalorder %s25, 1
    %s27 = scalar_select %p26, 0, %s25
    %s28 = ssub.s32 %s16, %s23
    %s29 = ssub.s32 %s15, %s27
    %s30 = sor.u32 %s28, %s29
    %p31 = scmp.eq.s32.totalorder %s30, 0
    %s33 = sadd.s32 %s32, 1
    %s34 = scalar_select %p31, %s32, %s33
    %p37 = pneg %p31
    %p38 = scmp.eq.s32.totalorder %s8, 1
    %p39 = por %p37, %p38
    %p40 = scmp.ne.s32.totalorder %s32, %s35
    %p41 = scmp.eq.s32.totalorder %s8, 0
    %p42 = por %p40, %p41
    %p43 = scmp.ne.s32.totalorder %s32, %s35
    %p44 = scmp.eq.s32.totalorder %s13, 1
    %p45 = por %p43, %p44
    %p46 = scmp.ne.s32.totalorder %s35, %s36
    %p47 = scmp.eq.s32.totalorder %s13, 0
    %p48 = por %p46, %p47
    %p49 = scmp.ne.s32.totalorder %s35, %s36
    %p50 = scmp.eq.s32.totalorder %s14, 1
    %p51 = por %p49, %p50
    %p53 = scmp.ne.s32.totalorder %s36, %s52
    %p54 = scmp.eq.s32.totalorder %s14, 0
    %p55 = por %p53, %p54
    %s57 = sadd.s32 %s56, 1
    %p60 = scmp.eq.s32.totalorder %s8, 1
    %p61 = scmp.ne.s32.totalorder %s56, %s58
    %p62 = scmp.eq.s32.totalorder %s8, 0
    %p63 = por %p61, %p62
    %p64 = scmp.ne.s32.totalorder %s56, %s58
    %p65 = scmp.eq.s32.totalorder %s13, 1
    %p66 = por %p64, %p65
    %p67 = scmp.ne.s32.totalorder %s58, %s59
    %p68 = scmp.eq.s32.totalorder %s13, 0
    %p69 = por %p67, %p68
    %p70 = scmp.ne.s32.totalorder %s58, %s59
    %p71 = scmp.eq.s32.totalorder %s14, 1
    %p72 = por %p70, %p71
    %p74 = scmp.ne.s32.totalorder %s59, %s73
    %p75 = scmp.eq.s32.totalorder %s14, 0
    %p76 = por %p74, %p75
    %s77 = ssub.s32 %s16, %s23
    %s78 = ssub.s32 %s15, %s27
    %s79 = sor.u32 %s77, %s78
    %p80 = scmp.eq.s32.totalorder %s79, 0
    %s82 = sadd.s32 %s81, 1
    %s83 = scalar_select %p80, %s81, %s82
    %p86 = pneg %p80
    %p87 = scmp.eq.s32.totalorder %s8, 1
    %p88 = por %p86, %p87
    %p89 = scmp.ne.s32.totalorder %s81, %s84
    %p90 = scmp.eq.s32.totalorder %s8, 0
    %p91 = por %p89, %p90
    %p92 = scmp.ne.s32.totalorder %s81, %s84
    %p93 = scmp.eq.s32.totalorder %s13, 1
    %p94 = por %p92, %p93
    %p95 = scmp.ne.s32.totalorder %s84, %s85
    %p96 = scmp.eq.s32.totalorder %s13, 0
    %p97 = por %p95, %p96
    %p98 = scmp.ne.s32.totalorder %s84, %s85
    %p99 = scmp.eq.s32.totalorder %s14, 1
    %p100 = por %p98, %p99
    %p102 = scmp.ne.s32.totalorder %s85, %s101
    %p103 = scmp.eq.s32.totalorder %s14, 0
    %p104 = por %p102, %p103
    %p105 = scmp.le.s32.totalorder 1, %s8
    %p106 = scmp.lt.s32.totalorder %s8, 3
    %p107 = pnand %p105, %p106
    %p108 = pneg %p107
    // Predicated region
    $region9: #{asr_forward.11} parent=5 // pred_check
      _
    $region10: #{asr_forward.11} parent=5 // pred_check_branch
      %110 = sbr.rel (%p107) target = $region12
    $region11: #{asr_forward.11} parent=5 // pred_region
      %s111 = ssub.s32 %s8, 1
      // Predicated region
      $region13: #{asr_forward.11} parent=11 // pred_check
        %p112 = pneg %p69
      $region14: #{asr_forward.11} parent=11 // pred_check_branch
        %114 = sbr.rel (%p112) target = $region16
      $region15: #{asr_forward.11} parent=11 // pred_region
        _
      $region16: #{asr_forward.11} parent=11 // pred_fallthru
        _
    $region12: #{asr_forward.11} parent=5 // pred_fallthru
      _
    %p115 = scmp.lt.s32.totalorder %s8, 2
    // Predicated region
    $region17: #{asr_forward.11} parent=5 // pred_check
      %p116 = pneg %p115
    $region18: #{asr_forward.11} parent=5 // pred_check_branch
      %118 = sbr.rel (%p116) target = $region20
    $region19: #{asr_forward.11} parent=5 // pred_region
      // Predicated region
      $region21: #{asr_forward.11} parent=19 // pred_check
        %p119 = pneg %p42
      $region22: #{asr_forward.11} parent=19 // pred_check_branch
        %121 = sbr.rel (%p119) target = $region24
      $region23: #{asr_forward.11} parent=19 // pred_region
        %s122 = smul.u32 8, %s16
        %p123 = scmp.lt.s32.totalorder %s122, 15
        %s124 = scalar_select %p123, %s122, 15
        %p125 = scmp.lt.s32.totalorder %s15, 0
        %s126 = scalar_select %p125, %s15, 0
        %s127 = sadd.s32 %s126, %s124
        %s128 = smul.addr %s127, 8
        %s129 = scalar_lea.vmem %s0, %s128
        %s130 = smul.u32 8, %s16
      $region24: #{asr_forward.11} parent=19 // pred_fallthru
        _
    $region20: #{asr_forward.11} parent=5 // pred_fallthru
      _
    %p131 = scmp.le.s32.totalorder 1, %s8
    %p132 = scmp.lt.s32.totalorder %s8, 3
    %p133 = pnand %p131, %p132
    %p134 = pneg %p133
    // Predicated region
    $region25: #{asr_forward.11} parent=5 // pred_check
      _
    $region26: #{asr_forward.11} parent=5 // pred_check_branch
      %136 = sbr.rel (%p133) target = $region28
    $region27: #{asr_forward.11} parent=5 // pred_region
      %s137 = ssub.s32 %s8, 1
      %s138 = smul.u32 8, %s18
      %p139 = scmp.lt.s32.totalorder %s138, 15
      %s140 = scalar_select %p139, %s138, 15
      %p141 = scmp.lt.s32.totalorder %s17, 0
      %s142 = scalar_select %p141, %s17, 0
      %s143 = sadd.s32 %s142, %s140
      %s144 = smul.addr %s143, 8
      %s145 = scalar_lea.vmem %s0, %s144
      %p146 = pneg %p48
      %p147 = pneg %p45
      %p148 = pneg %p69
      %p149 = pneg %p66
      %p150 = pneg %p97
      %p151 = pneg %p94
      %s152 = smul.u32 4, %s18
      %p153 = scmp.lt.s32.totalorder %s152, 7
      %s154 = scalar_select %p153, %s152, 7
      %p155 = scmp.lt.s32.totalorder %s17, 0
      %s156 = scalar_select %p155, %s17, 0
      %s157 = sadd.s32 %s156, %s154
      %s158 = smul.addr %s157, 4
      %s159 = scalar_lea.vmem %s2, %s158
      %s160 = smul.u32 8, %s18
      %p161 = scmp.lt.s32.totalorder %s160, 15
      %s162 = scalar_select %p161, %s160, 15
      %p163 = scmp.lt.s32.totalorder %s17, 0
      %s164 = scalar_select %p163, %s17, 0
      %s165 = sadd.s32 %s164, %s162
      %s166 = smul.addr %s165, 8
      %s167 = scalar_lea.vmem %s0, %s166
      %s168 = smul.u32 8, %s18
      %s169 = smul.u32 4, %s18
      %p170 = scmp.lt.s32.totalorder %s169, 7
      %s171 = scalar_select %p170, %s169, 7
      %p172 = scmp.lt.s32.totalorder %s17, 0
      %s173 = scalar_select %p172, %s17, 0
      %s174 = sadd.s32 %s173, %s171
      %s175 = smul.addr %s174, 4
      %s176 = scalar_lea.vmem %s2, %s175
      %s177 = smul.u32 4, %s18
      %p179 = scmp.eq.s32.totalorder %s18, 0
      // Predicated region
      $region29: #{asr_forward.11} parent=27 // pred_check
        %p180 = pneg %p179
      $region30: #{asr_forward.11} parent=27 // pred_check_branch
        %182 = sbr.rel (%p180) target = $region32
      $region31: #{asr_forward.11} parent=27 // pred_region
        %vm183 = vcmask 261120
        %184 = vst.msk [vmem:[#allocation2] sm:$0xff] %vm183, 0.0
        %185 = vst.msk [vmem:[#allocation3] sm:$0xff] %vm183, 0.0
      $region32: #{asr_forward.11} parent=27 // pred_fallthru
        _
      %v186 = vld [vmem:[%s1] sm:$0xf]
      %v187 = vld [vmem:[%s1 + $0x4] sm:$0xf]
      %v188 = vld [vmem:[%s1 + $0x8] sm:$0xf]
      %v189 = vld [vmem:[%s1 + $0xc] sm:$0xf]
      %v190 = vld [vmem:[#allocation2] sm:$0xff]
      %v191 = vld [vmem:[#allocation3] sm:$0xff]
      %v192 = vld [vmem:[%s167] sm:$0xff]
      %v193 = vpack.c.bf16 %v190, %v190
      %v198 = vunpack.c.l.b16 %v186
      %v199 = vunpack.c.l.b16 %v187
      %v200 = vunpack.c.l.b16 %v188
      %v201 = vunpack.c.l.b16 %v189
      %v202 = vpack.c.b16 %v199, %v198
      %v203 = vpack.c.b16 %v201, %v200
      %vm206 = vcmask 261120
      %v208 = vsel %vm206, %v193, 0
      %210 = vmatprep.subr.bf16.mxu0 0
      %211 = vmatpush1.bf16.msra.mxu0 0
      %212 = vmatprep.subr.bf16.mxu0 0
      %213 = vmatpush1.bf16.msra.mxu0 0
      %214 = vmatprep.subr.bf16.mxu0 0
      %215 = vmatpush1.bf16.msra.mxu0 0
      %216 = vmatprep.subr.bf16.mxu0 0
      %217 = vmatpush1.bf16.msra.mxu0 0
      %218 = vmatprep.subr.bf16.mxu0 0
      %219 = vmatpush1.bf16.msra.mxu0 0
      %220 = vmatprep.subr.bf16.mxu0 0
      %221 = vmatpush1.bf16.msra.mxu0 0
      %222 = vmatprep.subr.bf16.mxu0 0
      %223 = vmatpush1.bf16.msra.mxu0 %v203
      %224 = vmatprep.subr.bf16.mxu0 0
      %225 = vmatpush1.bf16.msra.mxu0 %v202
      %226 = vmatprep.subr.bf16.mxu0 0
      %227 = vmatpush2.bf16.msra.mxu0 0
      %228 = vmatprep.subr.bf16.mxu0 0
      %229 = vmatpush2.bf16.msra.mxu0 0
      %230 = vmatprep.subr.bf16.mxu0 0
      %231 = vmatpush2.bf16.msra.mxu0 0
      %232 = vmatprep.subr.bf16.mxu0 0
      %233 = vmatpush2.bf16.msra.mxu0 0
      %234 = vmatprep.subr.bf16.mxu0 0
      %235 = vmatpush2.bf16.msra.mxu0 0
      %236 = vmatprep.subr.bf16.mxu0 0
      %237 = vmatpush2.bf16.msra.mxu0 0
      %238 = vmatprep.subr.bf16.mxu0 0
      %239 = vmatpush2.bf16.msra.mxu0 0
      %240 = vmatprep.subr.bf16.mxu0 0
      %241 = vmatpush2.bf16.msra.mxu0 0
      %242 = vmatprep.mubr.bf16.mxu0 0
      %243 = vmatmul.mubr.bf16.gmra.mxu0 %v208
      %v244 = vpop.f32.mrf.mxu0
      %v245 = vadd.f32 0.0, %v244
      %v246 = vpop.f32.mrf.mxu0
      %v247 = vpop.f32.mrf.mxu0
      %v248 = vpop.f32.mrf.mxu0
      %249 = vdwg.mxu0
      %v250 = vadd.f32 %v192, %v245
      %v251 = vxor.u32 %v250, 2147483648
      %v252 = vmul.f32 %v251, 1.442695
      %v253 = vpow.pop %v252
      %v254 = vadd.f32 %v253, 1.0
      %v255 = vrcp.pop %v254
      %v256 = vmul.f32 1.0, %v255
      %v257 = vtanh.pop %v250
      %259 = vrot.lane.b32.xlu0 %v191, 32
      %v260 = vpop.permute.xlu0 %259
      %v262 = vmul.f32 %v256, %v260
      %264 = vrot.lane.b32.xlu0 %v257, 64
      %v265 = vpop.permute.xlu0 %264
      %v267 = vmul.f32 %v256, %v265
      %269 = vrot.lane.b32.xlu0 %v267, 32
      %v270 = vpop.permute.xlu0 %269
      %v272 = vadd.f32 %v262, %v270
      %v273 = vtanh.pop %v272
      %275 = vrot.lane.b32.xlu0 %v273, 64
      %v276 = vpop.permute.xlu0 %275
      %v278 = vmul.f32 %v256, %v276
      %s279 = scalar_lea.vmem %s167, 8
      %v280 = vld [vmem:[%s279] sm:$0xff]
      %v281 = vpack.c.bf16 %v278, %v278
      %283 = vrot.lane.b32.xlu0 %v281, 32
      %v284 = vpop.permute.xlu0 %283
      %v286 = vsel %vm206, %v284, 0
      %288 = vmatprep.subr.bf16.mxu0 0
      %289 = vmatpush1.bf16.msra.mxu0 0
      %290 = vmatprep.subr.bf16.mxu0 0
      %291 = vmatpush1.bf16.msra.mxu0 0
      %292 = vmatprep.subr.bf16.mxu0 0
      %293 = vmatpush1.bf16.msra.mxu0 0
      %294 = vmatprep.subr.bf16.mxu0 0
      %295 = vmatpush1.bf16.msra.mxu0 0
      %296 = vmatprep.subr.bf16.mxu0 0
      %297 = vmatpush1.bf16.msra.mxu0 0
      %298 = vmatprep.subr.bf16.mxu0 0
      %299 = vmatpush1.bf16.msra.mxu0 0
      %300 = vmatprep.subr.bf16.mxu0 0
      %301 = vmatpush1.bf16.msra.mxu0 %v203
      %302 = vmatprep.subr.bf16.mxu0 0
      %303 = vmatpush1.bf16.msra.mxu0 %v202
      %304 = vmatprep.subr.bf16.mxu0 0
      %305 = vmatpush2.bf16.msra.mxu0 0
      %306 = vmatprep.subr.bf16.mxu0 0
      %307 = vmatpush2.bf16.msra.mxu0 0
      %308 = vmatprep.subr.bf16.mxu0 0
      %309 = vmatpush2.bf16.msra.mxu0 0
      %310 = vmatprep.subr.bf16.mxu0 0
      %311 = vmatpush2.bf16.msra.mxu0 0
      %312 = vmatprep.subr.bf16.mxu0 0
      %313 = vmatpush2.bf16.msra.mxu0 0
      %314 = vmatprep.subr.bf16.mxu0 0
      %315 = vmatpush2.bf16.msra.mxu0 0
      %316 = vmatprep.subr.bf16.mxu0 0
      %317 = vmatpush2.bf16.msra.mxu0 0
      %318 = vmatprep.subr.bf16.mxu0 0
      %319 = vmatpush2.bf16.msra.mxu0 0
      %320 = vmatprep.mubr.bf16.mxu0 0
      %321 = vmatmul.mubr.bf16.gmra.mxu0 %v286
      %v322 = vpop.f32.mrf.mxu0
      %v323 = vadd.f32 0.0, %v322
      %v324 = vpop.f32.mrf.mxu0
      %v325 = vpop.f32.mrf.mxu0
      %v326 = vpop.f32.mrf.mxu0
      %327 = vdwg.mxu0
      %v328 = vadd.f32 %v280, %v323
      %v329 = vxor.u32 %v328, 2147483648
      %v330 = vmul.f32 %v329, 1.442695
      %v331 = vpow.pop %v330
      %v332 = vadd.f32 %v331, 1.0
      %v333 = vrcp.pop %v332
      %v334 = vmul.f32 1.0, %v333
      %v335 = vtanh.pop %v328
      %v336 = vmul.f32 %v334, %v272
      %338 = vrot.lane.b32.xlu0 %v335, 64
      %v339 = vpop.permute.xlu0 %338
      %v341 = vmul.f32 %v334, %v339
      %343 = vrot.lane.b32.xlu0 %v341, 32
      %v344 = vpop.permute.xlu0 %343
      %v346 = vadd.f32 %v336, %v344
      %v347 = vtanh.pop %v346
      %349 = vrot.lane.b32.xlu0 %v347, 64
      %v350 = vpop.permute.xlu0 %349
      %v352 = vmul.f32 %v334, %v350
      %v353 = vmax.f32 %v278, %v352
      %v354 = vpack.c.bf16 %v353, %v353
      %v356 = vunpack.c.l.b16 %v354
      %v357 = vpack.c.b16 %v356, %v356
      %358 = vrot.lane.b32.xlu0 %v357, 32
      %v359 = vpop.permute.xlu0 %358
      %vm361 = vcmask 257024
      %362 = vst.msk [vmem:[%s176] sm:$0xf] %vm361, %v359
      %s363 = scalar_lea.vmem %s167, 16
      %v364 = vld [vmem:[%s363] sm:$0xff]
      %v365 = vpack.c.bf16 %v352, %v352
      %367 = vrot.lane.b32.xlu0 %v365, 32
      %v368 = vpop.permute.xlu0 %367
      %v370 = vsel %vm206, %v368, 0
      %372 = vmatprep.subr.bf16.mxu0 0
      %373 = vmatpush1.bf16.msra.mxu0 0
      %374 = vmatprep.subr.bf16.mxu0 0
      %375 = vmatpush1.bf16.msra.mxu0 0
      %376 = vmatprep.subr.bf16.mxu0 0
      %377 = vmatpush1.bf16.msra.mxu0 0
      %378 = vmatprep.subr.bf16.mxu0 0
      %379 = vmatpush1.bf16.msra.mxu0 0
      %380 = vmatprep.subr.bf16.mxu0 0
      %381 = vmatpush1.bf16.msra.mxu0 0
      %382 = vmatprep.subr.bf16.mxu0 0
      %383 = vmatpush1.bf16.msra.mxu0 0
      %384 = vmatprep.subr.bf16.mxu0 0
      %385 = vmatpush1.bf16.msra.mxu0 %v203
      %386 = vmatprep.subr.bf16.mxu0 0
      %387 = vmatpush1.bf16.msra.mxu0 %v202
      %388 = vmatprep.subr.bf16.mxu0 0
      %389 = vmatpush2.bf16.msra.mxu0 0
      %390 = vmatprep.subr.bf16.mxu0 0
      %391 = vmatpush2.bf16.msra.mxu0 0
      %392 = vmatprep.subr.bf16.mxu0 0
      %393 = vmatpush2.bf16.msra.mxu0 0
      %394 = vmatprep.subr.bf16.mxu0 0
      %395 = vmatpush2.bf16.msra.mxu0 0
      %396 = vmatprep.subr.bf16.mxu0 0
      %397 = vmatpush2.bf16.msra.mxu0 0
      %398 = vmatprep.subr.bf16.mxu0 0
      %399 = vmatpush2.bf16.msra.mxu0 0
      %400 = vmatprep.subr.bf16.mxu0 0
      %401 = vmatpush2.bf16.msra.mxu0 0
      %402 = vmatprep.subr.bf16.mxu0 0
      %403 = vmatpush2.bf16.msra.mxu0 0
      %404 = vmatprep.mubr.bf16.mxu0 0
      %405 = vmatmul.mubr.bf16.gmra.mxu0 %v370
      %v406 = vpop.f32.mrf.mxu0
      %v407 = vadd.f32 0.0, %v406
      %v408 = vpop.f32.mrf.mxu0
      %v409 = vpop.f32.mrf.mxu0
      %v410 = vpop.f32.mrf.mxu0
      %411 = vdwg.mxu0
      %v412 = vadd.f32 %v364, %v407
      %v413 = vxor.u32 %v412, 2147483648
      %v414 = vmul.f32 %v413, 1.442695
      %v415 = vpow.pop %v414
      %v416 = vadd.f32 %v415, 1.0
      %v417 = vrcp.pop %v416
      %v418 = vmul.f32 1.0, %v417
      %v419 = vtanh.pop %v412
      %v420 = vmul.f32 %v418, %v346
      %422 = vrot.lane.b32.xlu0 %v419, 64
      %v423 = vpop.permute.xlu0 %422
      %v425 = vmul.f32 %v418, %v423
      %427 = vrot.lane.b32.xlu0 %v425, 32
      %v428 = vpop.permute.xlu0 %427
      %v430 = vadd.f32 %v420, %v428
      %v431 = vtanh.pop %v430
      %433 = vrot.lane.b32.xlu0 %v431, 64
      %v434 = vpop.permute.xlu0 %433
      %v436 = vmul.f32 %v418, %v434
      %s437 = scalar_lea.vmem %s167, 24
      %v438 = vld [vmem:[%s437] sm:$0xff]
      %v439 = vpack.c.bf16 %v436, %v436
      %441 = vrot.lane.b32.xlu0 %v439, 32
      %v442 = vpop.permute.xlu0 %441
      %v444 = vsel %vm206, %v442, 0
      %446 = vmatprep.subr.bf16.mxu0 0
      %447 = vmatpush1.bf16.msra.mxu0 0
      %448 = vmatprep.subr.bf16.mxu0 0
      %449 = vmatpush1.bf16.msra.mxu0 0
      %450 = vmatprep.subr.bf16.mxu0 0
      %451 = vmatpush1.bf16.msra.mxu0 0
      %452 = vmatprep.subr.bf16.mxu0 0
      %453 = vmatpush1.bf16.msra.mxu0 0
      %454 = vmatprep.subr.bf16.mxu0 0
      %455 = vmatpush1.bf16.msra.mxu0 0
      %456 = vmatprep.subr.bf16.mxu0 0
      %457 = vmatpush1.bf16.msra.mxu0 0
      %458 = vmatprep.subr.bf16.mxu0 0
      %459 = vmatpush1.bf16.msra.mxu0 %v203
      %460 = vmatprep.subr.bf16.mxu0 0
      %461 = vmatpush1.bf16.msra.mxu0 %v202
      %462 = vmatprep.subr.bf16.mxu0 0
      %463 = vmatpush2.bf16.msra.mxu0 0
      %464 = vmatprep.subr.bf16.mxu0 0
      %465 = vmatpush2.bf16.msra.mxu0 0
      %466 = vmatprep.subr.bf16.mxu0 0
      %467 = vmatpush2.bf16.msra.mxu0 0
      %468 = vmatprep.subr.bf16.mxu0 0
      %469 = vmatpush2.bf16.msra.mxu0 0
      %470 = vmatprep.subr.bf16.mxu0 0
      %471 = vmatpush2.bf16.msra.mxu0 0
      %472 = vmatprep.subr.bf16.mxu0 0
      %473 = vmatpush2.bf16.msra.mxu0 0
      %474 = vmatprep.subr.bf16.mxu0 0
      %475 = vmatpush2.bf16.msra.mxu0 0
      %476 = vmatprep.subr.bf16.mxu0 0
      %477 = vmatpush2.bf16.msra.mxu0 0
      %478 = vmatprep.mubr.bf16.mxu0 0
      %479 = vmatmul.mubr.bf16.gmra.mxu0 %v444
      %v480 = vpop.f32.mrf.mxu0
      %v481 = vadd.f32 0.0, %v480
      %v482 = vpop.f32.mrf.mxu0
      %v483 = vpop.f32.mrf.mxu0
      %v484 = vpop.f32.mrf.mxu0
      %485 = vdwg.mxu0
      %v486 = vadd.f32 %v438, %v481
      %v487 = vxor.u32 %v486, 2147483648
      %v488 = vmul.f32 %v487, 1.442695
      %v489 = vpow.pop %v488
      %v490 = vadd.f32 %v489, 1.0
      %v491 = vrcp.pop %v490
      %v492 = vmul.f32 1.0, %v491
      %v493 = vtanh.pop %v486
      %v494 = vmul.f32 %v492, %v430
      %496 = vrot.lane.b32.xlu0 %v493, 64
      %v497 = vpop.permute.xlu0 %496
      %v499 = vmul.f32 %v492, %v497
      %501 = vrot.lane.b32.xlu0 %v499, 32
      %v502 = vpop.permute.xlu0 %501
      %v504 = vadd.f32 %v494, %v502
      %v505 = vtanh.pop %v504
      %507 = vrot.lane.b32.xlu0 %v505, 64
      %v508 = vpop.permute.xlu0 %507
      %v510 = vmul.f32 %v492, %v508
      %v511 = vmax.f32 %v436, %v510
      %v512 = vpack.c.bf16 %v511, %v511
      %v514 = vunpack.c.l.b16 %v512
      %v515 = vpack.c.b16 %v514, %v514
      %516 = vrot.lane.b32.xlu0 %v515, 32
      %v517 = vpop.permute.xlu0 %516
      %s519 = scalar_lea.vmem %s176, 4
      %520 = vst.msk [vmem:[%s519] sm:$0xf] %vm361, %v517
      %s521 = scalar_lea.vmem %s167, 32
      %v522 = vld [vmem:[%s521] sm:$0xff]
      %v523 = vpack.c.bf16 %v510, %v510
      %525 = vrot.lane.b32.xlu0 %v523, 32
      %v526 = vpop.permute.xlu0 %525
      %v528 = vsel %vm206, %v526, 0
      %530 = vmatprep.subr.bf16.mxu0 0
      %531 = vmatpush1.bf16.msra.mxu0 0
      %532 = vmatprep.subr.bf16.mxu0 0
      %533 = vmatpush1.bf16.msra.mxu0 0
      %534 = vmatprep.subr.bf16.mxu0 0
      %535 = vmatpush1.bf16.msra.mxu0 0
      %536 = vmatprep.subr.bf16.mxu0 0
      %537 = vmatpush1.bf16.msra.mxu0 0
      %538 = vmatprep.subr.bf16.mxu0 0
      %539 = vmatpush1.bf16.msra.mxu0 0
      %540 = vmatprep.subr.bf16.mxu0 0
      %541 = vmatpush1.bf16.msra.mxu0 0
      %542 = vmatprep.subr.bf16.mxu0 0
      %543 = vmatpush1.bf16.msra.mxu0 %v203
      %544 = vmatprep.subr.bf16.mxu0 0
      %545 = vmatpush1.bf16.msra.mxu0 %v202
      %546 = vmatprep.subr.bf16.mxu0 0
      %547 = vmatpush2.bf16.msra.mxu0 0
      %548 = vmatprep.subr.bf16.mxu0 0
      %549 = vmatpush2.bf16.msra.mxu0 0
      %550 = vmatprep.subr.bf16.mxu0 0
      %551 = vmatpush2.bf16.msra.mxu0 0
      %552 = vmatprep.subr.bf16.mxu0 0
      %553 = vmatpush2.bf16.msra.mxu0 0
      %554 = vmatprep.subr.bf16.mxu0 0
      %555 = vmatpush2.bf16.msra.mxu0 0
      %556 = vmatprep.subr.bf16.mxu0 0
      %557 = vmatpush2.bf16.msra.mxu0 0
      %558 = vmatprep.subr.bf16.mxu0 0
      %559 = vmatpush2.bf16.msra.mxu0 0
      %560 = vmatprep.subr.bf16.mxu0 0
      %561 = vmatpush2.bf16.msra.mxu0 0
      %562 = vmatprep.mubr.bf16.mxu0 0
      %563 = vmatmul.mubr.bf16.gmra.mxu0 %v528
      %v564 = vpop.f32.mrf.mxu0
      %v565 = vadd.f32 0.0, %v564
      %v566 = vpop.f32.mrf.mxu0
      %v567 = vpop.f32.mrf.mxu0
      %v568 = vpop.f32.mrf.mxu0
      %569 = vdwg.mxu0
      %v570 = vadd.f32 %v522, %v565
      %v571 = vxor.u32 %v570, 2147483648
      %v572 = vmul.f32 %v571, 1.442695
      %v573 = vpow.pop %v572
      %v574 = vadd.f32 %v573, 1.0
      %v575 = vrcp.pop %v574
      %v576 = vmul.f32 1.0, %v575
      %v577 = vtanh.pop %v570
      %v578 = vmul.f32 %v576, %v504
      %580 = vrot.lane.b32.xlu0 %v577, 64
      %v581 = vpop.permute.xlu0 %580
      %v583 = vmul.f32 %v576, %v581
      %585 = vrot.lane.b32.xlu0 %v583, 32
      %v586 = vpop.permute.xlu0 %585
      %v588 = vadd.f32 %v578, %v586
      %v589 = vtanh.pop %v588
      %591 = vrot.lane.b32.xlu0 %v589, 64
      %v592 = vpop.permute.xlu0 %591
      %v594 = vmul.f32 %v576, %v592
      %s595 = scalar_lea.vmem %s167, 40
      %v596 = vld [vmem:[%s595] sm:$0xff]
      %v597 = vpack.c.bf16 %v594, %v594
      %599 = vrot.lane.b32.xlu0 %v597, 32
      %v600 = vpop.permute.xlu0 %599
      %v602 = vsel %vm206, %v600, 0
      %604 = vmatprep.subr.bf16.mxu0 0
      %605 = vmatpush1.bf16.msra.mxu0 0
      %606 = vmatprep.subr.bf16.mxu0 0
      %607 = vmatpush1.bf16.msra.mxu0 0
      %608 = vmatprep.subr.bf16.mxu0 0
      %609 = vmatpush1.bf16.msra.mxu0 0
      %610 = vmatprep.subr.bf16.mxu0 0
      %611 = vmatpush1.bf16.msra.mxu0 0
      %612 = vmatprep.subr.bf16.mxu0 0
      %613 = vmatpush1.bf16.msra.mxu0 0
      %614 = vmatprep.subr.bf16.mxu0 0
      %615 = vmatpush1.bf16.msra.mxu0 0
      %616 = vmatprep.subr.bf16.mxu0 0
      %617 = vmatpush1.bf16.msra.mxu0 %v203
      %618 = vmatprep.subr.bf16.mxu0 0
      %619 = vmatpush1.bf16.msra.mxu0 %v202
      %620 = vmatprep.subr.bf16.mxu0 0
      %621 = vmatpush2.bf16.msra.mxu0 0
      %622 = vmatprep.subr.bf16.mxu0 0
      %623 = vmatpush2.bf16.msra.mxu0 0
      %624 = vmatprep.subr.bf16.mxu0 0
      %625 = vmatpush2.bf16.msra.mxu0 0
      %626 = vmatprep.subr.bf16.mxu0 0
      %627 = vmatpush2.bf16.msra.mxu0 0
      %628 = vmatprep.subr.bf16.mxu0 0
      %629 = vmatpush2.bf16.msra.mxu0 0
      %630 = vmatprep.subr.bf16.mxu0 0
      %631 = vmatpush2.bf16.msra.mxu0 0
      %632 = vmatprep.subr.bf16.mxu0 0
      %633 = vmatpush2.bf16.msra.mxu0 0
      %634 = vmatprep.subr.bf16.mxu0 0
      %635 = vmatpush2.bf16.msra.mxu0 0
      %636 = vmatprep.mubr.bf16.mxu0 0
      %637 = vmatmul.mubr.bf16.gmra.mxu0 %v602
      %v638 = vpop.f32.mrf.mxu0
      %v639 = vadd.f32 0.0, %v638
      %v640 = vpop.f32.mrf.mxu0
      %v641 = vpop.f32.mrf.mxu0
      %v642 = vpop.f32.mrf.mxu0
      %643 = vdwg.mxu0
      %v644 = vadd.f32 %v596, %v639
      %v645 = vxor.u32 %v644, 2147483648
      %v646 = vmul.f32 %v645, 1.442695
      %v647 = vpow.pop %v646
      %v648 = vadd.f32 %v647, 1.0
      %v649 = vrcp.pop %v648
      %v650 = vmul.f32 1.0, %v649
      %v651 = vtanh.pop %v644
      %v652 = vmul.f32 %v650, %v588
      %654 = vrot.lane.b32.xlu0 %v651, 64
      %v655 = vpop.permute.xlu0 %654
      %v657 = vmul.f32 %v650, %v655
      %659 = vrot.lane.b32.xlu0 %v657, 32
      %v660 = vpop.permute.xlu0 %659
      %v662 = vadd.f32 %v652, %v660
      %v663 = vtanh.pop %v662
      %665 = vrot.lane.b32.xlu0 %v663, 64
      %v666 = vpop.permute.xlu0 %665
      %v668 = vmul.f32 %v650, %v666
      %v669 = vmax.f32 %v594, %v668
      %v670 = vpack.c.bf16 %v669, %v669
      %v672 = vunpack.c.l.b16 %v670
      %v673 = vpack.c.b16 %v672, %v672
      %674 = vrot.lane.b32.xlu0 %v673, 32
      %v675 = vpop.permute.xlu0 %674
      %s677 = scalar_lea.vmem %s176, 8
      %678 = vst.msk [vmem:[%s677] sm:$0xf] %vm361, %v675
      %s679 = scalar_lea.vmem %s167, 48
      %v680 = vld [vmem:[%s679] sm:$0xff]
      %v681 = vpack.c.bf16 %v668, %v668
      %683 = vrot.lane.b32.xlu0 %v681, 32
      %v684 = vpop.permute.xlu0 %683
      %v686 = vsel %vm206, %v684, 0
      %688 = vmatprep.subr.bf16.mxu0 0
      %689 = vmatpush1.bf16.msra.mxu0 0
      %690 = vmatprep.subr.bf16.mxu0 0
      %691 = vmatpush1.bf16.msra.mxu0 0
      %692 = vmatprep.subr.bf16.mxu0 0
      %693 = vmatpush1.bf16.msra.mxu0 0
      %694 = vmatprep.subr.bf16.mxu0 0
      %695 = vmatpush1.bf16.msra.mxu0 0
      %696 = vmatprep.subr.bf16.mxu0 0
      %697 = vmatpush1.bf16.msra.mxu0 0
      %698 = vmatprep.subr.bf16.mxu0 0
      %699 = vmatpush1.bf16.msra.mxu0 0
      %700 = vmatprep.subr.bf16.mxu0 0
      %701 = vmatpush1.bf16.msra.mxu0 %v203
      %702 = vmatprep.subr.bf16.mxu0 0
      %703 = vmatpush1.bf16.msra.mxu0 %v202
      %704 = vmatprep.subr.bf16.mxu0 0
      %705 = vmatpush2.bf16.msra.mxu0 0
      %706 = vmatprep.subr.bf16.mxu0 0
      %707 = vmatpush2.bf16.msra.mxu0 0
      %708 = vmatprep.subr.bf16.mxu0 0
      %709 = vmatpush2.bf16.msra.mxu0 0
      %710 = vmatprep.subr.bf16.mxu0 0
      %711 = vmatpush2.bf16.msra.mxu0 0
      %712 = vmatprep.subr.bf16.mxu0 0
      %713 = vmatpush2.bf16.msra.mxu0 0
      %714 = vmatprep.subr.bf16.mxu0 0
      %715 = vmatpush2.bf16.msra.mxu0 0
      %716 = vmatprep.subr.bf16.mxu0 0
      %717 = vmatpush2.bf16.msra.mxu0 0
      %718 = vmatprep.subr.bf16.mxu0 0
      %719 = vmatpush2.bf16.msra.mxu0 0
      %720 = vmatprep.mubr.bf16.mxu0 0
      %721 = vmatmul.mubr.bf16.gmra.mxu0 %v686
      %v722 = vpop.f32.mrf.mxu0
      %v723 = vadd.f32 0.0, %v722
      %v724 = vpop.f32.mrf.mxu0
      %v725 = vpop.f32.mrf.mxu0
      %v726 = vpop.f32.mrf.mxu0
      %727 = vdwg.mxu0
      %v728 = vadd.f32 %v680, %v723
      %v729 = vxor.u32 %v728, 2147483648
      %v730 = vmul.f32 %v729, 1.442695
      %v731 = vpow.pop %v730
      %v732 = vadd.f32 %v731, 1.0
      %v733 = vrcp.pop %v732
      %v734 = vmul.f32 1.0, %v733
      %v735 = vtanh.pop %v728
      %v736 = vmul.f32 %v734, %v662
      %738 = vrot.lane.b32.xlu0 %v735, 64
      %v739 = vpop.permute.xlu0 %738
      %v741 = vmul.f32 %v734, %v739
      %743 = vrot.lane.b32.xlu0 %v741, 32
      %v744 = vpop.permute.xlu0 %743
      %v746 = vadd.f32 %v736, %v744
      %v747 = vtanh.pop %v746
      %749 = vrot.lane.b32.xlu0 %v747, 64
      %v750 = vpop.permute.xlu0 %749
      %v752 = vmul.f32 %v734, %v750
      %s753 = scalar_lea.vmem %s167, 56
      %v754 = vld [vmem:[%s753] sm:$0xff]
      %v755 = vpack.c.bf16 %v752, %v752
      %757 = vrot.lane.b32.xlu0 %v755, 32
      %v758 = vpop.permute.xlu0 %757
      %v760 = vsel %vm206, %v758, 0
      %762 = vmatprep.subr.bf16.mxu0 0
      %763 = vmatpush1.bf16.msra.mxu0 0
      %764 = vmatprep.subr.bf16.mxu0 0
      %765 = vmatpush1.bf16.msra.mxu0 0
      %766 = vmatprep.subr.bf16.mxu0 0
      %767 = vmatpush1.bf16.msra.mxu0 0
      %768 = vmatprep.subr.bf16.mxu0 0
      %769 = vmatpush1.bf16.msra.mxu0 0
      %770 = vmatprep.subr.bf16.mxu0 0
      %771 = vmatpush1.bf16.msra.mxu0 0
      %772 = vmatprep.subr.bf16.mxu0 0
      %773 = vmatpush1.bf16.msra.mxu0 0
      %774 = vmatprep.subr.bf16.mxu0 0
      %775 = vmatpush1.bf16.msra.mxu0 %v203
      %776 = vmatprep.subr.bf16.mxu0 0
      %777 = vmatpush1.bf16.msra.mxu0 %v202
      %778 = vmatprep.subr.bf16.mxu0 0
      %779 = vmatpush2.bf16.msra.mxu0 0
      %780 = vmatprep.subr.bf16.mxu0 0
      %781 = vmatpush2.bf16.msra.mxu0 0
      %782 = vmatprep.subr.bf16.mxu0 0
      %783 = vmatpush2.bf16.msra.mxu0 0
      %784 = vmatprep.subr.bf16.mxu0 0
      %785 = vmatpush2.bf16.msra.mxu0 0
      %786 = vmatprep.subr.bf16.mxu0 0
      %787 = vmatpush2.bf16.msra.mxu0 0
      %788 = vmatprep.subr.bf16.mxu0 0
      %789 = vmatpush2.bf16.msra.mxu0 0
      %790 = vmatprep.subr.bf16.mxu0 0
      %791 = vmatpush2.bf16.msra.mxu0 0
      %792 = vmatprep.subr.bf16.mxu0 0
      %793 = vmatpush2.bf16.msra.mxu0 0
      %794 = vmatprep.mubr.bf16.mxu0 0
      %795 = vmatmul.mubr.bf16.gmra.mxu0 %v760
      %v796 = vpop.f32.mrf.mxu0
      %v797 = vadd.f32 0.0, %v796
      %v798 = vpop.f32.mrf.mxu0
      %v799 = vpop.f32.mrf.mxu0
      %v800 = vpop.f32.mrf.mxu0
      %801 = vdwg.mxu0
      %v802 = vadd.f32 %v754, %v797
      %v803 = vxor.u32 %v802, 2147483648
      %v804 = vmul.f32 %v803, 1.442695
      %v805 = vpow.pop %v804
      %v806 = vadd.f32 %v805, 1.0
      %v807 = vrcp.pop %v806
      %v808 = vmul.f32 1.0, %v807
      %v809 = vtanh.pop %v802
      %v810 = vmul.f32 %v808, %v746
      %812 = vrot.lane.b32.xlu0 %v809, 64
      %v813 = vpop.permute.xlu0 %812
      %v815 = vmul.f32 %v808, %v813
      %817 = vrot.lane.b32.xlu0 %v815, 32
      %v818 = vpop.permute.xlu0 %817
      %v820 = vadd.f32 %v810, %v818
      %v821 = vtanh.pop %v820
      %823 = vrot.lane.b32.xlu0 %v821, 64
      %v824 = vpop.permute.xlu0 %823
      %v826 = vmul.f32 %v808, %v824
      %v827 = vmax.f32 %v752, %v826
      %v828 = vpack.c.bf16 %v827, %v827
      %v830 = vunpack.c.l.b16 %v828
      %v831 = vpack.c.b16 %v830, %v830
      %832 = vrot.lane.b32.xlu0 %v831, 32
      %v833 = vpop.permute.xlu0 %832
      %s835 = scalar_lea.vmem %s176, 12
      %836 = vst.msk [vmem:[%s835] sm:$0xf] %vm361, %v833
      %838 = vrot.lane.b32.xlu0 %v826, 32
      %v839 = vpop.permute.xlu0 %838
      %841 = vst.msk [vmem:[#allocation2] sm:$0xff] %vm206, %v839
      %843 = vrot.lane.b32.xlu0 %v820, 96
      %v844 = vpop.permute.xlu0 %843
      %846 = vst.msk [vmem:[#allocation3] sm:$0xff] %vm206, %v844
      %s847 = smul.u32 4, %s18
      %p848 = scmp.lt.s32.totalorder %s847, 7
      %s849 = scalar_select %p848, %s847, 7
      %p850 = scmp.lt.s32.totalorder %s17, 0
      %s851 = scalar_select %p850, %s17, 0
      %s852 = sadd.s32 %s851, %s849
      %s853 = smul.addr %s852, 4
      %s854 = scalar_lea.vmem %s2, %s853
      // Predicated region
      $region33: #{asr_forward.11} parent=27 // pred_check
        %p855 = pneg %p94
      $region34: #{asr_forward.11} parent=27 // pred_check_branch
        %857 = sbr.rel (%p855) target = $region36
      $region35: #{asr_forward.11} parent=27 // pred_region
        %s858 = smul.u32 4, %s18
      $region36: #{asr_forward.11} parent=27 // pred_fallthru
        _
    $region28: #{asr_forward.11} parent=5 // pred_fallthru
      _
    %p859 = scmp.le.s32.totalorder 2, %s8
    // Predicated region
    $region37: #{asr_forward.11} parent=5 // pred_check
      %p860 = pneg %p859
    $region38: #{asr_forward.11} parent=5 // pred_check_branch
      %862 = sbr.rel (%p860) target = $region40
    $region39: #{asr_forward.11} parent=5 // pred_region
      %s863 = ssub.s32 %s8, 2
      // Predicated region
      $region41: #{asr_forward.11} parent=39 // pred_check
        %p864 = pneg %p100
      $region42: #{asr_forward.11} parent=39 // pred_check_branch
        %866 = sbr.rel (%p864) target = $region44
      $region43: #{asr_forward.11} parent=39 // pred_region
        %s867 = smul.u32 4, %s20
        %p868 = scmp.lt.s32.totalorder %s867, 7
        %s869 = scalar_select %p868, %s867, 7
        %p870 = scmp.lt.s32.totalorder %s19, 0
        %s871 = scalar_select %p870, %s19, 0
        %s872 = sadd.s32 %s871, %s869
        %s873 = smul.addr %s872, 4
        %s874 = scalar_lea.vmem %s2, %s873
      $region44: #{asr_forward.11} parent=39 // pred_fallthru
        _
    $region40: #{asr_forward.11} parent=5 // pred_fallthru
      _
  $region6: #{asr_forward.11} parent=0 // loop_footer
    %s12 = sadd.s32 1, %s8
  $region7: #{asr_forward.11} parent=0 // loop_footer_branch
    %7 = sbr.rel target = $region3
  $region8: #{asr_forward.11} parent=0 // loop_exit
    _

// kernel: asr_forward.13
$region0: #{asr_forward.13}
  #allocation0 [shape = 'u32[]', space=smem, size = 0x4, offset = 0x4, fixed_abs, tag = 'smem constant byte address 0x4 - core index']
  #allocation1 [shape = 'u32[144,128]{1,0:T(1,128)}', space=vmem, size = 0x12000, scoped, tag = 'internal scratch']
  #allocation2 [shape = 'f32[8,32]{1,0:T(8,128)}', space=vmem, size = 0x1000, scoped, tag = 'scratch operand']
  #allocation3 [shape = 'f32[8,32]{1,0:T(8,128)}', space=vmem, size = 0x1000, scoped, tag = 'scratch operand']
  %s0 = inlined_call_operand.vmem [shape: f32[8,8,128], index: 0, kind: input, shape index: {}]
  %s1 = inlined_call_operand.vmem [shape: bf16[32,128], index: 1, kind: input, shape index: {}]
  %s2 = inlined_call_operand.vmem [shape: bf16[4,8,32], index: 2, kind: output, shape index: {}]
  %s3 = sld [smem:[#allocation0]]
  $region22: #{asr_forward.13} parent=0
    _
  %s5 = ssub.s32 1, %s3
  %s6 = scalar_select 0, %s5, %s3
  // Predicated region
  $region2: #{asr_forward.13} parent=0 // pred_check
    _
  $region3: #{asr_forward.13} parent=0 // pred_check_branch
    %8 = sbr.rel (0) target = $region5
  $region4: #{asr_forward.13} parent=0 // pred_region
    _
  $region5: #{asr_forward.13} parent=0 // pred_fallthru
    _
  // Predicated region
  $region6: #{asr_forward.13} parent=0 // pred_check
    _
  $region7: #{asr_forward.13} parent=0 // pred_check_branch
    %10 = sbr.rel (0) target = $region9
  $region8: #{asr_forward.13} parent=0 // pred_region
    _
  $region9: #{asr_forward.13} parent=0 // pred_fallthru
    _
  %p12 = scmp.eq.s32.totalorder 0, 0
  // Predicated region
  $region10: #{asr_forward.13} parent=0 // pred_check
    %p13 = pneg %p12
  $region11: #{asr_forward.13} parent=0 // pred_check_branch
    %15 = sbr.rel (%p13) target = $region13
  $region12: #{asr_forward.13} parent=0 // pred_region
    %vm16 = vcmask 261120
    %17 = vst.msk [vmem:[#allocation2] sm:$0xff] %vm16, 0.0
    %18 = vst.msk [vmem:[#allocation3] sm:$0xff] %vm16, 0.0
  $region13: #{asr_forward.13} parent=0 // pred_fallthru
    _
  %v19 = vld [vmem:[%s1] sm:$0xf]
  %v20 = vld [vmem:[%s1 + $0x4] sm:$0xf]
  %v21 = vld [vmem:[%s1 + $0x8] sm:$0xf]
  %v22 = vld [vmem:[%s1 + $0xc] sm:$0xf]
  %v23 = vld [vmem:[#allocation2] sm:$0xff]
  %v24 = vld [vmem:[#allocation3] sm:$0xff]
  %v25 = vld [vmem:[%s0] sm:$0xff]
  %v26 = vpack.c.bf16 %v23, %v23
  %v31 = vunpack.c.l.b16 %v19
  %v32 = vunpack.c.l.b16 %v20
  %v33 = vunpack.c.l.b16 %v21
  %v34 = vunpack.c.l.b16 %v22
  %v35 = vpack.c.b16 %v32, %v31
  %v36 = vpack.c.b16 %v34, %v33
  %vm39 = vcmask 261120
  %v41 = vsel %vm39, %v26, 0
  %43 = vmatprep.subr.bf16.mxu0 0
  %44 = vmatpush1.bf16.msra.mxu0 0
  %45 = vmatprep.subr.bf16.mxu0 0
  %46 = vmatpush1.bf16.msra.mxu0 0
  %47 = vmatprep.subr.bf16.mxu0 0
  %48 = vmatpush1.bf16.msra.mxu0 0
  %49 = vmatprep.subr.bf16.mxu0 0
  %50 = vmatpush1.bf16.msra.mxu0 0
  %51 = vmatprep.subr.bf16.mxu0 0
  %52 = vmatpush1.bf16.msra.mxu0 0
  %53 = vmatprep.subr.bf16.mxu0 0
  %54 = vmatpush1.bf16.msra.mxu0 0
  %55 = vmatprep.subr.bf16.mxu0 0
  %56 = vmatpush1.bf16.msra.mxu0 %v36
  %57 = vmatprep.subr.bf16.mxu0 0
  %58 = vmatpush1.bf16.msra.mxu0 %v35
  %59 = vmatprep.subr.bf16.mxu0 0
  %60 = vmatpush2.bf16.msra.mxu0 0
  %61 = vmatprep.subr.bf16.mxu0 0
  %62 = vmatpush2.bf16.msra.mxu0 0
  %63 = vmatprep.subr.bf16.mxu0 0
  %64 = vmatpush2.bf16.msra.mxu0 0
  %65 = vmatprep.subr.bf16.mxu0 0
  %66 = vmatpush2.bf16.msra.mxu0 0
  %67 = vmatprep.subr.bf16.mxu0 0
  %68 = vmatpush2.bf16.msra.mxu0 0
  %69 = vmatprep.subr.bf16.mxu0 0
  %70 = vmatpush2.bf16.msra.mxu0 0
  %71 = vmatprep.subr.bf16.mxu0 0
  %72 = vmatpush2.bf16.msra.mxu0 0
  %73 = vmatprep.subr.bf16.mxu0 0
  %74 = vmatpush2.bf16.msra.mxu0 0
  %75 = vmatprep.mubr.bf16.mxu0 0
  %76 = vmatmul.mubr.bf16.gmra.mxu0 %v41
  %v77 = vpop.f32.mrf.mxu0
  %v78 = vadd.f32 0.0, %v77
  %v79 = vpop.f32.mrf.mxu0
  %v80 = vpop.f32.mrf.mxu0
  %v81 = vpop.f32.mrf.mxu0
  %82 = vdwg.mxu0
  %v83 = vadd.f32 %v25, %v78
  %v84 = vxor.u32 %v83, 2147483648
  %v85 = vmul.f32 %v84, 1.442695
  %v86 = vpow.pop %v85
  %v87 = vadd.f32 %v86, 1.0
  %v88 = vrcp.pop %v87
  %v89 = vmul.f32 1.0, %v88
  %v90 = vtanh.pop %v83
  %92 = vrot.lane.b32.xlu0 %v24, 32
  %v93 = vpop.permute.xlu0 %92
  %v95 = vmul.f32 %v89, %v93
  %97 = vrot.lane.b32.xlu0 %v90, 64
  %v98 = vpop.permute.xlu0 %97
  %v100 = vmul.f32 %v89, %v98
  %102 = vrot.lane.b32.xlu0 %v100, 32
  %v103 = vpop.permute.xlu0 %102
  %v105 = vadd.f32 %v95, %v103
  %v106 = vtanh.pop %v105
  %108 = vrot.lane.b32.xlu0 %v106, 64
  %v109 = vpop.permute.xlu0 %108
  %v111 = vmul.f32 %v89, %v109
  %s112 = scalar_lea.vmem %s0, 8
  %v113 = vld [vmem:[%s112] sm:$0xff]
  %v114 = vpack.c.bf16 %v111, %v111
  %116 = vrot.lane.b32.xlu0 %v114, 32
  %v117 = vpop.permute.xlu0 %116
  %v119 = vsel %vm39, %v117, 0
  %121 = vmatprep.subr.bf16.mxu0 0
  %122 = vmatpush1.bf16.msra.mxu0 0
  %123 = vmatprep.subr.bf16.mxu0 0
  %124 = vmatpush1.bf16.msra.mxu0 0
  %125 = vmatprep.subr.bf16.mxu0 0
  %126 = vmatpush1.bf16.msra.mxu0 0
  %127 = vmatprep.subr.bf16.mxu0 0
  %128 = vmatpush1.bf16.msra.mxu0 0
  %129 = vmatprep.subr.bf16.mxu0 0
  %130 = vmatpush1.bf16.msra.mxu0 0
  %131 = vmatprep.subr.bf16.mxu0 0
  %132 = vmatpush1.bf16.msra.mxu0 0
  %133 = vmatprep.subr.bf16.mxu0 0
  %134 = vmatpush1.bf16.msra.mxu0 %v36
  %135 = vmatprep.subr.bf16.mxu0 0
  %136 = vmatpush1.bf16.msra.mxu0 %v35
  %137 = vmatprep.subr.bf16.mxu0 0
  %138 = vmatpush2.bf16.msra.mxu0 0
  %139 = vmatprep.subr.bf16.mxu0 0
  %140 = vmatpush2.bf16.msra.mxu0 0
  %141 = vmatprep.subr.bf16.mxu0 0
  %142 = vmatpush2.bf16.msra.mxu0 0
  %143 = vmatprep.subr.bf16.mxu0 0
  %144 = vmatpush2.bf16.msra.mxu0 0
  %145 = vmatprep.subr.bf16.mxu0 0
  %146 = vmatpush2.bf16.msra.mxu0 0
  %147 = vmatprep.subr.bf16.mxu0 0
  %148 = vmatpush2.bf16.msra.mxu0 0
  %149 = vmatprep.subr.bf16.mxu0 0
  %150 = vmatpush2.bf16.msra.mxu0 0
  %151 = vmatprep.subr.bf16.mxu0 0
  %152 = vmatpush2.bf16.msra.mxu0 0
  %153 = vmatprep.mubr.bf16.mxu0 0
  %154 = vmatmul.mubr.bf16.gmra.mxu0 %v119
  %v155 = vpop.f32.mrf.mxu0
  %v156 = vadd.f32 0.0, %v155
  %v157 = vpop.f32.mrf.mxu0
  %v158 = vpop.f32.mrf.mxu0
  %v159 = vpop.f32.mrf.mxu0
  %160 = vdwg.mxu0
  %v161 = vadd.f32 %v113, %v156
  %v162 = vxor.u32 %v161, 2147483648
  %v163 = vmul.f32 %v162, 1.442695
  %v164 = vpow.pop %v163
  %v165 = vadd.f32 %v164, 1.0
  %v166 = vrcp.pop %v165
  %v167 = vmul.f32 1.0, %v166
  %v168 = vtanh.pop %v161
  %v169 = vmul.f32 %v167, %v105
  %171 = vrot.lane.b32.xlu0 %v168, 64
  %v172 = vpop.permute.xlu0 %171
  %v174 = vmul.f32 %v167, %v172
  %176 = vrot.lane.b32.xlu0 %v174, 32
  %v177 = vpop.permute.xlu0 %176
  %v179 = vadd.f32 %v169, %v177
  %v180 = vtanh.pop %v179
  %182 = vrot.lane.b32.xlu0 %v180, 64
  %v183 = vpop.permute.xlu0 %182
  %v185 = vmul.f32 %v167, %v183
  %v186 = vmax.f32 %v111, %v185
  %v187 = vpack.c.bf16 %v186, %v186
  %v189 = vunpack.c.l.b16 %v187
  %v190 = vpack.c.b16 %v189, %v189
  %191 = vrot.lane.b32.xlu0 %v190, 32
  %v192 = vpop.permute.xlu0 %191
  %vm194 = vcmask 257024
  %195 = vst.msk [vmem:[%s2] sm:$0xf] %vm194, %v192
  %s196 = scalar_lea.vmem %s0, 16
  %v197 = vld [vmem:[%s196] sm:$0xff]
  %v198 = vpack.c.bf16 %v185, %v185
  %200 = vrot.lane.b32.xlu0 %v198, 32
  %v201 = vpop.permute.xlu0 %200
  %v203 = vsel %vm39, %v201, 0
  %205 = vmatprep.subr.bf16.mxu0 0
  %206 = vmatpush1.bf16.msra.mxu0 0
  %207 = vmatprep.subr.bf16.mxu0 0
  %208 = vmatpush1.bf16.msra.mxu0 0
  %209 = vmatprep.subr.bf16.mxu0 0
  %210 = vmatpush1.bf16.msra.mxu0 0
  %211 = vmatprep.subr.bf16.mxu0 0
  %212 = vmatpush1.bf16.msra.mxu0 0
  %213 = vmatprep.subr.bf16.mxu0 0
  %214 = vmatpush1.bf16.msra.mxu0 0
  %215 = vmatprep.subr.bf16.mxu0 0
  %216 = vmatpush1.bf16.msra.mxu0 0
  %217 = vmatprep.subr.bf16.mxu0 0
  %218 = vmatpush1.bf16.msra.mxu0 %v36
  %219 = vmatprep.subr.bf16.mxu0 0
  %220 = vmatpush1.bf16.msra.mxu0 %v35
  %221 = vmatprep.subr.bf16.mxu0 0
  %222 = vmatpush2.bf16.msra.mxu0 0
  %223 = vmatprep.subr.bf16.mxu0 0
  %224 = vmatpush2.bf16.msra.mxu0 0
  %225 = vmatprep.subr.bf16.mxu0 0
  %226 = vmatpush2.bf16.msra.mxu0 0
  %227 = vmatprep.subr.bf16.mxu0 0
  %228 = vmatpush2.bf16.msra.mxu0 0
  %229 = vmatprep.subr.bf16.mxu0 0
  %230 = vmatpush2.bf16.msra.mxu0 0
  %231 = vmatprep.subr.bf16.mxu0 0
  %232 = vmatpush2.bf16.msra.mxu0 0
  %233 = vmatprep.subr.bf16.mxu0 0
  %234 = vmatpush2.bf16.msra.mxu0 0
  %235 = vmatprep.subr.bf16.mxu0 0
  %236 = vmatpush2.bf16.msra.mxu0 0
  %237 = vmatprep.mubr.bf16.mxu0 0
  %238 = vmatmul.mubr.bf16.gmra.mxu0 %v203
  %v239 = vpop.f32.mrf.mxu0
  %v240 = vadd.f32 0.0, %v239
  %v241 = vpop.f32.mrf.mxu0
  %v242 = vpop.f32.mrf.mxu0
  %v243 = vpop.f32.mrf.mxu0
  %244 = vdwg.mxu0
  %v245 = vadd.f32 %v197, %v240
  %v246 = vxor.u32 %v245, 2147483648
  %v247 = vmul.f32 %v246, 1.442695
  %v248 = vpow.pop %v247
  %v249 = vadd.f32 %v248, 1.0
  %v250 = vrcp.pop %v249
  %v251 = vmul.f32 1.0, %v250
  %v252 = vtanh.pop %v245
  %v253 = vmul.f32 %v251, %v179
  %255 = vrot.lane.b32.xlu0 %v252, 64
  %v256 = vpop.permute.xlu0 %255
  %v258 = vmul.f32 %v251, %v256
  %260 = vrot.lane.b32.xlu0 %v258, 32
  %v261 = vpop.permute.xlu0 %260
  %v263 = vadd.f32 %v253, %v261
  %v264 = vtanh.pop %v263
  %266 = vrot.lane.b32.xlu0 %v264, 64
  %v267 = vpop.permute.xlu0 %266
  %v269 = vmul.f32 %v251, %v267
  %s270 = scalar_lea.vmem %s0, 24
  %v271 = vld [vmem:[%s270] sm:$0xff]
  %v272 = vpack.c.bf16 %v269, %v269
  %274 = vrot.lane.b32.xlu0 %v272, 32
  %v275 = vpop.permute.xlu0 %274
  %v277 = vsel %vm39, %v275, 0
  %279 = vmatprep.subr.bf16.mxu0 0
  %280 = vmatpush1.bf16.msra.mxu0 0
  %281 = vmatprep.subr.bf16.mxu0 0
  %282 = vmatpush1.bf16.msra.mxu0 0
  %283 = vmatprep.subr.bf16.mxu0 0
  %284 = vmatpush1.bf16.msra.mxu0 0
  %285 = vmatprep.subr.bf16.mxu0 0
  %286 = vmatpush1.bf16.msra.mxu0 0
  %287 = vmatprep.subr.bf16.mxu0 0
  %288 = vmatpush1.bf16.msra.mxu0 0
  %289 = vmatprep.subr.bf16.mxu0 0
  %290 = vmatpush1.bf16.msra.mxu0 0
  %291 = vmatprep.subr.bf16.mxu0 0
  %292 = vmatpush1.bf16.msra.mxu0 %v36
  %293 = vmatprep.subr.bf16.mxu0 0
  %294 = vmatpush1.bf16.msra.mxu0 %v35
  %295 = vmatprep.subr.bf16.mxu0 0
  %296 = vmatpush2.bf16.msra.mxu0 0
  %297 = vmatprep.subr.bf16.mxu0 0
  %298 = vmatpush2.bf16.msra.mxu0 0
  %299 = vmatprep.subr.bf16.mxu0 0
  %300 = vmatpush2.bf16.msra.mxu0 0
  %301 = vmatprep.subr.bf16.mxu0 0
  %302 = vmatpush2.bf16.msra.mxu0 0
  %303 = vmatprep.subr.bf16.mxu0 0
  %304 = vmatpush2.bf16.msra.mxu0 0
  %305 = vmatprep.subr.bf16.mxu0 0
  %306 = vmatpush2.bf16.msra.mxu0 0
  %307 = vmatprep.subr.bf16.mxu0 0
  %308 = vmatpush2.bf16.msra.mxu0 0
  %309 = vmatprep.subr.bf16.mxu0 0
  %310 = vmatpush2.bf16.msra.mxu0 0
  %311 = vmatprep.mubr.bf16.mxu0 0
  %312 = vmatmul.mubr.bf16.gmra.mxu0 %v277
  %v313 = vpop.f32.mrf.mxu0
  %v314 = vadd.f32 0.0, %v313
  %v315 = vpop.f32.mrf.mxu0
  %v316 = vpop.f32.mrf.mxu0
  %v317 = vpop.f32.mrf.mxu0
  %318 = vdwg.mxu0
  %v319 = vadd.f32 %v271, %v314
  %v320 = vxor.u32 %v319, 2147483648
  %v321 = vmul.f32 %v320, 1.442695
  %v322 = vpow.pop %v321
  %v323 = vadd.f32 %v322, 1.0
  %v324 = vrcp.pop %v323
  %v325 = vmul.f32 1.0, %v324
  %v326 = vtanh.pop %v319
  %v327 = vmul.f32 %v325, %v263
  %329 = vrot.lane.b32.xlu0 %v326, 64
  %v330 = vpop.permute.xlu0 %329
  %v332 = vmul.f32 %v325, %v330
  %334 = vrot.lane.b32.xlu0 %v332, 32
  %v335 = vpop.permute.xlu0 %334
  %v337 = vadd.f32 %v327, %v335
  %v338 = vtanh.pop %v337
  %340 = vrot.lane.b32.xlu0 %v338, 64
  %v341 = vpop.permute.xlu0 %340
  %v343 = vmul.f32 %v325, %v341
  %v344 = vmax.f32 %v269, %v343
  %v345 = vpack.c.bf16 %v344, %v344
  %v347 = vunpack.c.l.b16 %v345
  %v348 = vpack.c.b16 %v347, %v347
  %349 = vrot.lane.b32.xlu0 %v348, 32
  %v350 = vpop.permute.xlu0 %349
  %s352 = scalar_lea.vmem %s2, 4
  %353 = vst.msk [vmem:[%s352] sm:$0xf] %vm194, %v350
  %s354 = scalar_lea.vmem %s0, 32
  %v355 = vld [vmem:[%s354] sm:$0xff]
  %v356 = vpack.c.bf16 %v343, %v343
  %358 = vrot.lane.b32.xlu0 %v356, 32
  %v359 = vpop.permute.xlu0 %358
  %v361 = vsel %vm39, %v359, 0
  %363 = vmatprep.subr.bf16.mxu0 0
  %364 = vmatpush1.bf16.msra.mxu0 0
  %365 = vmatprep.subr.bf16.mxu0 0
  %366 = vmatpush1.bf16.msra.mxu0 0
  %367 = vmatprep.subr.bf16.mxu0 0
  %368 = vmatpush1.bf16.msra.mxu0 0
  %369 = vmatprep.subr.bf16.mxu0 0
  %370 = vmatpush1.bf16.msra.mxu0 0
  %371 = vmatprep.subr.bf16.mxu0 0
  %372 = vmatpush1.bf16.msra.mxu0 0
  %373 = vmatprep.subr.bf16.mxu0 0
  %374 = vmatpush1.bf16.msra.mxu0 0
  %375 = vmatprep.subr.bf16.mxu0 0
  %376 = vmatpush1.bf16.msra.mxu0 %v36
  %377 = vmatprep.subr.bf16.mxu0 0
  %378 = vmatpush1.bf16.msra.mxu0 %v35
  %379 = vmatprep.subr.bf16.mxu0 0
  %380 = vmatpush2.bf16.msra.mxu0 0
  %381 = vmatprep.subr.bf16.mxu0 0
  %382 = vmatpush2.bf16.msra.mxu0 0
  %383 = vmatprep.subr.bf16.mxu0 0
  %384 = vmatpush2.bf16.msra.mxu0 0
  %385 = vmatprep.subr.bf16.mxu0 0
  %386 = vmatpush2.bf16.msra.mxu0 0
  %387 = vmatprep.subr.bf16.mxu0 0
  %388 = vmatpush2.bf16.msra.mxu0 0
  %389 = vmatprep.subr.bf16.mxu0 0
  %390 = vmatpush2.bf16.msra.mxu0 0
  %391 = vmatprep.subr.bf16.mxu0 0
  %392 = vmatpush2.bf16.msra.mxu0 0
  %393 = vmatprep.subr.bf16.mxu0 0
  %394 = vmatpush2.bf16.msra.mxu0 0
  %395 = vmatprep.mubr.bf16.mxu0 0
  %396 = vmatmul.mubr.bf16.gmra.mxu0 %v361
  %v397 = vpop.f32.mrf.mxu0
  %v398 = vadd.f32 0.0, %v397
  %v399 = vpop.f32.mrf.mxu0
  %v400 = vpop.f32.mrf.mxu0
  %v401 = vpop.f32.mrf.mxu0
  %402 = vdwg.mxu0
  %v403 = vadd.f32 %v355, %v398
  %v404 = vxor.u32 %v403, 2147483648
  %v405 = vmul.f32 %v404, 1.442695
  %v406 = vpow.pop %v405
  %v407 = vadd.f32 %v406, 1.0
  %v408 = vrcp.pop %v407
  %v409 = vmul.f32 1.0, %v408
  %v410 = vtanh.pop %v403
  %v411 = vmul.f32 %v409, %v337
  %413 = vrot.lane.b32.xlu0 %v410, 64
  %v414 = vpop.permute.xlu0 %413
  %v416 = vmul.f32 %v409, %v414
  %418 = vrot.lane.b32.xlu0 %v416, 32
  %v419 = vpop.permute.xlu0 %418
  %v421 = vadd.f32 %v411, %v419
  %v422 = vtanh.pop %v421
  %424 = vrot.lane.b32.xlu0 %v422, 64
  %v425 = vpop.permute.xlu0 %424
  %v427 = vmul.f32 %v409, %v425
  %s428 = scalar_lea.vmem %s0, 40
  %v429 = vld [vmem:[%s428] sm:$0xff]
  %v430 = vpack.c.bf16 %v427, %v427
  %432 = vrot.lane.b32.xlu0 %v430, 32
  %v433 = vpop.permute.xlu0 %432
  %v435 = vsel %vm39, %v433, 0
  %437 = vmatprep.subr.bf16.mxu0 0
  %438 = vmatpush1.bf16.msra.mxu0 0
  %439 = vmatprep.subr.bf16.mxu0 0
  %440 = vmatpush1.bf16.msra.mxu0 0
  %441 = vmatprep.subr.bf16.mxu0 0
  %442 = vmatpush1.bf16.msra.mxu0 0
  %443 = vmatprep.subr.bf16.mxu0 0
  %444 = vmatpush1.bf16.msra.mxu0 0
  %445 = vmatprep.subr.bf16.mxu0 0
  %446 = vmatpush1.bf16.msra.mxu0 0
  %447 = vmatprep.subr.bf16.mxu0 0
  %448 = vmatpush1.bf16.msra.mxu0 0
  %449 = vmatprep.subr.bf16.mxu0 0
  %450 = vmatpush1.bf16.msra.mxu0 %v36
  %451 = vmatprep.subr.bf16.mxu0 0
  %452 = vmatpush1.bf16.msra.mxu0 %v35
  %453 = vmatprep.subr.bf16.mxu0 0
  %454 = vmatpush2.bf16.msra.mxu0 0
  %455 = vmatprep.subr.bf16.mxu0 0
  %456 = vmatpush2.bf16.msra.mxu0 0
  %457 = vmatprep.subr.bf16.mxu0 0
  %458 = vmatpush2.bf16.msra.mxu0 0
  %459 = vmatprep.subr.bf16.mxu0 0
  %460 = vmatpush2.bf16.msra.mxu0 0
  %461 = vmatprep.subr.bf16.mxu0 0
  %462 = vmatpush2.bf16.msra.mxu0 0
  %463 = vmatprep.subr.bf16.mxu0 0
  %464 = vmatpush2.bf16.msra.mxu0 0
  %465 = vmatprep.subr.bf16.mxu0 0
  %466 = vmatpush2.bf16.msra.mxu0 0
  %467 = vmatprep.subr.bf16.mxu0 0
  %468 = vmatpush2.bf16.msra.mxu0 0
  %469 = vmatprep.mubr.bf16.mxu0 0
  %470 = vmatmul.mubr.bf16.gmra.mxu0 %v435
  %v471 = vpop.f32.mrf.mxu0
  %v472 = vadd.f32 0.0, %v471
  %v473 = vpop.f32.mrf.mxu0
  %v474 = vpop.f32.mrf.mxu0
  %v475 = vpop.f32.mrf.mxu0
  %476 = vdwg.mxu0
  %v477 = vadd.f32 %v429, %v472
  %v478 = vxor.u32 %v477, 2147483648
  %v479 = vmul.f32 %v478, 1.442695
  %v480 = vpow.pop %v479
  %v481 = vadd.f32 %v480, 1.0
  %v482 = vrcp.pop %v481
  %v483 = vmul.f32 1.0, %v482
  %v484 = vtanh.pop %v477
  %v485 = vmul.f32 %v483, %v421
  %487 = vrot.lane.b32.xlu0 %v484, 64
  %v488 = vpop.permute.xlu0 %487
  %v490 = vmul.f32 %v483, %v488
  %492 = vrot.lane.b32.xlu0 %v490, 32
  %v493 = vpop.permute.xlu0 %492
  %v495 = vadd.f32 %v485, %v493
  %v496 = vtanh.pop %v495
  %498 = vrot.lane.b32.xlu0 %v496, 64
  %v499 = vpop.permute.xlu0 %498
  %v501 = vmul.f32 %v483, %v499
  %v502 = vmax.f32 %v427, %v501
  %v503 = vpack.c.bf16 %v502, %v502
  %v505 = vunpack.c.l.b16 %v503
  %v506 = vpack.c.b16 %v505, %v505
  %507 = vrot.lane.b32.xlu0 %v506, 32
  %v508 = vpop.permute.xlu0 %507
  %s510 = scalar_lea.vmem %s2, 8
  %511 = vst.msk [vmem:[%s510] sm:$0xf] %vm194, %v508
  %s512 = scalar_lea.vmem %s0, 48
  %v513 = vld [vmem:[%s512] sm:$0xff]
  %v514 = vpack.c.bf16 %v501, %v501
  %516 = vrot.lane.b32.xlu0 %v514, 32
  %v517 = vpop.permute.xlu0 %516
  %v519 = vsel %vm39, %v517, 0
  %521 = vmatprep.subr.bf16.mxu0 0
  %522 = vmatpush1.bf16.msra.mxu0 0
  %523 = vmatprep.subr.bf16.mxu0 0
  %524 = vmatpush1.bf16.msra.mxu0 0
  %525 = vmatprep.subr.bf16.mxu0 0
  %526 = vmatpush1.bf16.msra.mxu0 0
  %527 = vmatprep.subr.bf16.mxu0 0
  %528 = vmatpush1.bf16.msra.mxu0 0
  %529 = vmatprep.subr.bf16.mxu0 0
  %530 = vmatpush1.bf16.msra.mxu0 0
  %531 = vmatprep.subr.bf16.mxu0 0
  %532 = vmatpush1.bf16.msra.mxu0 0
  %533 = vmatprep.subr.bf16.mxu0 0
  %534 = vmatpush1.bf16.msra.mxu0 %v36
  %535 = vmatprep.subr.bf16.mxu0 0
  %536 = vmatpush1.bf16.msra.mxu0 %v35
  %537 = vmatprep.subr.bf16.mxu0 0
  %538 = vmatpush2.bf16.msra.mxu0 0
  %539 = vmatprep.subr.bf16.mxu0 0
  %540 = vmatpush2.bf16.msra.mxu0 0
  %541 = vmatprep.subr.bf16.mxu0 0
  %542 = vmatpush2.bf16.msra.mxu0 0
  %543 = vmatprep.subr.bf16.mxu0 0
  %544 = vmatpush2.bf16.msra.mxu0 0
  %545 = vmatprep.subr.bf16.mxu0 0
  %546 = vmatpush2.bf16.msra.mxu0 0
  %547 = vmatprep.subr.bf16.mxu0 0
  %548 = vmatpush2.bf16.msra.mxu0 0
  %549 = vmatprep.subr.bf16.mxu0 0
  %550 = vmatpush2.bf16.msra.mxu0 0
  %551 = vmatprep.subr.bf16.mxu0 0
  %552 = vmatpush2.bf16.msra.mxu0 0
  %553 = vmatprep.mubr.bf16.mxu0 0
  %554 = vmatmul.mubr.bf16.gmra.mxu0 %v519
  %v555 = vpop.f32.mrf.mxu0
  %v556 = vadd.f32 0.0, %v555
  %v557 = vpop.f32.mrf.mxu0
  %v558 = vpop.f32.mrf.mxu0
  %v559 = vpop.f32.mrf.mxu0
  %560 = vdwg.mxu0
  %v561 = vadd.f32 %v513, %v556
  %v562 = vxor.u32 %v561, 2147483648
  %v563 = vmul.f32 %v562, 1.442695
  %v564 = vpow.pop %v563
  %v565 = vadd.f32 %v564, 1.0
  %v566 = vrcp.pop %v565
  %v567 = vmul.f32 1.0, %v566
  %v568 = vtanh.pop %v561
  %v569 = vmul.f32 %v567, %v495
  %571 = vrot.lane.b32.xlu0 %v568, 64
  %v572 = vpop.permute.xlu0 %571
  %v574 = vmul.f32 %v567, %v572
  %576 = vrot.lane.b32.xlu0 %v574, 32
  %v577 = vpop.permute.xlu0 %576
  %v579 = vadd.f32 %v569, %v577
  %v580 = vtanh.pop %v579
  %582 = vrot.lane.b32.xlu0 %v580, 64
  %v583 = vpop.permute.xlu0 %582
  %v585 = vmul.f32 %v567, %v583
  %s586 = scalar_lea.vmem %s0, 56
  %v587 = vld [vmem:[%s586] sm:$0xff]
  %v588 = vpack.c.bf16 %v585, %v585
  %590 = vrot.lane.b32.xlu0 %v588, 32
  %v591 = vpop.permute.xlu0 %590
  %v593 = vsel %vm39, %v591, 0
  %595 = vmatprep.subr.bf16.mxu0 0
  %596 = vmatpush1.bf16.msra.mxu0 0
  %597 = vmatprep.subr.bf16.mxu0 0
  %598 = vmatpush1.bf16.msra.mxu0 0
  %599 = vmatprep.subr.bf16.mxu0 0
  %600 = vmatpush1.bf16.msra.mxu0 0
  %601 = vmatprep.subr.bf16.mxu0 0
  %602 = vmatpush1.bf16.msra.mxu0 0
  %603 = vmatprep.subr.bf16.mxu0 0
  %604 = vmatpush1.bf16.msra.mxu0 0
  %605 = vmatprep.subr.bf16.mxu0 0
  %606 = vmatpush1.bf16.msra.mxu0 0
  %607 = vmatprep.subr.bf16.mxu0 0
  %608 = vmatpush1.bf16.msra.mxu0 %v36
  %609 = vmatprep.subr.bf16.mxu0 0
  %610 = vmatpush1.bf16.msra.mxu0 %v35
  %611 = vmatprep.subr.bf16.mxu0 0
  %612 = vmatpush2.bf16.msra.mxu0 0
  %613 = vmatprep.subr.bf16.mxu0 0
  %614 = vmatpush2.bf16.msra.mxu0 0
  %615 = vmatprep.subr.bf16.mxu0 0
  %616 = vmatpush2.bf16.msra.mxu0 0
  %617 = vmatprep.subr.bf16.mxu0 0
  %618 = vmatpush2.bf16.msra.mxu0 0
  %619 = vmatprep.subr.bf16.mxu0 0
  %620 = vmatpush2.bf16.msra.mxu0 0
  %621 = vmatprep.subr.bf16.mxu0 0
  %622 = vmatpush2.bf16.msra.mxu0 0
  %623 = vmatprep.subr.bf16.mxu0 0
  %624 = vmatpush2.bf16.msra.mxu0 0
  %625 = vmatprep.subr.bf16.mxu0 0
  %626 = vmatpush2.bf16.msra.mxu0 0
  %627 = vmatprep.mubr.bf16.mxu0 0
  %628 = vmatmul.mubr.bf16.gmra.mxu0 %v593
  %v629 = vpop.f32.mrf.mxu0
  %v630 = vadd.f32 0.0, %v629
  %v631 = vpop.f32.mrf.mxu0
  %v632 = vpop.f32.mrf.mxu0
  %v633 = vpop.f32.mrf.mxu0
  %634 = vdwg.mxu0
  %v635 = vadd.f32 %v587, %v630
  %v636 = vxor.u32 %v635, 2147483648
  %v637 = vmul.f32 %v636, 1.442695
  %v638 = vpow.pop %v637
  %v639 = vadd.f32 %v638, 1.0
  %v640 = vrcp.pop %v639
  %v641 = vmul.f32 1.0, %v640
  %v642 = vtanh.pop %v635
  %v643 = vmul.f32 %v641, %v579
  %645 = vrot.lane.b32.xlu0 %v642, 64
  %v646 = vpop.permute.xlu0 %645
  %v648 = vmul.f32 %v641, %v646
  %650 = vrot.lane.b32.xlu0 %v648, 32
  %v651 = vpop.permute.xlu0 %650
  %v653 = vadd.f32 %v643, %v651
  %v654 = vtanh.pop %v653
  %656 = vrot.lane.b32.xlu0 %v654, 64
  %v657 = vpop.permute.xlu0 %656
  %v659 = vmul.f32 %v641, %v657
  %v660 = vmax.f32 %v585, %v659
  %v661 = vpack.c.bf16 %v660, %v660
  %v663 = vunpack.c.l.b16 %v661
  %v664 = vpack.c.b16 %v663, %v663
  %665 = vrot.lane.b32.xlu0 %v664, 32
  %v666 = vpop.permute.xlu0 %665
  %s668 = scalar_lea.vmem %s2, 12
  %669 = vst.msk [vmem:[%s668] sm:$0xf] %vm194, %v666
  %671 = vrot.lane.b32.xlu0 %v659, 32
  %v672 = vpop.permute.xlu0 %671
  %674 = vst.msk [vmem:[#allocation2] sm:$0xff] %vm39, %v672
  %676 = vrot.lane.b32.xlu0 %v653, 96
  %v677 = vpop.permute.xlu0 %676
  %679 = vst.msk [vmem:[#allocation3] sm:$0xff] %vm39, %v677
  // Predicated region
  $region14: #{asr_forward.13} parent=0 // pred_check
    _
  $region15: #{asr_forward.13} parent=0 // pred_check_branch
    %681 = sbr.rel (0) target = $region17
  $region16: #{asr_forward.13} parent=0 // pred_region
    _
  $region17: #{asr_forward.13} parent=0 // pred_fallthru
    _
  // Predicated region
  $region18: #{asr_forward.13} parent=0 // pred_check
    _
  $region19: #{asr_forward.13} parent=0 // pred_check_branch
    %683 = sbr.rel (0) target = $region21
  $region20: #{asr_forward.13} parent=0 // pred_region
    _
  $region21: #{asr_forward.13} parent=0 // pred_fallthru
    _

// kernel: asr_forward.18
$region0: #{asr_forward.18}
  #allocation0 [shape = 'u32[]', space=smem, size = 0x4, offset = 0x4, fixed_abs, tag = 'smem constant byte address 0x4 - core index']
  #allocation1 [shape = 'u32[144,128]{1,0:T(1,128)}', space=vmem, size = 0x12000, scoped, tag = 'internal scratch']
  %s0 = inlined_call_operand.vmem [shape: bf16[32,32], index: 0, kind: input, shape index: {}]
  %s1 = inlined_call_operand.vmem [shape: bf16[32,64], index: 1, kind: input, shape index: {}]
  %s2 = inlined_call_operand.vmem [shape: bf16[32,64], index: 2, kind: output, shape index: {}]
  %s3 = sld [smem:[#allocation0]]
  $region18: #{asr_forward.18} parent=0
    _
  %s5 = ssub.s32 1, %s3
  %s6 = scalar_select 0, %s5, %s3
  // Predicated region
  $region2: #{asr_forward.18} parent=0 // pred_check
    _
  $region3: #{asr_forward.18} parent=0 // pred_check_branch
    %8 = sbr.rel (0) target = $region5
  $region4: #{asr_forward.18} parent=0 // pred_region
    _
  $region5: #{asr_forward.18} parent=0 // pred_fallthru
    _
  // Predicated region
  $region6: #{asr_forward.18} parent=0 // pred_check
    _
  $region7: #{asr_forward.18} parent=0 // pred_check_branch
    %10 = sbr.rel (0) target = $region9
  $region8: #{asr_forward.18} parent=0 // pred_region
    _
  $region9: #{asr_forward.18} parent=0 // pred_fallthru
    _
  %v12 = vld [vmem:[%s0] sm:$0xf]
  %v13 = vld [vmem:[%s0 + $0x4] sm:$0xf]
  %v14 = vld [vmem:[%s0 + $0x8] sm:$0xf]
  %v15 = vld [vmem:[%s0 + $0xc] sm:$0xf]
  %v16 = vld [vmem:[%s1] sm:$0xf]
  %v17 = vld [vmem:[%s1 + $0x4] sm:$0xf]
  %v18 = vld [vmem:[%s1 + $0x8] sm:$0xf]
  %v19 = vld [vmem:[%s1 + $0xc] sm:$0xf]
  %v24 = vunpack.c.l.b16 %v12
  %v25 = vunpack.c.l.b16 %v13
  %v26 = vunpack.c.l.b16 %v14
  %v27 = vunpack.c.l.b16 %v15
  %v28 = vpack.c.b16 %v25, %v24
  %v29 = vpack.c.b16 %v27, %v26
  %v34 = vunpack.c.l.b16 %v16
  %v35 = vunpack.c.l.b16 %v17
  %v36 = vunpack.c.l.b16 %v18
  %v37 = vunpack.c.l.b16 %v19
  %v38 = vpack.c.b16 %v35, %v34
  %v39 = vpack.c.b16 %v37, %v36
  %vm42 = vcmask 261120
  %v44 = vsel %vm42, %v28, 0
  %v47 = vsel %vm42, %v29, 0
  %49 = vmatprep.subr.bf16.mxu0 0
  %50 = vmatpush1.bf16.msra.mxu0 0
  %51 = vmatprep.subr.bf16.mxu0 0
  %52 = vmatpush1.bf16.msra.mxu0 0
  %53 = vmatprep.subr.bf16.mxu0 0
  %54 = vmatpush1.bf16.msra.mxu0 0
  %55 = vmatprep.subr.bf16.mxu0 0
  %56 = vmatpush1.bf16.msra.mxu0 0
  %57 = vmatprep.subr.bf16.mxu0 0
  %58 = vmatpush1.bf16.msra.mxu0 0
  %59 = vmatprep.subr.bf16.mxu0 0
  %60 = vmatpush1.bf16.msra.mxu0 0
  %61 = vmatprep.subr.bf16.mxu0 0
  %62 = vmatpush1.bf16.msra.mxu0 %v39
  %63 = vmatprep.subr.bf16.mxu0 0
  %64 = vmatpush1.bf16.msra.mxu0 %v38
  %65 = vmatprep.subr.bf16.mxu0 0
  %66 = vmatpush2.bf16.msra.mxu0 0
  %67 = vmatprep.subr.bf16.mxu0 0
  %68 = vmatpush2.bf16.msra.mxu0 0
  %69 = vmatprep.subr.bf16.mxu0 0
  %70 = vmatpush2.bf16.msra.mxu0 0
  %71 = vmatprep.subr.bf16.mxu0 0
  %72 = vmatpush2.bf16.msra.mxu0 0
  %73 = vmatprep.subr.bf16.mxu0 0
  %74 = vmatpush2.bf16.msra.mxu0 0
  %75 = vmatprep.subr.bf16.mxu0 0
  %76 = vmatpush2.bf16.msra.mxu0 0
  %77 = vmatprep.subr.bf16.mxu0 0
  %78 = vmatpush2.bf16.msra.mxu0 0
  %79 = vmatprep.subr.bf16.mxu0 0
  %80 = vmatpush2.bf16.msra.mxu0 0
  %81 = vmatprep.mubr.bf16.mxu0 0
  %82 = vmatmul.mubr.bf16.gmra.mxu0 %v44
  %v83 = vpop.f32.mrf.mxu0
  %v84 = vadd.f32 0.0, %v83
  %v85 = vpop.f32.mrf.mxu0
  %v86 = vpop.f32.mrf.mxu0
  %v87 = vadd.f32 0.0, %v86
  %v88 = vpop.f32.mrf.mxu0
  %89 = vmatprep.mubr.bf16.mxu0 0
  %90 = vmatmul.mubr.bf16.gmra.mxu0 %v47
  %v91 = vpop.f32.mrf.mxu0
  %v92 = vadd.f32 0.0, %v91
  %v93 = vpop.f32.mrf.mxu0
  %v94 = vpop.f32.mrf.mxu0
  %v95 = vadd.f32 0.0, %v94
  %v96 = vpop.f32.mrf.mxu0
  %97 = vdwg.mxu0
  %v98 = vpack.c.bf16 %v87, %v84
  %v99 = vpack.c.bf16 %v95, %v92
  %v102 = vunpack.c.l.b16 %v98
  %v103 = vunpack.c.h.b16 %v98
  %v104 = vunpack.c.l.b16 %v99
  %v105 = vunpack.c.h.b16 %v99
  %v106 = vpack.c.b16 %v102, %v102
  %v107 = vpack.c.b16 %v103, %v103
  %v108 = vpack.c.b16 %v104, %v104
  %v109 = vpack.c.b16 %v105, %v105
  %vm114 = vcmask 519168
  %115 = vst.msk [vmem:[%s2] sm:$0xf] %vm114, %v106
  %116 = vst.msk [vmem:[%s2 + $0x4] sm:$0xf] %vm114, %v107
  %117 = vst.msk [vmem:[%s2 + $0x8] sm:$0xf] %vm114, %v108
  %118 = vst.msk [vmem:[%s2 + $0xc] sm:$0xf] %vm114, %v109
  // Predicated region
  $region10: #{asr_forward.18} parent=0 // pred_check
    _
  $region11: #{asr_forward.18} parent=0 // pred_check_branch
    %120 = sbr.rel (0) target = $region13
  $region12: #{asr_forward.18} parent=0 // pred_region
    _
  $region13: #{asr_forward.18} parent=0 // pred_fallthru
    _
  // Predicated region
  $region14: #{asr_forward.18} parent=0 // pred_check
    _
  $region15: #{asr_forward.18} parent=0 // pred_check_branch
    %122 = sbr.rel (0) target = $region17
  $region16: #{asr_forward.18} parent=0 // pred_region
    _
  $region17: #{asr_forward.18} parent=0 // pred_fallthru
    _

// kernel: asr_forward.14
$region0: #{asr_forward.14}
  #allocation0 [shape = 'u32[]', space=smem, size = 0x4, offset = 0x4, fixed_abs, tag = 'smem constant byte address 0x4 - core index']
  #allocation1 [shape = 'u32[144,128]{1,0:T(1,128)}', space=vmem, size = 0x12000, scoped, tag = 'internal scratch']
  %s0 = inlined_call_operand.vmem [shape: f32[64,32], index: 0, kind: input, shape index: {}]
  %s1 = inlined_call_operand.vmem [shape: bf16[32,128], index: 1, kind: input, shape index: {}]
  %s2 = inlined_call_operand.vmem [shape: f32[1,128], index: 2, kind: input, shape index: {}]
  %s3 = inlined_call_operand.vmem [shape: f32[64,128], index: 3, kind: output, shape index: {}]
  %s4 = sld [smem:[#allocation0]]
  $region22: #{asr_forward.14} parent=0
    _
  %s6 = ssub.s32 1, %s4
  %s7 = scalar_select 0, %s6, %s4
  // Predicated region
  $region2: #{asr_forward.14} parent=0 // pred_check
    _
  $region3: #{asr_forward.14} parent=0 // pred_check_branch
    %9 = sbr.rel (0) target = $region5
  $region4: #{asr_forward.14} parent=0 // pred_region
    _
  $region5: #{asr_forward.14} parent=0 // pred_fallthru
    _
  // Predicated region
  $region6: #{asr_forward.14} parent=0 // pred_check
    _
  $region7: #{asr_forward.14} parent=0 // pred_check_branch
    %11 = sbr.rel (0) target = $region9
  $region8: #{asr_forward.14} parent=0 // pred_region
    _
  $region9: #{asr_forward.14} parent=0 // pred_fallthru
    _
  // Predicated region
  $region10: #{asr_forward.14} parent=0 // pred_check
    _
  $region11: #{asr_forward.14} parent=0 // pred_check_branch
    %13 = sbr.rel (0) target = $region13
  $region12: #{asr_forward.14} parent=0 // pred_region
    _
  $region13: #{asr_forward.14} parent=0 // pred_fallthru
    _
  %v15 = vld [vmem:[%s0] sm:$0xff]
  %v16 = vld [vmem:[%s0 + $0x8] sm:$0xff]
  %v17 = vld [vmem:[%s0 + $0x10] sm:$0xff]
  %v18 = vld [vmem:[%s0 + $0x18] sm:$0xff]
  %v19 = vld [vmem:[%s0 + $0x20] sm:$0xff]
  %v20 = vld [vmem:[%s0 + $0x28] sm:$0xff]
  %v21 = vld [vmem:[%s0 + $0x30] sm:$0xff]
  %v22 = vld [vmem:[%s0 + $0x38] sm:$0xff]
  %v23 = vpack.c.bf16 %v16, %v15
  %v24 = vpack.c.bf16 %v18, %v17
  %v25 = vpack.c.bf16 %v20, %v19
  %v26 = vpack.c.bf16 %v22, %v21
  %v27 = vld [vmem:[%s1] sm:$0xf]
  %v28 = vld [vmem:[%s1 + $0x4] sm:$0xf]
  %v29 = vld [vmem:[%s1 + $0x8] sm:$0xf]
  %v30 = vld [vmem:[%s1 + $0xc] sm:$0xf]
  %v31 = vld [vmem:[%s2] sm:$0x1]
  %v33 = vlaneseq
  %v34 = vshrl.u32 %v33, 7
  %v35 = vsub.s32 0, %v34
  %v36 = vrot.slane %v31, %v35
  %v42 = vunpack.c.l.b16 %v27
  %v43 = vunpack.c.l.b16 %v28
  %v44 = vunpack.c.l.b16 %v29
  %v45 = vunpack.c.l.b16 %v30
  %v46 = vpack.c.b16 %v43, %v42
  %v47 = vpack.c.b16 %v45, %v44
  %vm50 = vcmask 261120
  %v52 = vsel %vm50, %v23, 0
  %v55 = vsel %vm50, %v24, 0
  %v58 = vsel %vm50, %v25, 0
  %v61 = vsel %vm50, %v26, 0
  %63 = vmatprep.subr.bf16.mxu0 0
  %64 = vmatpush1.bf16.msra.mxu0 0
  %65 = vmatprep.subr.bf16.mxu0 0
  %66 = vmatpush1.bf16.msra.mxu0 0
  %67 = vmatprep.subr.bf16.mxu0 0
  %68 = vmatpush1.bf16.msra.mxu0 0
  %69 = vmatprep.subr.bf16.mxu0 0
  %70 = vmatpush1.bf16.msra.mxu0 0
  %71 = vmatprep.subr.bf16.mxu0 0
  %72 = vmatpush1.bf16.msra.mxu0 0
  %73 = vmatprep.subr.bf16.mxu0 0
  %74 = vmatpush1.bf16.msra.mxu0 0
  %75 = vmatprep.subr.bf16.mxu0 0
  %76 = vmatpush1.bf16.msra.mxu0 %v47
  %77 = vmatprep.subr.bf16.mxu0 0
  %78 = vmatpush1.bf16.msra.mxu0 %v46
  %79 = vmatprep.subr.bf16.mxu0 0
  %80 = vmatpush2.bf16.msra.mxu0 0
  %81 = vmatprep.subr.bf16.mxu0 0
  %82 = vmatpush2.bf16.msra.mxu0 0
  %83 = vmatprep.subr.bf16.mxu0 0
  %84 = vmatpush2.bf16.msra.mxu0 0
  %85 = vmatprep.subr.bf16.mxu0 0
  %86 = vmatpush2.bf16.msra.mxu0 0
  %87 = vmatprep.subr.bf16.mxu0 0
  %88 = vmatpush2.bf16.msra.mxu0 0
  %89 = vmatprep.subr.bf16.mxu0 0
  %90 = vmatpush2.bf16.msra.mxu0 0
  %91 = vmatprep.subr.bf16.mxu0 0
  %92 = vmatpush2.bf16.msra.mxu0 0
  %93 = vmatprep.subr.bf16.mxu0 0
  %94 = vmatpush2.bf16.msra.mxu0 0
  %95 = vmatprep.mubr.bf16.mxu0 0
  %96 = vmatmul.mubr.bf16.gmra.mxu0 %v52
  %v97 = vpop.f32.mrf.mxu0
  %v98 = vadd.f32 %v36, %v97
  %v99 = vpop.f32.mrf.mxu0
  %v100 = vpop.f32.mrf.mxu0
  %v101 = vadd.f32 %v36, %v100
  %v102 = vpop.f32.mrf.mxu0
  %103 = vmatprep.mubr.bf16.mxu0 0
  %104 = vmatmul.mubr.bf16.gmra.mxu0 %v55
  %v105 = vpop.f32.mrf.mxu0
  %v106 = vadd.f32 %v36, %v105
  %v107 = vpop.f32.mrf.mxu0
  %v108 = vpop.f32.mrf.mxu0
  %v109 = vadd.f32 %v36, %v108
  %v110 = vpop.f32.mrf.mxu0
  %111 = vmatprep.mubr.bf16.mxu0 0
  %112 = vmatmul.mubr.bf16.gmra.mxu0 %v58
  %v113 = vpop.f32.mrf.mxu0
  %v114 = vadd.f32 %v36, %v113
  %v115 = vpop.f32.mrf.mxu0
  %v116 = vpop.f32.mrf.mxu0
  %v117 = vadd.f32 %v36, %v116
  %v118 = vpop.f32.mrf.mxu0
  %119 = vmatprep.mubr.bf16.mxu0 0
  %120 = vmatmul.mubr.bf16.gmra.mxu0 %v61
  %v121 = vpop.f32.mrf.mxu0
  %v122 = vadd.f32 %v36, %v121
  %v123 = vpop.f32.mrf.mxu0
  %v124 = vpop.f32.mrf.mxu0
  %v125 = vadd.f32 %v36, %v124
  %v126 = vpop.f32.mrf.mxu0
  %127 = vdwg.mxu0
  %128 = vst [vmem:[%s3] sm:$0xff] %v98
  %129 = vst [vmem:[%s3 + $0x8] sm:$0xff] %v101
  %130 = vst [vmem:[%s3 + $0x10] sm:$0xff] %v106
  %131 = vst [vmem:[%s3 + $0x18] sm:$0xff] %v109
  %132 = vst [vmem:[%s3 + $0x20] sm:$0xff] %v114
  %133 = vst [vmem:[%s3 + $0x28] sm:$0xff] %v117
  %134 = vst [vmem:[%s3 + $0x30] sm:$0xff] %v122
  %135 = vst [vmem:[%s3 + $0x38] sm:$0xff] %v125
  // Predicated region
  $region14: #{asr_forward.14} parent=0 // pred_check
    _
  $region15: #{asr_forward.14} parent=0 // pred_check_branch
    %137 = sbr.rel (0) target = $region17
  $region16: #{asr_forward.14} parent=0 // pred_region
    _
  $region17: #{asr_forward.14} parent=0 // pred_fallthru
    _
  // Predicated region
  $region18: #{asr_forward.14} parent=0 // pred_check
    _
  $region19: #{asr_forward.14} parent=0 // pred_check_branch
    %139 = sbr.rel (0) target = $region21
  $region20: #{asr_forward.14} parent=0 // pred_region
    _
  $region21: #{asr_forward.14} parent=0 // pred_fallthru
    _

// kernel: asr_forward.15
$region0: #{asr_forward.15}
  #allocation0 [shape = 'u32[]', space=smem, size = 0x4, offset = 0x4, fixed_abs, tag = 'smem constant byte address 0x4 - core index']
  #allocation1 [shape = 'u32[144,128]{1,0:T(1,128)}', space=vmem, size = 0x12000, scoped, tag = 'internal scratch']
  #allocation2 [shape = 'f32[8,32]{1,0:T(8,128)}', space=vmem, size = 0x1000, scoped, tag = 'scratch operand']
  #allocation3 [shape = 'f32[8,32]{1,0:T(8,128)}', space=vmem, size = 0x1000, scoped, tag = 'scratch operand']
  %s0 = inlined_call_operand.vmem [shape: f32[8,8,128], index: 0, kind: input, shape index: {}]
  %s1 = inlined_call_operand.vmem [shape: bf16[32,128], index: 1, kind: input, shape index: {}]
  %s2 = inlined_call_operand.vmem [shape: bf16[8,8,32], index: 2, kind: output, shape index: {}]
  %s3 = sld [smem:[#allocation0]]
  $region22: #{asr_forward.15} parent=0
    _
  %s5 = ssub.s32 1, %s3
  %s6 = scalar_select 0, %s5, %s3
  // Predicated region
  $region2: #{asr_forward.15} parent=0 // pred_check
    _
  $region3: #{asr_forward.15} parent=0 // pred_check_branch
    %8 = sbr.rel (0) target = $region5
  $region4: #{asr_forward.15} parent=0 // pred_region
    _
  $region5: #{asr_forward.15} parent=0 // pred_fallthru
    _
  // Predicated region
  $region6: #{asr_forward.15} parent=0 // pred_check
    _
  $region7: #{asr_forward.15} parent=0 // pred_check_branch
    %10 = sbr.rel (0) target = $region9
  $region8: #{asr_forward.15} parent=0 // pred_region
    _
  $region9: #{asr_forward.15} parent=0 // pred_fallthru
    _
  %p12 = scmp.eq.s32.totalorder 0, 0
  // Predicated region
  $region10: #{asr_forward.15} parent=0 // pred_check
    %p13 = pneg %p12
  $region11: #{asr_forward.15} parent=0 // pred_check_branch
    %15 = sbr.rel (%p13) target = $region13
  $region12: #{asr_forward.15} parent=0 // pred_region
    %vm16 = vcmask 261120
    %17 = vst.msk [vmem:[#allocation2] sm:$0xff] %vm16, 0.0
    %18 = vst.msk [vmem:[#allocation3] sm:$0xff] %vm16, 0.0
  $region13: #{asr_forward.15} parent=0 // pred_fallthru
    _
  %v19 = vld [vmem:[%s1] sm:$0xf]
  %v20 = vld [vmem:[%s1 + $0x4] sm:$0xf]
  %v21 = vld [vmem:[%s1 + $0x8] sm:$0xf]
  %v22 = vld [vmem:[%s1 + $0xc] sm:$0xf]
  %v23 = vld [vmem:[#allocation2] sm:$0xff]
  %v24 = vld [vmem:[#allocation3] sm:$0xff]
  %v25 = vld [vmem:[%s0] sm:$0xff]
  %v26 = vpack.c.bf16 %v23, %v23
  %v31 = vunpack.c.l.b16 %v19
  %v32 = vunpack.c.l.b16 %v20
  %v33 = vunpack.c.l.b16 %v21
  %v34 = vunpack.c.l.b16 %v22
  %v35 = vpack.c.b16 %v32, %v31
  %v36 = vpack.c.b16 %v34, %v33
  %vm39 = vcmask 261120
  %v41 = vsel %vm39, %v26, 0
  %43 = vmatprep.subr.bf16.mxu0 0
  %44 = vmatpush1.bf16.msra.mxu0 0
  %45 = vmatprep.subr.bf16.mxu0 0
  %46 = vmatpush1.bf16.msra.mxu0 0
  %47 = vmatprep.subr.bf16.mxu0 0
  %48 = vmatpush1.bf16.msra.mxu0 0
  %49 = vmatprep.subr.bf16.mxu0 0
  %50 = vmatpush1.bf16.msra.mxu0 0
  %51 = vmatprep.subr.bf16.mxu0 0
  %52 = vmatpush1.bf16.msra.mxu0 0
  %53 = vmatprep.subr.bf16.mxu0 0
  %54 = vmatpush1.bf16.msra.mxu0 0
  %55 = vmatprep.subr.bf16.mxu0 0
  %56 = vmatpush1.bf16.msra.mxu0 %v36
  %57 = vmatprep.subr.bf16.mxu0 0
  %58 = vmatpush1.bf16.msra.mxu0 %v35
  %59 = vmatprep.subr.bf16.mxu0 0
  %60 = vmatpush2.bf16.msra.mxu0 0
  %61 = vmatprep.subr.bf16.mxu0 0
  %62 = vmatpush2.bf16.msra.mxu0 0
  %63 = vmatprep.subr.bf16.mxu0 0
  %64 = vmatpush2.bf16.msra.mxu0 0
  %65 = vmatprep.subr.bf16.mxu0 0
  %66 = vmatpush2.bf16.msra.mxu0 0
  %67 = vmatprep.subr.bf16.mxu0 0
  %68 = vmatpush2.bf16.msra.mxu0 0
  %69 = vmatprep.subr.bf16.mxu0 0
  %70 = vmatpush2.bf16.msra.mxu0 0
  %71 = vmatprep.subr.bf16.mxu0 0
  %72 = vmatpush2.bf16.msra.mxu0 0
  %73 = vmatprep.subr.bf16.mxu0 0
  %74 = vmatpush2.bf16.msra.mxu0 0
  %75 = vmatprep.mubr.bf16.mxu0 0
  %76 = vmatmul.mubr.bf16.gmra.mxu0 %v41
  %v77 = vpop.f32.mrf.mxu0
  %v78 = vadd.f32 0.0, %v77
  %v79 = vpop.f32.mrf.mxu0
  %v80 = vpop.f32.mrf.mxu0
  %v81 = vpop.f32.mrf.mxu0
  %82 = vdwg.mxu0
  %v83 = vadd.f32 %v25, %v78
  %v84 = vxor.u32 %v83, 2147483648
  %v85 = vmul.f32 %v84, 1.442695
  %v86 = vpow.pop %v85
  %v87 = vadd.f32 %v86, 1.0
  %v88 = vrcp.pop %v87
  %v89 = vmul.f32 1.0, %v88
  %v90 = vtanh.pop %v83
  %92 = vrot.lane.b32.xlu0 %v24, 32
  %v93 = vpop.permute.xlu0 %92
  %v95 = vmul.f32 %v89, %v93
  %97 = vrot.lane.b32.xlu0 %v90, 64
  %v98 = vpop.permute.xlu0 %97
  %v100 = vmul.f32 %v89, %v98
  %102 = vrot.lane.b32.xlu0 %v100, 32
  %v103 = vpop.permute.xlu0 %102
  %v105 = vadd.f32 %v95, %v103
  %v106 = vtanh.pop %v105
  %108 = vrot.lane.b32.xlu0 %v106, 64
  %v109 = vpop.permute.xlu0 %108
  %v111 = vmul.f32 %v89, %v109
  %v112 = vpack.c.bf16 %v111, %v111
  %v114 = vunpack.c.l.b16 %v112
  %v115 = vpack.c.b16 %v114, %v114
  %116 = vrot.lane.b32.xlu0 %v115, 32
  %v117 = vpop.permute.xlu0 %116
  %vm119 = vcmask 257024
  %120 = vst.msk [vmem:[%s2] sm:$0xf] %vm119, %v117
  %s121 = scalar_lea.vmem %s0, 8
  %v122 = vld [vmem:[%s121] sm:$0xff]
  %123 = vrot.lane.b32.xlu0 %v112, 32
  %v124 = vpop.permute.xlu0 %123
  %v126 = vsel %vm39, %v124, 0
  %128 = vmatprep.subr.bf16.mxu0 0
  %129 = vmatpush1.bf16.msra.mxu0 0
  %130 = vmatprep.subr.bf16.mxu0 0
  %131 = vmatpush1.bf16.msra.mxu0 0
  %132 = vmatprep.subr.bf16.mxu0 0
  %133 = vmatpush1.bf16.msra.mxu0 0
  %134 = vmatprep.subr.bf16.mxu0 0
  %135 = vmatpush1.bf16.msra.mxu0 0
  %136 = vmatprep.subr.bf16.mxu0 0
  %137 = vmatpush1.bf16.msra.mxu0 0
  %138 = vmatprep.subr.bf16.mxu0 0
  %139 = vmatpush1.bf16.msra.mxu0 0
  %140 = vmatprep.subr.bf16.mxu0 0
  %141 = vmatpush1.bf16.msra.mxu0 %v36
  %142 = vmatprep.subr.bf16.mxu0 0
  %143 = vmatpush1.bf16.msra.mxu0 %v35
  %144 = vmatprep.subr.bf16.mxu0 0
  %145 = vmatpush2.bf16.msra.mxu0 0
  %146 = vmatprep.subr.bf16.mxu0 0
  %147 = vmatpush2.bf16.msra.mxu0 0
  %148 = vmatprep.subr.bf16.mxu0 0
  %149 = vmatpush2.bf16.msra.mxu0 0
  %150 = vmatprep.subr.bf16.mxu0 0
  %151 = vmatpush2.bf16.msra.mxu0 0
  %152 = vmatprep.subr.bf16.mxu0 0
  %153 = vmatpush2.bf16.msra.mxu0 0
  %154 = vmatprep.subr.bf16.mxu0 0
  %155 = vmatpush2.bf16.msra.mxu0 0
  %156 = vmatprep.subr.bf16.mxu0 0
  %157 = vmatpush2.bf16.msra.mxu0 0
  %158 = vmatprep.subr.bf16.mxu0 0
  %159 = vmatpush2.bf16.msra.mxu0 0
  %160 = vmatprep.mubr.bf16.mxu0 0
  %161 = vmatmul.mubr.bf16.gmra.mxu0 %v126
  %v162 = vpop.f32.mrf.mxu0
  %v163 = vadd.f32 0.0, %v162
  %v164 = vpop.f32.mrf.mxu0
  %v165 = vpop.f32.mrf.mxu0
  %v166 = vpop.f32.mrf.mxu0
  %167 = vdwg.mxu0
  %v168 = vadd.f32 %v122, %v163
  %v169 = vxor.u32 %v168, 2147483648
  %v170 = vmul.f32 %v169, 1.442695
  %v171 = vpow.pop %v170
  %v172 = vadd.f32 %v171, 1.0
  %v173 = vrcp.pop %v172
  %v174 = vmul.f32 1.0, %v173
  %v175 = vtanh.pop %v168
  %v176 = vmul.f32 %v174, %v105
  %178 = vrot.lane.b32.xlu0 %v175, 64
  %v179 = vpop.permute.xlu0 %178
  %v181 = vmul.f32 %v174, %v179
  %183 = vrot.lane.b32.xlu0 %v181, 32
  %v184 = vpop.permute.xlu0 %183
  %v186 = vadd.f32 %v176, %v184
  %v187 = vtanh.pop %v186
  %189 = vrot.lane.b32.xlu0 %v187, 64
  %v190 = vpop.permute.xlu0 %189
  %v192 = vmul.f32 %v174, %v190
  %v193 = vpack.c.bf16 %v192, %v192
  %v195 = vunpack.c.l.b16 %v193
  %v196 = vpack.c.b16 %v195, %v195
  %197 = vrot.lane.b32.xlu0 %v196, 32
  %v198 = vpop.permute.xlu0 %197
  %s200 = scalar_lea.vmem %s2, 4
  %201 = vst.msk [vmem:[%s200] sm:$0xf] %vm119, %v198
  %s202 = scalar_lea.vmem %s0, 16
  %v203 = vld [vmem:[%s202] sm:$0xff]
  %204 = vrot.lane.b32.xlu0 %v193, 32
  %v205 = vpop.permute.xlu0 %204
  %v207 = vsel %vm39, %v205, 0
  %209 = vmatprep.subr.bf16.mxu0 0
  %210 = vmatpush1.bf16.msra.mxu0 0
  %211 = vmatprep.subr.bf16.mxu0 0
  %212 = vmatpush1.bf16.msra.mxu0 0
  %213 = vmatprep.subr.bf16.mxu0 0
  %214 = vmatpush1.bf16.msra.mxu0 0
  %215 = vmatprep.subr.bf16.mxu0 0
  %216 = vmatpush1.bf16.msra.mxu0 0
  %217 = vmatprep.subr.bf16.mxu0 0
  %218 = vmatpush1.bf16.msra.mxu0 0
  %219 = vmatprep.subr.bf16.mxu0 0
  %220 = vmatpush1.bf16.msra.mxu0 0
  %221 = vmatprep.subr.bf16.mxu0 0
  %222 = vmatpush1.bf16.msra.mxu0 %v36
  %223 = vmatprep.subr.bf16.mxu0 0
  %224 = vmatpush1.bf16.msra.mxu0 %v35
  %225 = vmatprep.subr.bf16.mxu0 0
  %226 = vmatpush2.bf16.msra.mxu0 0
  %227 = vmatprep.subr.bf16.mxu0 0
  %228 = vmatpush2.bf16.msra.mxu0 0
  %229 = vmatprep.subr.bf16.mxu0 0
  %230 = vmatpush2.bf16.msra.mxu0 0
  %231 = vmatprep.subr.bf16.mxu0 0
  %232 = vmatpush2.bf16.msra.mxu0 0
  %233 = vmatprep.subr.bf16.mxu0 0
  %234 = vmatpush2.bf16.msra.mxu0 0
  %235 = vmatprep.subr.bf16.mxu0 0
  %236 = vmatpush2.bf16.msra.mxu0 0
  %237 = vmatprep.subr.bf16.mxu0 0
  %238 = vmatpush2.bf16.msra.mxu0 0
  %239 = vmatprep.subr.bf16.mxu0 0
  %240 = vmatpush2.bf16.msra.mxu0 0
  %241 = vmatprep.mubr.bf16.mxu0 0
  %242 = vmatmul.mubr.bf16.gmra.mxu0 %v207
  %v243 = vpop.f32.mrf.mxu0
  %v244 = vadd.f32 0.0, %v243
  %v245 = vpop.f32.mrf.mxu0
  %v246 = vpop.f32.mrf.mxu0
  %v247 = vpop.f32.mrf.mxu0
  %248 = vdwg.mxu0
  %v249 = vadd.f32 %v203, %v244
  %v250 = vxor.u32 %v249, 2147483648
  %v251 = vmul.f32 %v250, 1.442695
  %v252 = vpow.pop %v251
  %v253 = vadd.f32 %v252, 1.0
  %v254 = vrcp.pop %v253
  %v255 = vmul.f32 1.0, %v254
  %v256 = vtanh.pop %v249
  %v257 = vmul.f32 %v255, %v186
  %259 = vrot.lane.b32.xlu0 %v256, 64
  %v260 = vpop.permute.xlu0 %259
  %v262 = vmul.f32 %v255, %v260
  %264 = vrot.lane.b32.xlu0 %v262, 32
  %v265 = vpop.permute.xlu0 %264
  %v267 = vadd.f32 %v257, %v265
  %v268 = vtanh.pop %v267
  %270 = vrot.lane.b32.xlu0 %v268, 64
  %v271 = vpop.permute.xlu0 %270
  %v273 = vmul.f32 %v255, %v271
  %v274 = vpack.c.bf16 %v273, %v273
  %v276 = vunpack.c.l.b16 %v274
  %v277 = vpack.c.b16 %v276, %v276
  %278 = vrot.lane.b32.xlu0 %v277, 32
  %v279 = vpop.permute.xlu0 %278
  %s281 = scalar_lea.vmem %s2, 8
  %282 = vst.msk [vmem:[%s281] sm:$0xf] %vm119, %v279
  %s283 = scalar_lea.vmem %s0, 24
  %v284 = vld [vmem:[%s283] sm:$0xff]
  %285 = vrot.lane.b32.xlu0 %v274, 32
  %v286 = vpop.permute.xlu0 %285
  %v288 = vsel %vm39, %v286, 0
  %290 = vmatprep.subr.bf16.mxu0 0
  %291 = vmatpush1.bf16.msra.mxu0 0
  %292 = vmatprep.subr.bf16.mxu0 0
  %293 = vmatpush1.bf16.msra.mxu0 0
  %294 = vmatprep.subr.bf16.mxu0 0
  %295 = vmatpush1.bf16.msra.mxu0 0
  %296 = vmatprep.subr.bf16.mxu0 0
  %297 = vmatpush1.bf16.msra.mxu0 0
  %298 = vmatprep.subr.bf16.mxu0 0
  %299 = vmatpush1.bf16.msra.mxu0 0
  %300 = vmatprep.subr.bf16.mxu0 0
  %301 = vmatpush1.bf16.msra.mxu0 0
  %302 = vmatprep.subr.bf16.mxu0 0
  %303 = vmatpush1.bf16.msra.mxu0 %v36
  %304 = vmatprep.subr.bf16.mxu0 0
  %305 = vmatpush1.bf16.msra.mxu0 %v35
  %306 = vmatprep.subr.bf16.mxu0 0
  %307 = vmatpush2.bf16.msra.mxu0 0
  %308 = vmatprep.subr.bf16.mxu0 0
  %309 = vmatpush2.bf16.msra.mxu0 0
  %310 = vmatprep.subr.bf16.mxu0 0
  %311 = vmatpush2.bf16.msra.mxu0 0
  %312 = vmatprep.subr.bf16.mxu0 0
  %313 = vmatpush2.bf16.msra.mxu0 0
  %314 = vmatprep.subr.bf16.mxu0 0
  %315 = vmatpush2.bf16.msra.mxu0 0
  %316 = vmatprep.subr.bf16.mxu0 0
  %317 = vmatpush2.bf16.msra.mxu0 0
  %318 = vmatprep.subr.bf16.mxu0 0
  %319 = vmatpush2.bf16.msra.mxu0 0
  %320 = vmatprep.subr.bf16.mxu0 0
  %321 = vmatpush2.bf16.msra.mxu0 0
  %322 = vmatprep.mubr.bf16.mxu0 0
  %323 = vmatmul.mubr.bf16.gmra.mxu0 %v288
  %v324 = vpop.f32.mrf.mxu0
  %v325 = vadd.f32 0.0, %v324
  %v326 = vpop.f32.mrf.mxu0
  %v327 = vpop.f32.mrf.mxu0
  %v328 = vpop.f32.mrf.mxu0
  %329 = vdwg.mxu0
  %v330 = vadd.f32 %v284, %v325
  %v331 = vxor.u32 %v330, 2147483648
  %v332 = vmul.f32 %v331, 1.442695
  %v333 = vpow.pop %v332
  %v334 = vadd.f32 %v333, 1.0
  %v335 = vrcp.pop %v334
  %v336 = vmul.f32 1.0, %v335
  %v337 = vtanh.pop %v330
  %v338 = vmul.f32 %v336, %v267
  %340 = vrot.lane.b32.xlu0 %v337, 64
  %v341 = vpop.permute.xlu0 %340
  %v343 = vmul.f32 %v336, %v341
  %345 = vrot.lane.b32.xlu0 %v343, 32
  %v346 = vpop.permute.xlu0 %345
  %v348 = vadd.f32 %v338, %v346
  %v349 = vtanh.pop %v348
  %351 = vrot.lane.b32.xlu0 %v349, 64
  %v352 = vpop.permute.xlu0 %351
  %v354 = vmul.f32 %v336, %v352
  %v355 = vpack.c.bf16 %v354, %v354
  %v357 = vunpack.c.l.b16 %v355
  %v358 = vpack.c.b16 %v357, %v357
  %359 = vrot.lane.b32.xlu0 %v358, 32
  %v360 = vpop.permute.xlu0 %359
  %s362 = scalar_lea.vmem %s2, 12
  %363 = vst.msk [vmem:[%s362] sm:$0xf] %vm119, %v360
  %s364 = scalar_lea.vmem %s0, 32
  %v365 = vld [vmem:[%s364] sm:$0xff]
  %366 = vrot.lane.b32.xlu0 %v355, 32
  %v367 = vpop.permute.xlu0 %366
  %v369 = vsel %vm39, %v367, 0
  %371 = vmatprep.subr.bf16.mxu0 0
  %372 = vmatpush1.bf16.msra.mxu0 0
  %373 = vmatprep.subr.bf16.mxu0 0
  %374 = vmatpush1.bf16.msra.mxu0 0
  %375 = vmatprep.subr.bf16.mxu0 0
  %376 = vmatpush1.bf16.msra.mxu0 0
  %377 = vmatprep.subr.bf16.mxu0 0
  %378 = vmatpush1.bf16.msra.mxu0 0
  %379 = vmatprep.subr.bf16.mxu0 0
  %380 = vmatpush1.bf16.msra.mxu0 0
  %381 = vmatprep.subr.bf16.mxu0 0
  %382 = vmatpush1.bf16.msra.mxu0 0
  %383 = vmatprep.subr.bf16.mxu0 0
  %384 = vmatpush1.bf16.msra.mxu0 %v36
  %385 = vmatprep.subr.bf16.mxu0 0
  %386 = vmatpush1.bf16.msra.mxu0 %v35
  %387 = vmatprep.subr.bf16.mxu0 0
  %388 = vmatpush2.bf16.msra.mxu0 0
  %389 = vmatprep.subr.bf16.mxu0 0
  %390 = vmatpush2.bf16.msra.mxu0 0
  %391 = vmatprep.subr.bf16.mxu0 0
  %392 = vmatpush2.bf16.msra.mxu0 0
  %393 = vmatprep.subr.bf16.mxu0 0
  %394 = vmatpush2.bf16.msra.mxu0 0
  %395 = vmatprep.subr.bf16.mxu0 0
  %396 = vmatpush2.bf16.msra.mxu0 0
  %397 = vmatprep.subr.bf16.mxu0 0
  %398 = vmatpush2.bf16.msra.mxu0 0
  %399 = vmatprep.subr.bf16.mxu0 0
  %400 = vmatpush2.bf16.msra.mxu0 0
  %401 = vmatprep.subr.bf16.mxu0 0
  %402 = vmatpush2.bf16.msra.mxu0 0
  %403 = vmatprep.mubr.bf16.mxu0 0
  %404 = vmatmul.mubr.bf16.gmra.mxu0 %v369
  %v405 = vpop.f32.mrf.mxu0
  %v406 = vadd.f32 0.0, %v405
  %v407 = vpop.f32.mrf.mxu0
  %v408 = vpop.f32.mrf.mxu0
  %v409 = vpop.f32.mrf.mxu0
  %410 = vdwg.mxu0
  %v411 = vadd.f32 %v365, %v406
  %v412 = vxor.u32 %v411, 2147483648
  %v413 = vmul.f32 %v412, 1.442695
  %v414 = vpow.pop %v413
  %v415 = vadd.f32 %v414, 1.0
  %v416 = vrcp.pop %v415
  %v417 = vmul.f32 1.0, %v416
  %v418 = vtanh.pop %v411
  %v419 = vmul.f32 %v417, %v348
  %421 = vrot.lane.b32.xlu0 %v418, 64
  %v422 = vpop.permute.xlu0 %421
  %v424 = vmul.f32 %v417, %v422
  %426 = vrot.lane.b32.xlu0 %v424, 32
  %v427 = vpop.permute.xlu0 %426
  %v429 = vadd.f32 %v419, %v427
  %v430 = vtanh.pop %v429
  %432 = vrot.lane.b32.xlu0 %v430, 64
  %v433 = vpop.permute.xlu0 %432
  %v435 = vmul.f32 %v417, %v433
  %v436 = vpack.c.bf16 %v435, %v435
  %v438 = vunpack.c.l.b16 %v436
  %v439 = vpack.c.b16 %v438, %v438
  %440 = vrot.lane.b32.xlu0 %v439, 32
  %v441 = vpop.permute.xlu0 %440
  %s443 = scalar_lea.vmem %s2, 16
  %444 = vst.msk [vmem:[%s443] sm:$0xf] %vm119, %v441
  %s445 = scalar_lea.vmem %s0, 40
  %v446 = vld [vmem:[%s445] sm:$0xff]
  %447 = vrot.lane.b32.xlu0 %v436, 32
  %v448 = vpop.permute.xlu0 %447
  %v450 = vsel %vm39, %v448, 0
  %452 = vmatprep.subr.bf16.mxu0 0
  %453 = vmatpush1.bf16.msra.mxu0 0
  %454 = vmatprep.subr.bf16.mxu0 0
  %455 = vmatpush1.bf16.msra.mxu0 0
  %456 = vmatprep.subr.bf16.mxu0 0
  %457 = vmatpush1.bf16.msra.mxu0 0
  %458 = vmatprep.subr.bf16.mxu0 0
  %459 = vmatpush1.bf16.msra.mxu0 0
  %460 = vmatprep.subr.bf16.mxu0 0
  %461 = vmatpush1.bf16.msra.mxu0 0
  %462 = vmatprep.subr.bf16.mxu0 0
  %463 = vmatpush1.bf16.msra.mxu0 0
  %464 = vmatprep.subr.bf16.mxu0 0
  %465 = vmatpush1.bf16.msra.mxu0 %v36
  %466 = vmatprep.subr.bf16.mxu0 0
  %467 = vmatpush1.bf16.msra.mxu0 %v35
  %468 = vmatprep.subr.bf16.mxu0 0
  %469 = vmatpush2.bf16.msra.mxu0 0
  %470 = vmatprep.subr.bf16.mxu0 0
  %471 = vmatpush2.bf16.msra.mxu0 0
  %472 = vmatprep.subr.bf16.mxu0 0
  %473 = vmatpush2.bf16.msra.mxu0 0
  %474 = vmatprep.subr.bf16.mxu0 0
  %475 = vmatpush2.bf16.msra.mxu0 0
  %476 = vmatprep.subr.bf16.mxu0 0
  %477 = vmatpush2.bf16.msra.mxu0 0
  %478 = vmatprep.subr.bf16.mxu0 0
  %479 = vmatpush2.bf16.msra.mxu0 0
  %480 = vmatprep.subr.bf16.mxu0 0
  %481 = vmatpush2.bf16.msra.mxu0 0
  %482 = vmatprep.subr.bf16.mxu0 0
  %483 = vmatpush2.bf16.msra.mxu0 0
  %484 = vmatprep.mubr.bf16.mxu0 0
  %485 = vmatmul.mubr.bf16.gmra.mxu0 %v450
  %v486 = vpop.f32.mrf.mxu0
  %v487 = vadd.f32 0.0, %v486
  %v488 = vpop.f32.mrf.mxu0
  %v489 = vpop.f32.mrf.mxu0
  %v490 = vpop.f32.mrf.mxu0
  %491 = vdwg.mxu0
  %v492 = vadd.f32 %v446, %v487
  %v493 = vxor.u32 %v492, 2147483648
  %v494 = vmul.f32 %v493, 1.442695
  %v495 = vpow.pop %v494
  %v496 = vadd.f32 %v495, 1.0
  %v497 = vrcp.pop %v496
  %v498 = vmul.f32 1.0, %v497
  %v499 = vtanh.pop %v492
  %v500 = vmul.f32 %v498, %v429
  %502 = vrot.lane.b32.xlu0 %v499, 64
  %v503 = vpop.permute.xlu0 %502
  %v505 = vmul.f32 %v498, %v503
  %507 = vrot.lane.b32.xlu0 %v505, 32
  %v508 = vpop.permute.xlu0 %507
  %v510 = vadd.f32 %v500, %v508
  %v511 = vtanh.pop %v510
  %513 = vrot.lane.b32.xlu0 %v511, 64
  %v514 = vpop.permute.xlu0 %513
  %v516 = vmul.f32 %v498, %v514
  %v517 = vpack.c.bf16 %v516, %v516
  %v519 = vunpack.c.l.b16 %v517
  %v520 = vpack.c.b16 %v519, %v519
  %521 = vrot.lane.b32.xlu0 %v520, 32
  %v522 = vpop.permute.xlu0 %521
  %s524 = scalar_lea.vmem %s2, 20
  %525 = vst.msk [vmem:[%s524] sm:$0xf] %vm119, %v522
  %s526 = scalar_lea.vmem %s0, 48
  %v527 = vld [vmem:[%s526] sm:$0xff]
  %528 = vrot.lane.b32.xlu0 %v517, 32
  %v529 = vpop.permute.xlu0 %528
  %v531 = vsel %vm39, %v529, 0
  %533 = vmatprep.subr.bf16.mxu0 0
  %534 = vmatpush1.bf16.msra.mxu0 0
  %535 = vmatprep.subr.bf16.mxu0 0
  %536 = vmatpush1.bf16.msra.mxu0 0
  %537 = vmatprep.subr.bf16.mxu0 0
  %538 = vmatpush1.bf16.msra.mxu0 0
  %539 = vmatprep.subr.bf16.mxu0 0
  %540 = vmatpush1.bf16.msra.mxu0 0
  %541 = vmatprep.subr.bf16.mxu0 0
  %542 = vmatpush1.bf16.msra.mxu0 0
  %543 = vmatprep.subr.bf16.mxu0 0
  %544 = vmatpush1.bf16.msra.mxu0 0
  %545 = vmatprep.subr.bf16.mxu0 0
  %546 = vmatpush1.bf16.msra.mxu0 %v36
  %547 = vmatprep.subr.bf16.mxu0 0
  %548 = vmatpush1.bf16.msra.mxu0 %v35
  %549 = vmatprep.subr.bf16.mxu0 0
  %550 = vmatpush2.bf16.msra.mxu0 0
  %551 = vmatprep.subr.bf16.mxu0 0
  %552 = vmatpush2.bf16.msra.mxu0 0
  %553 = vmatprep.subr.bf16.mxu0 0
  %554 = vmatpush2.bf16.msra.mxu0 0
  %555 = vmatprep.subr.bf16.mxu0 0
  %556 = vmatpush2.bf16.msra.mxu0 0
  %557 = vmatprep.subr.bf16.mxu0 0
  %558 = vmatpush2.bf16.msra.mxu0 0
  %559 = vmatprep.subr.bf16.mxu0 0
  %560 = vmatpush2.bf16.msra.mxu0 0
  %561 = vmatprep.subr.bf16.mxu0 0
  %562 = vmatpush2.bf16.msra.mxu0 0
  %563 = vmatprep.subr.bf16.mxu0 0
  %564 = vmatpush2.bf16.msra.mxu0 0
  %565 = vmatprep.mubr.bf16.mxu0 0
  %566 = vmatmul.mubr.bf16.gmra.mxu0 %v531
  %v567 = vpop.f32.mrf.mxu0
  %v568 = vadd.f32 0.0, %v567
  %v569 = vpop.f32.mrf.mxu0
  %v570 = vpop.f32.mrf.mxu0
  %v571 = vpop.f32.mrf.mxu0
  %572 = vdwg.mxu0
  %v573 = vadd.f32 %v527, %v568
  %v574 = vxor.u32 %v573, 2147483648
  %v575 = vmul.f32 %v574, 1.442695
  %v576 = vpow.pop %v575
  %v577 = vadd.f32 %v576, 1.0
  %v578 = vrcp.pop %v577
  %v579 = vmul.f32 1.0, %v578
  %v580 = vtanh.pop %v573
  %v581 = vmul.f32 %v579, %v510
  %583 = vrot.lane.b32.xlu0 %v580, 64
  %v584 = vpop.permute.xlu0 %583
  %v586 = vmul.f32 %v579, %v584
  %588 = vrot.lane.b32.xlu0 %v586, 32
  %v589 = vpop.permute.xlu0 %588
  %v591 = vadd.f32 %v581, %v589
  %v592 = vtanh.pop %v591
  %594 = vrot.lane.b32.xlu0 %v592, 64
  %v595 = vpop.permute.xlu0 %594
  %v597 = vmul.f32 %v579, %v595
  %v598 = vpack.c.bf16 %v597, %v597
  %v600 = vunpack.c.l.b16 %v598
  %v601 = vpack.c.b16 %v600, %v600
  %602 = vrot.lane.b32.xlu0 %v601, 32
  %v603 = vpop.permute.xlu0 %602
  %s605 = scalar_lea.vmem %s2, 24
  %606 = vst.msk [vmem:[%s605] sm:$0xf] %vm119, %v603
  %s607 = scalar_lea.vmem %s0, 56
  %v608 = vld [vmem:[%s607] sm:$0xff]
  %609 = vrot.lane.b32.xlu0 %v598, 32
  %v610 = vpop.permute.xlu0 %609
  %v612 = vsel %vm39, %v610, 0
  %614 = vmatprep.subr.bf16.mxu0 0
  %615 = vmatpush1.bf16.msra.mxu0 0
  %616 = vmatprep.subr.bf16.mxu0 0
  %617 = vmatpush1.bf16.msra.mxu0 0
  %618 = vmatprep.subr.bf16.mxu0 0
  %619 = vmatpush1.bf16.msra.mxu0 0
  %620 = vmatprep.subr.bf16.mxu0 0
  %621 = vmatpush1.bf16.msra.mxu0 0
  %622 = vmatprep.subr.bf16.mxu0 0
  %623 = vmatpush1.bf16.msra.mxu0 0
  %624 = vmatprep.subr.bf16.mxu0 0
  %625 = vmatpush1.bf16.msra.mxu0 0
  %626 = vmatprep.subr.bf16.mxu0 0
  %627 = vmatpush1.bf16.msra.mxu0 %v36
  %628 = vmatprep.subr.bf16.mxu0 0
  %629 = vmatpush1.bf16.msra.mxu0 %v35
  %630 = vmatprep.subr.bf16.mxu0 0
  %631 = vmatpush2.bf16.msra.mxu0 0
  %632 = vmatprep.subr.bf16.mxu0 0
  %633 = vmatpush2.bf16.msra.mxu0 0
  %634 = vmatprep.subr.bf16.mxu0 0
  %635 = vmatpush2.bf16.msra.mxu0 0
  %636 = vmatprep.subr.bf16.mxu0 0
  %637 = vmatpush2.bf16.msra.mxu0 0
  %638 = vmatprep.subr.bf16.mxu0 0
  %639 = vmatpush2.bf16.msra.mxu0 0
  %640 = vmatprep.subr.bf16.mxu0 0
  %641 = vmatpush2.bf16.msra.mxu0 0
  %642 = vmatprep.subr.bf16.mxu0 0
  %643 = vmatpush2.bf16.msra.mxu0 0
  %644 = vmatprep.subr.bf16.mxu0 0
  %645 = vmatpush2.bf16.msra.mxu0 0
  %646 = vmatprep.mubr.bf16.mxu0 0
  %647 = vmatmul.mubr.bf16.gmra.mxu0 %v612
  %v648 = vpop.f32.mrf.mxu0
  %v649 = vadd.f32 0.0, %v648
  %v650 = vpop.f32.mrf.mxu0
  %v651 = vpop.f32.mrf.mxu0
  %v652 = vpop.f32.mrf.mxu0
  %653 = vdwg.mxu0
  %v654 = vadd.f32 %v608, %v649
  %v655 = vxor.u32 %v654, 2147483648
  %v656 = vmul.f32 %v655, 1.442695
  %v657 = vpow.pop %v656
  %v658 = vadd.f32 %v657, 1.0
  %v659 = vrcp.pop %v658
  %v660 = vmul.f32 1.0, %v659
  %v661 = vtanh.pop %v654
  %v662 = vmul.f32 %v660, %v591
  %664 = vrot.lane.b32.xlu0 %v661, 64
  %v665 = vpop.permute.xlu0 %664
  %v667 = vmul.f32 %v660, %v665
  %669 = vrot.lane.b32.xlu0 %v667, 32
  %v670 = vpop.permute.xlu0 %669
  %v672 = vadd.f32 %v662, %v670
  %v673 = vtanh.pop %v672
  %675 = vrot.lane.b32.xlu0 %v673, 64
  %v676 = vpop.permute.xlu0 %675
  %v678 = vmul.f32 %v660, %v676
  %v679 = vpack.c.bf16 %v678, %v678
  %v681 = vunpack.c.l.b16 %v679
  %v682 = vpack.c.b16 %v681, %v681
  %683 = vrot.lane.b32.xlu0 %v682, 32
  %v684 = vpop.permute.xlu0 %683
  %s686 = scalar_lea.vmem %s2, 28
  %687 = vst.msk [vmem:[%s686] sm:$0xf] %vm119, %v684
  %689 = vrot.lane.b32.xlu0 %v678, 32
  %v690 = vpop.permute.xlu0 %689
  %692 = vst.msk [vmem:[#allocation2] sm:$0xff] %vm39, %v690
  %694 = vrot.lane.b32.xlu0 %v672, 96
  %v695 = vpop.permute.xlu0 %694
  %697 = vst.msk [vmem:[#allocation3] sm:$0xff] %vm39, %v695
  // Predicated region
  $region14: #{asr_forward.15} parent=0 // pred_check
    _
  $region15: #{asr_forward.15} parent=0 // pred_check_branch
    %699 = sbr.rel (0) target = $region17
  $region16: #{asr_forward.15} parent=0 // pred_region
    _
  $region17: #{asr_forward.15} parent=0 // pred_fallthru
    _
  // Predicated region
  $region18: #{asr_forward.15} parent=0 // pred_check
    _
  $region19: #{asr_forward.15} parent=0 // pred_check_branch
    %701 = sbr.rel (0) target = $region21
  $region20: #{asr_forward.15} parent=0 // pred_region
    _
  $region21: #{asr_forward.15} parent=0 // pred_fallthru
    _

// kernel: asr_forward.19
$region0: #{asr_forward.19}
  #allocation0 [shape = 'u32[]', space=smem, size = 0x4, offset = 0x4, fixed_abs, tag = 'smem constant byte address 0x4 - core index']
  #allocation1 [shape = 'u32[144,128]{1,0:T(1,128)}', space=vmem, size = 0x12000, scoped, tag = 'internal scratch']
  %s0 = inlined_call_operand.vmem [shape: bf16[8,8,32], index: 0, kind: input, shape index: {}]
  %s1 = inlined_call_operand.vmem [shape: bf16[2,8,4,32], index: 1, kind: input, shape index: {}]
  %s2 = inlined_call_operand.vmem [shape: f32[8,4], index: 2, kind: input, shape index: {}]
  %s3 = inlined_call_operand.vmem [shape: bf16[32,32], index: 3, kind: input, shape index: {}]
  %s4 = inlined_call_operand.vmem [shape: f32[8,8,32], index: 4, kind: output, shape index: {0}]
  %s5 = inlined_call_operand.vmem [shape: f32[8,8,4], index: 5, kind: output, shape index: {1}]
  %6 = xla_tuple %s4, %s5
  %s7 = sld [smem:[#allocation0]]
  $region34: #{asr_forward.19} parent=0
    _
  %s9 = ssub.s32 1, %s7
  %s10 = scalar_select 0, %s9, %s7
  // Predicated region
  $region2: #{asr_forward.19} parent=0 // pred_check
    _
  $region3: #{asr_forward.19} parent=0 // pred_check_branch
    %12 = sbr.rel (0) target = $region5
  $region4: #{asr_forward.19} parent=0 // pred_region
    _
  $region5: #{asr_forward.19} parent=0 // pred_fallthru
    _
  // Predicated region
  $region6: #{asr_forward.19} parent=0 // pred_check
    _
  $region7: #{asr_forward.19} parent=0 // pred_check_branch
    %14 = sbr.rel (0) target = $region9
  $region8: #{asr_forward.19} parent=0 // pred_region
    _
  $region9: #{asr_forward.19} parent=0 // pred_fallthru
    _
  // Predicated region
  $region10: #{asr_forward.19} parent=0 // pred_check
    _
  $region11: #{asr_forward.19} parent=0 // pred_check_branch
    %16 = sbr.rel (0) target = $region13
  $region12: #{asr_forward.19} parent=0 // pred_region
    _
  $region13: #{asr_forward.19} parent=0 // pred_fallthru
    _
  // Predicated region
  $region14: #{asr_forward.19} parent=0 // pred_check
    _
  $region15: #{asr_forward.19} parent=0 // pred_check_branch
    %18 = sbr.rel (0) target = $region17
  $region16: #{asr_forward.19} parent=0 // pred_region
    _
  $region17: #{asr_forward.19} parent=0 // pred_fallthru
    _
  %v20 = vld [vmem:[%s0] sm:$0xf]
  %v21 = vld [vmem:[%s0 + $0x4] sm:$0xf]
  %v22 = vld [vmem:[%s0 + $0x8] sm:$0xf]
  %v23 = vld [vmem:[%s0 + $0xc] sm:$0xf]
  %v24 = vld [vmem:[%s0 + $0x10] sm:$0xf]
  %v25 = vld [vmem:[%s0 + $0x14] sm:$0xf]
  %v26 = vld [vmem:[%s0 + $0x18] sm:$0xf]
  %v27 = vld [vmem:[%s0 + $0x1c] sm:$0xf]
  %v28 = vld [vmem:[%s1] sm:$0x3]
  %v29 = vld [vmem:[%s1 + $0x2] sm:$0x3]
  %v30 = vld [vmem:[%s1 + $0x4] sm:$0x3]
  %v31 = vld [vmem:[%s1 + $0x6] sm:$0x3]
  %v32 = vld [vmem:[%s1 + $0x8] sm:$0x3]
  %v33 = vld [vmem:[%s1 + $0xa] sm:$0x3]
  %v34 = vld [vmem:[%s1 + $0xc] sm:$0x3]
  %v35 = vld [vmem:[%s1 + $0xe] sm:$0x3]
  %s36 = scalar_lea.vmem %s1, 16
  %v37 = vld [vmem:[%s36] sm:$0x3]
  %v38 = vld [vmem:[%s36 + $0x2] sm:$0x3]
  %v39 = vld [vmem:[%s36 + $0x4] sm:$0x3]
  %v40 = vld [vmem:[%s36 + $0x6] sm:$0x3]
  %v41 = vld [vmem:[%s36 + $0x8] sm:$0x3]
  %v42 = vld [vmem:[%s36 + $0xa] sm:$0x3]
  %v43 = vld [vmem:[%s36 + $0xc] sm:$0x3]
  %v44 = vld [vmem:[%s36 + $0xe] sm:$0x3]
  %v45 = vld [vmem:[%s2] sm:$0xff]
  %v47 = vcombine.high %v45, %v45
  %v49 = vunpack.c.l.s4 1966171168
  %v50 = vunpack.c.0.s8 %v49
  %v51 = vlaneseq
  %v52 = vshrl.u32 %v51, 7
  %v53 = vsub.s32 %v50, %v52
  %v54 = vrot.slane %v45, %v53
  %v56 = vunpack.c.l.s4 1966171168
  %v57 = vunpack.c.0.s8 %v56
  %v58 = vlaneseq
  %v59 = vshrl.u32 %v58, 7
  %v60 = vsub.s32 %v57, %v59
  %v61 = vrot.slane %v47, %v60
  %v62 = vcombine.high %v54, %v54
  %v63 = vcombine.high %v61, %v61
  %v65 = vunpack.c.l.s4 1966171168
  %v66 = vunpack.c.0.s8 %v65
  %v67 = vlaneseq
  %v68 = vshrl.u32 %v67, 7
  %v69 = vsub.s32 %v66, %v68
  %v70 = vrot.slane %v54, %v69
  %v72 = vunpack.c.l.s4 1966171168
  %v73 = vunpack.c.0.s8 %v72
  %v74 = vlaneseq
  %v75 = vshrl.u32 %v74, 7
  %v76 = vsub.s32 %v73, %v75
  %v77 = vrot.slane %v61, %v76
  %v79 = vunpack.c.l.s4 1966171168
  %v80 = vunpack.c.0.s8 %v79
  %v81 = vlaneseq
  %v82 = vshrl.u32 %v81, 7
  %v83 = vsub.s32 %v80, %v82
  %v84 = vrot.slane %v62, %v83
  %v86 = vunpack.c.l.s4 1966171168
  %v87 = vunpack.c.0.s8 %v86
  %v88 = vlaneseq
  %v89 = vshrl.u32 %v88, 7
  %v90 = vsub.s32 %v87, %v89
  %v91 = vrot.slane %v63, %v90
  %v92 = vcombine.high %v70, %v70
  %v93 = vcombine.high %v77, %v77
  %v94 = vcombine.high %v84, %v84
  %v95 = vcombine.high %v91, %v91
  %v96 = vlaneseq
  %v97 = vshrl.u32 %v96, 7
  %v98 = vsub.s32 0, %v97
  %v99 = vrot.slane %v70, %v98
  %v100 = vlaneseq
  %v101 = vshrl.u32 %v100, 7
  %v102 = vsub.s32 0, %v101
  %v103 = vrot.slane %v84, %v102
  %v104 = vlaneseq
  %v105 = vshrl.u32 %v104, 7
  %v106 = vsub.s32 0, %v105
  %v107 = vrot.slane %v92, %v106
  %v108 = vlaneseq
  %v109 = vshrl.u32 %v108, 7
  %v110 = vsub.s32 0, %v109
  %v111 = vrot.slane %v94, %v110
  %v112 = vlaneseq
  %v113 = vshrl.u32 %v112, 7
  %v114 = vsub.s32 0, %v113
  %v115 = vrot.slane %v77, %v114
  %v116 = vlaneseq
  %v117 = vshrl.u32 %v116, 7
  %v118 = vsub.s32 0, %v117
  %v119 = vrot.slane %v91, %v118
  %v120 = vlaneseq
  %v121 = vshrl.u32 %v120, 7
  %v122 = vsub.s32 0, %v121
  %v123 = vrot.slane %v93, %v122
  %v124 = vlaneseq
  %v125 = vshrl.u32 %v124, 7
  %v126 = vsub.s32 0, %v125
  %v127 = vrot.slane %v95, %v126
  %vm136 = vcmask 261120
  %v138 = vsel %vm136, %v20, 0
  %v141 = vsel %vm136, %v28, 0
  %143 = vmatprep.subr.bf16.mxu0 0
  %144 = vmatpush1.bf16.xpose.msra.mxu0 0
  %145 = vmatprep.subr.bf16.mxu0 0
  %146 = vmatpush1.bf16.xpose.msra.mxu0 0
  %147 = vmatprep.subr.bf16.mxu0 0
  %148 = vmatpush1.bf16.xpose.msra.mxu0 0
  %149 = vmatprep.subr.bf16.mxu0 0
  %150 = vmatpush1.bf16.xpose.msra.mxu0 0
  %151 = vmatprep.subr.bf16.mxu0 0
  %152 = vmatpush1.bf16.xpose.msra.mxu0 0
  %153 = vmatprep.subr.bf16.mxu0 0
  %154 = vmatpush1.bf16.xpose.msra.mxu0 0
  %155 = vmatprep.subr.bf16.mxu0 0
  %156 = vmatpush1.bf16.xpose.msra.mxu0 0
  %157 = vmatprep.subr.bf16.mxu0 0
  %158 = vmatpush1.bf16.xpose.msra.mxu0 %v141
  %159 = vmatprep.subr.bf16.mxu0 0
  %160 = vmatpush2.bf16.xpose.msra.mxu0 0
  %161 = vmatprep.subr.bf16.mxu0 0
  %162 = vmatpush2.bf16.xpose.msra.mxu0 0
  %163 = vmatprep.subr.bf16.mxu0 0
  %164 = vmatpush2.bf16.xpose.msra.mxu0 0
  %165 = vmatprep.subr.bf16.mxu0 0
  %166 = vmatpush2.bf16.xpose.msra.mxu0 0
  %167 = vmatprep.subr.bf16.mxu0 0
  %168 = vmatpush2.bf16.xpose.msra.mxu0 0
  %169 = vmatprep.subr.bf16.mxu0 0
  %170 = vmatpush2.bf16.xpose.msra.mxu0 0
  %171 = vmatprep.subr.bf16.mxu0 0
  %172 = vmatpush2.bf16.xpose.msra.mxu0 0
  %173 = vmatprep.subr.bf16.mxu0 0
  %174 = vmatpush2.bf16.xpose.msra.mxu0 0
  %175 = vmatprep.mubr.bf16.mxu0 0
  %176 = vmatmul.mubr.bf16.gmra.mxu0 %v138
  %v177 = vpop.f32.mrf.mxu0
  %v178 = vadd.f32 %v99, %v177
  %v179 = vpop.f32.mrf.mxu0
  %v180 = vpop.f32.mrf.mxu0
  %v181 = vpop.f32.mrf.mxu0
  %182 = vdwg.mxu0
  %v184 = vsel %vm136, %v21, 0
  %v187 = vsel %vm136, %v29, 0
  %189 = vmatprep.subr.bf16.mxu0 0
  %190 = vmatpush1.bf16.xpose.msra.mxu0 0
  %191 = vmatprep.subr.bf16.mxu0 0
  %192 = vmatpush1.bf16.xpose.msra.mxu0 0
  %193 = vmatprep.subr.bf16.mxu0 0
  %194 = vmatpush1.bf16.xpose.msra.mxu0 0
  %195 = vmatprep.subr.bf16.mxu0 0
  %196 = vmatpush1.bf16.xpose.msra.mxu0 0
  %197 = vmatprep.subr.bf16.mxu0 0
  %198 = vmatpush1.bf16.xpose.msra.mxu0 0
  %199 = vmatprep.subr.bf16.mxu0 0
  %200 = vmatpush1.bf16.xpose.msra.mxu0 0
  %201 = vmatprep.subr.bf16.mxu0 0
  %202 = vmatpush1.bf16.xpose.msra.mxu0 0
  %203 = vmatprep.subr.bf16.mxu0 0
  %204 = vmatpush1.bf16.xpose.msra.mxu0 %v187
  %205 = vmatprep.subr.bf16.mxu0 0
  %206 = vmatpush2.bf16.xpose.msra.mxu0 0
  %207 = vmatprep.subr.bf16.mxu0 0
  %208 = vmatpush2.bf16.xpose.msra.mxu0 0
  %209 = vmatprep.subr.bf16.mxu0 0
  %210 = vmatpush2.bf16.xpose.msra.mxu0 0
  %211 = vmatprep.subr.bf16.mxu0 0
  %212 = vmatpush2.bf16.xpose.msra.mxu0 0
  %213 = vmatprep.subr.bf16.mxu0 0
  %214 = vmatpush2.bf16.xpose.msra.mxu0 0
  %215 = vmatprep.subr.bf16.mxu0 0
  %216 = vmatpush2.bf16.xpose.msra.mxu0 0
  %217 = vmatprep.subr.bf16.mxu0 0
  %218 = vmatpush2.bf16.xpose.msra.mxu0 0
  %219 = vmatprep.subr.bf16.mxu0 0
  %220 = vmatpush2.bf16.xpose.msra.mxu0 0
  %221 = vmatprep.mubr.bf16.mxu0 0
  %222 = vmatmul.mubr.bf16.gmra.mxu0 %v184
  %v223 = vpop.f32.mrf.mxu0
  %v224 = vadd.f32 %v103, %v223
  %v225 = vpop.f32.mrf.mxu0
  %v226 = vpop.f32.mrf.mxu0
  %v227 = vpop.f32.mrf.mxu0
  %228 = vdwg.mxu0
  %v230 = vsel %vm136, %v22, 0
  %v233 = vsel %vm136, %v30, 0
  %235 = vmatprep.subr.bf16.mxu0 0
  %236 = vmatpush1.bf16.xpose.msra.mxu0 0
  %237 = vmatprep.subr.bf16.mxu0 0
  %238 = vmatpush1.bf16.xpose.msra.mxu0 0
  %239 = vmatprep.subr.bf16.mxu0 0
  %240 = vmatpush1.bf16.xpose.msra.mxu0 0
  %241 = vmatprep.subr.bf16.mxu0 0
  %242 = vmatpush1.bf16.xpose.msra.mxu0 0
  %243 = vmatprep.subr.bf16.mxu0 0
  %244 = vmatpush1.bf16.xpose.msra.mxu0 0
  %245 = vmatprep.subr.bf16.mxu0 0
  %246 = vmatpush1.bf16.xpose.msra.mxu0 0
  %247 = vmatprep.subr.bf16.mxu0 0
  %248 = vmatpush1.bf16.xpose.msra.mxu0 0
  %249 = vmatprep.subr.bf16.mxu0 0
  %250 = vmatpush1.bf16.xpose.msra.mxu0 %v233
  %251 = vmatprep.subr.bf16.mxu0 0
  %252 = vmatpush2.bf16.xpose.msra.mxu0 0
  %253 = vmatprep.subr.bf16.mxu0 0
  %254 = vmatpush2.bf16.xpose.msra.mxu0 0
  %255 = vmatprep.subr.bf16.mxu0 0
  %256 = vmatpush2.bf16.xpose.msra.mxu0 0
  %257 = vmatprep.subr.bf16.mxu0 0
  %258 = vmatpush2.bf16.xpose.msra.mxu0 0
  %259 = vmatprep.subr.bf16.mxu0 0
  %260 = vmatpush2.bf16.xpose.msra.mxu0 0
  %261 = vmatprep.subr.bf16.mxu0 0
  %262 = vmatpush2.bf16.xpose.msra.mxu0 0
  %263 = vmatprep.subr.bf16.mxu0 0
  %264 = vmatpush2.bf16.xpose.msra.mxu0 0
  %265 = vmatprep.subr.bf16.mxu0 0
  %266 = vmatpush2.bf16.xpose.msra.mxu0 0
  %267 = vmatprep.mubr.bf16.mxu0 0
  %268 = vmatmul.mubr.bf16.gmra.mxu0 %v230
  %v269 = vpop.f32.mrf.mxu0
  %v270 = vadd.f32 %v107, %v269
  %v271 = vpop.f32.mrf.mxu0
  %v272 = vpop.f32.mrf.mxu0
  %v273 = vpop.f32.mrf.mxu0
  %274 = vdwg.mxu0
  %v276 = vsel %vm136, %v23, 0
  %v279 = vsel %vm136, %v31, 0
  %281 = vmatprep.subr.bf16.mxu0 0
  %282 = vmatpush1.bf16.xpose.msra.mxu0 0
  %283 = vmatprep.subr.bf16.mxu0 0
  %284 = vmatpush1.bf16.xpose.msra.mxu0 0
  %285 = vmatprep.subr.bf16.mxu0 0
  %286 = vmatpush1.bf16.xpose.msra.mxu0 0
  %287 = vmatprep.subr.bf16.mxu0 0
  %288 = vmatpush1.bf16.xpose.msra.mxu0 0
  %289 = vmatprep.subr.bf16.mxu0 0
  %290 = vmatpush1.bf16.xpose.msra.mxu0 0
  %291 = vmatprep.subr.bf16.mxu0 0
  %292 = vmatpush1.bf16.xpose.msra.mxu0 0
  %293 = vmatprep.subr.bf16.mxu0 0
  %294 = vmatpush1.bf16.xpose.msra.mxu0 0
  %295 = vmatprep.subr.bf16.mxu0 0
  %296 = vmatpush1.bf16.xpose.msra.mxu0 %v279
  %297 = vmatprep.subr.bf16.mxu0 0
  %298 = vmatpush2.bf16.xpose.msra.mxu0 0
  %299 = vmatprep.subr.bf16.mxu0 0
  %300 = vmatpush2.bf16.xpose.msra.mxu0 0
  %301 = vmatprep.subr.bf16.mxu0 0
  %302 = vmatpush2.bf16.xpose.msra.mxu0 0
  %303 = vmatprep.subr.bf16.mxu0 0
  %304 = vmatpush2.bf16.xpose.msra.mxu0 0
  %305 = vmatprep.subr.bf16.mxu0 0
  %306 = vmatpush2.bf16.xpose.msra.mxu0 0
  %307 = vmatprep.subr.bf16.mxu0 0
  %308 = vmatpush2.bf16.xpose.msra.mxu0 0
  %309 = vmatprep.subr.bf16.mxu0 0
  %310 = vmatpush2.bf16.xpose.msra.mxu0 0
  %311 = vmatprep.subr.bf16.mxu0 0
  %312 = vmatpush2.bf16.xpose.msra.mxu0 0
  %313 = vmatprep.mubr.bf16.mxu0 0
  %314 = vmatmul.mubr.bf16.gmra.mxu0 %v276
  %v315 = vpop.f32.mrf.mxu0
  %v316 = vadd.f32 %v111, %v315
  %v317 = vpop.f32.mrf.mxu0
  %v318 = vpop.f32.mrf.mxu0
  %v319 = vpop.f32.mrf.mxu0
  %320 = vdwg.mxu0
  %v322 = vsel %vm136, %v24, 0
  %v325 = vsel %vm136, %v32, 0
  %327 = vmatprep.subr.bf16.mxu0 0
  %328 = vmatpush1.bf16.xpose.msra.mxu0 0
  %329 = vmatprep.subr.bf16.mxu0 0
  %330 = vmatpush1.bf16.xpose.msra.mxu0 0
  %331 = vmatprep.subr.bf16.mxu0 0
  %332 = vmatpush1.bf16.xpose.msra.mxu0 0
  %333 = vmatprep.subr.bf16.mxu0 0
  %334 = vmatpush1.bf16.xpose.msra.mxu0 0
  %335 = vmatprep.subr.bf16.mxu0 0
  %336 = vmatpush1.bf16.xpose.msra.mxu0 0
  %337 = vmatprep.subr.bf16.mxu0 0
  %338 = vmatpush1.bf16.xpose.msra.mxu0 0
  %339 = vmatprep.subr.bf16.mxu0 0
  %340 = vmatpush1.bf16.xpose.msra.mxu0 0
  %341 = vmatprep.subr.bf16.mxu0 0
  %342 = vmatpush1.bf16.xpose.msra.mxu0 %v325
  %343 = vmatprep.subr.bf16.mxu0 0
  %344 = vmatpush2.bf16.xpose.msra.mxu0 0
  %345 = vmatprep.subr.bf16.mxu0 0
  %346 = vmatpush2.bf16.xpose.msra.mxu0 0
  %347 = vmatprep.subr.bf16.mxu0 0
  %348 = vmatpush2.bf16.xpose.msra.mxu0 0
  %349 = vmatprep.subr.bf16.mxu0 0
  %350 = vmatpush2.bf16.xpose.msra.mxu0 0
  %351 = vmatprep.subr.bf16.mxu0 0
  %352 = vmatpush2.bf16.xpose.msra.mxu0 0
  %353 = vmatprep.subr.bf16.mxu0 0
  %354 = vmatpush2.bf16.xpose.msra.mxu0 0
  %355 = vmatprep.subr.bf16.mxu0 0
  %356 = vmatpush2.bf16.xpose.msra.mxu0 0
  %357 = vmatprep.subr.bf16.mxu0 0
  %358 = vmatpush2.bf16.xpose.msra.mxu0 0
  %359 = vmatprep.mubr.bf16.mxu0 0
  %360 = vmatmul.mubr.bf16.gmra.mxu0 %v322
  %v361 = vpop.f32.mrf.mxu0
  %v362 = vadd.f32 %v115, %v361
  %v363 = vpop.f32.mrf.mxu0
  %v364 = vpop.f32.mrf.mxu0
  %v365 = vpop.f32.mrf.mxu0
  %366 = vdwg.mxu0
  %v368 = vsel %vm136, %v25, 0
  %v371 = vsel %vm136, %v33, 0
  %373 = vmatprep.subr.bf16.mxu0 0
  %374 = vmatpush1.bf16.xpose.msra.mxu0 0
  %375 = vmatprep.subr.bf16.mxu0 0
  %376 = vmatpush1.bf16.xpose.msra.mxu0 0
  %377 = vmatprep.subr.bf16.mxu0 0
  %378 = vmatpush1.bf16.xpose.msra.mxu0 0
  %379 = vmatprep.subr.bf16.mxu0 0
  %380 = vmatpush1.bf16.xpose.msra.mxu0 0
  %381 = vmatprep.subr.bf16.mxu0 0
  %382 = vmatpush1.bf16.xpose.msra.mxu0 0
  %383 = vmatprep.subr.bf16.mxu0 0
  %384 = vmatpush1.bf16.xpose.msra.mxu0 0
  %385 = vmatprep.subr.bf16.mxu0 0
  %386 = vmatpush1.bf16.xpose.msra.mxu0 0
  %387 = vmatprep.subr.bf16.mxu0 0
  %388 = vmatpush1.bf16.xpose.msra.mxu0 %v371
  %389 = vmatprep.subr.bf16.mxu0 0
  %390 = vmatpush2.bf16.xpose.msra.mxu0 0
  %391 = vmatprep.subr.bf16.mxu0 0
  %392 = vmatpush2.bf16.xpose.msra.mxu0 0
  %393 = vmatprep.subr.bf16.mxu0 0
  %394 = vmatpush2.bf16.xpose.msra.mxu0 0
  %395 = vmatprep.subr.bf16.mxu0 0
  %396 = vmatpush2.bf16.xpose.msra.mxu0 0
  %397 = vmatprep.subr.bf16.mxu0 0
  %398 = vmatpush2.bf16.xpose.msra.mxu0 0
  %399 = vmatprep.subr.bf16.mxu0 0
  %400 = vmatpush2.bf16.xpose.msra.mxu0 0
  %401 = vmatprep.subr.bf16.mxu0 0
  %402 = vmatpush2.bf16.xpose.msra.mxu0 0
  %403 = vmatprep.subr.bf16.mxu0 0
  %404 = vmatpush2.bf16.xpose.msra.mxu0 0
  %405 = vmatprep.mubr.bf16.mxu0 0
  %406 = vmatmul.mubr.bf16.gmra.mxu0 %v368
  %v407 = vpop.f32.mrf.mxu0
  %v408 = vadd.f32 %v119, %v407
  %v409 = vpop.f32.mrf.mxu0
  %v410 = vpop.f32.mrf.mxu0
  %v411 = vpop.f32.mrf.mxu0
  %412 = vdwg.mxu0
  %v414 = vsel %vm136, %v26, 0
  %v417 = vsel %vm136, %v34, 0
  %419 = vmatprep.subr.bf16.mxu0 0
  %420 = vmatpush1.bf16.xpose.msra.mxu0 0
  %421 = vmatprep.subr.bf16.mxu0 0
  %422 = vmatpush1.bf16.xpose.msra.mxu0 0
  %423 = vmatprep.subr.bf16.mxu0 0
  %424 = vmatpush1.bf16.xpose.msra.mxu0 0
  %425 = vmatprep.subr.bf16.mxu0 0
  %426 = vmatpush1.bf16.xpose.msra.mxu0 0
  %427 = vmatprep.subr.bf16.mxu0 0
  %428 = vmatpush1.bf16.xpose.msra.mxu0 0
  %429 = vmatprep.subr.bf16.mxu0 0
  %430 = vmatpush1.bf16.xpose.msra.mxu0 0
  %431 = vmatprep.subr.bf16.mxu0 0
  %432 = vmatpush1.bf16.xpose.msra.mxu0 0
  %433 = vmatprep.subr.bf16.mxu0 0
  %434 = vmatpush1.bf16.xpose.msra.mxu0 %v417
  %435 = vmatprep.subr.bf16.mxu0 0
  %436 = vmatpush2.bf16.xpose.msra.mxu0 0
  %437 = vmatprep.subr.bf16.mxu0 0
  %438 = vmatpush2.bf16.xpose.msra.mxu0 0
  %439 = vmatprep.subr.bf16.mxu0 0
  %440 = vmatpush2.bf16.xpose.msra.mxu0 0
  %441 = vmatprep.subr.bf16.mxu0 0
  %442 = vmatpush2.bf16.xpose.msra.mxu0 0
  %443 = vmatprep.subr.bf16.mxu0 0
  %444 = vmatpush2.bf16.xpose.msra.mxu0 0
  %445 = vmatprep.subr.bf16.mxu0 0
  %446 = vmatpush2.bf16.xpose.msra.mxu0 0
  %447 = vmatprep.subr.bf16.mxu0 0
  %448 = vmatpush2.bf16.xpose.msra.mxu0 0
  %449 = vmatprep.subr.bf16.mxu0 0
  %450 = vmatpush2.bf16.xpose.msra.mxu0 0
  %451 = vmatprep.mubr.bf16.mxu0 0
  %452 = vmatmul.mubr.bf16.gmra.mxu0 %v414
  %v453 = vpop.f32.mrf.mxu0
  %v454 = vadd.f32 %v123, %v453
  %v455 = vpop.f32.mrf.mxu0
  %v456 = vpop.f32.mrf.mxu0
  %v457 = vpop.f32.mrf.mxu0
  %458 = vdwg.mxu0
  %v460 = vsel %vm136, %v27, 0
  %v463 = vsel %vm136, %v35, 0
  %465 = vmatprep.subr.bf16.mxu0 0
  %466 = vmatpush1.bf16.xpose.msra.mxu0 0
  %467 = vmatprep.subr.bf16.mxu0 0
  %468 = vmatpush1.bf16.xpose.msra.mxu0 0
  %469 = vmatprep.subr.bf16.mxu0 0
  %470 = vmatpush1.bf16.xpose.msra.mxu0 0
  %471 = vmatprep.subr.bf16.mxu0 0
  %472 = vmatpush1.bf16.xpose.msra.mxu0 0
  %473 = vmatprep.subr.bf16.mxu0 0
  %474 = vmatpush1.bf16.xpose.msra.mxu0 0
  %475 = vmatprep.subr.bf16.mxu0 0
  %476 = vmatpush1.bf16.xpose.msra.mxu0 0
  %477 = vmatprep.subr.bf16.mxu0 0
  %478 = vmatpush1.bf16.xpose.msra.mxu0 0
  %479 = vmatprep.subr.bf16.mxu0 0
  %480 = vmatpush1.bf16.xpose.msra.mxu0 %v463
  %481 = vmatprep.subr.bf16.mxu0 0
  %482 = vmatpush2.bf16.xpose.msra.mxu0 0
  %483 = vmatprep.subr.bf16.mxu0 0
  %484 = vmatpush2.bf16.xpose.msra.mxu0 0
  %485 = vmatprep.subr.bf16.mxu0 0
  %486 = vmatpush2.bf16.xpose.msra.mxu0 0
  %487 = vmatprep.subr.bf16.mxu0 0
  %488 = vmatpush2.bf16.xpose.msra.mxu0 0
  %489 = vmatprep.subr.bf16.mxu0 0
  %490 = vmatpush2.bf16.xpose.msra.mxu0 0
  %491 = vmatprep.subr.bf16.mxu0 0
  %492 = vmatpush2.bf16.xpose.msra.mxu0 0
  %493 = vmatprep.subr.bf16.mxu0 0
  %494 = vmatpush2.bf16.xpose.msra.mxu0 0
  %495 = vmatprep.subr.bf16.mxu0 0
  %496 = vmatpush2.bf16.xpose.msra.mxu0 0
  %497 = vmatprep.mubr.bf16.mxu0 0
  %498 = vmatmul.mubr.bf16.gmra.mxu0 %v460
  %v499 = vpop.f32.mrf.mxu0
  %v500 = vadd.f32 %v127, %v499
  %v501 = vpop.f32.mrf.mxu0
  %v502 = vpop.f32.mrf.mxu0
  %v503 = vpop.f32.mrf.mxu0
  %504 = vdwg.mxu0
  %vm505 = vcmask 31744
  %v506 = vsel %vm505, %v178, -inf
  %507 = vmax.xlane.f32.xlu0 %v506
  %v508 = vpop.xlane.xlu0 %507
  %v509 = vsel %vm505, %v224, -inf
  %510 = vmax.xlane.f32.xlu0 %v509
  %v511 = vpop.xlane.xlu0 %510
  %v512 = vsel %vm505, %v270, -inf
  %513 = vmax.xlane.f32.xlu0 %v512
  %v514 = vpop.xlane.xlu0 %513
  %v515 = vsel %vm505, %v316, -inf
  %516 = vmax.xlane.f32.xlu0 %v515
  %v517 = vpop.xlane.xlu0 %516
  %v518 = vsel %vm505, %v362, -inf
  %519 = vmax.xlane.f32.xlu0 %v518
  %v520 = vpop.xlane.xlu0 %519
  %v521 = vsel %vm505, %v408, -inf
  %522 = vmax.xlane.f32.xlu0 %v521
  %v523 = vpop.xlane.xlu0 %522
  %v524 = vsel %vm505, %v454, -inf
  %525 = vmax.xlane.f32.xlu0 %v524
  %v526 = vpop.xlane.xlu0 %525
  %v527 = vsel %vm505, %v500, -inf
  %528 = vmax.xlane.f32.xlu0 %v527
  %v529 = vpop.xlane.xlu0 %528
  %v530 = vsub.f32 %v178, %v508
  %v531 = vsub.f32 %v224, %v511
  %v532 = vsub.f32 %v270, %v514
  %v533 = vsub.f32 %v316, %v517
  %v534 = vsub.f32 %v362, %v520
  %v535 = vsub.f32 %v408, %v523
  %v536 = vsub.f32 %v454, %v526
  %v537 = vsub.f32 %v500, %v529
  %v538 = vmul.f32 %v530, 1.442695
  %v539 = vpow.pop %v538
  %v540 = vmul.f32 %v531, 1.442695
  %v541 = vpow.pop %v540
  %v542 = vmul.f32 %v532, 1.442695
  %v543 = vpow.pop %v542
  %v544 = vmul.f32 %v533, 1.442695
  %v545 = vpow.pop %v544
  %v546 = vmul.f32 %v534, 1.442695
  %v547 = vpow.pop %v546
  %v548 = vmul.f32 %v535, 1.442695
  %v549 = vpow.pop %v548
  %v550 = vmul.f32 %v536, 1.442695
  %v551 = vpow.pop %v550
  %v552 = vmul.f32 %v537, 1.442695
  %v553 = vpow.pop %v552
  %v554 = vsel %vm505, %v539, 0.0
  %555 = vadd.xlane.f32.xlu0 %v554
  %v556 = vpop.xlane.xlu0 %555
  %v557 = vsel %vm505, %v541, 0.0
  %558 = vadd.xlane.f32.xlu0 %v557
  %v559 = vpop.xlane.xlu0 %558
  %v560 = vsel %vm505, %v543, 0.0
  %561 = vadd.xlane.f32.xlu0 %v560
  %v562 = vpop.xlane.xlu0 %561
  %v563 = vsel %vm505, %v545, 0.0
  %564 = vadd.xlane.f32.xlu0 %v563
  %v565 = vpop.xlane.xlu0 %564
  %v566 = vsel %vm505, %v547, 0.0
  %567 = vadd.xlane.f32.xlu0 %v566
  %v568 = vpop.xlane.xlu0 %567
  %v569 = vsel %vm505, %v549, 0.0
  %570 = vadd.xlane.f32.xlu0 %v569
  %v571 = vpop.xlane.xlu0 %570
  %v572 = vsel %vm505, %v551, 0.0
  %573 = vadd.xlane.f32.xlu0 %v572
  %v574 = vpop.xlane.xlu0 %573
  %v575 = vsel %vm505, %v553, 0.0
  %576 = vadd.xlane.f32.xlu0 %v575
  %v577 = vpop.xlane.xlu0 %576
  %v578 = vrcp.pop %v556
  %v579 = vrcp.pop %v559
  %v580 = vrcp.pop %v562
  %v581 = vrcp.pop %v565
  %v582 = vrcp.pop %v568
  %v583 = vrcp.pop %v571
  %v584 = vrcp.pop %v574
  %v585 = vrcp.pop %v577
  %v586 = vmul.f32 %v539, %v578
  %v587 = vmul.f32 %v541, %v579
  %v588 = vmul.f32 %v543, %v580
  %v589 = vmul.f32 %v545, %v581
  %v590 = vmul.f32 %v547, %v582
  %v591 = vmul.f32 %v549, %v583
  %v592 = vmul.f32 %v551, %v584
  %v593 = vmul.f32 %v553, %v585
  %v594 = vpack.c.bf16 %v586, %v586
  %v595 = vpack.c.bf16 %v587, %v587
  %v596 = vpack.c.bf16 %v588, %v588
  %v597 = vpack.c.bf16 %v589, %v589
  %v598 = vpack.c.bf16 %v590, %v590
  %v599 = vpack.c.bf16 %v591, %v591
  %v600 = vpack.c.bf16 %v592, %v592
  %v601 = vpack.c.bf16 %v593, %v593
  %v602 = vld [vmem:[%s3] sm:$0xf]
  %v603 = vld [vmem:[%s3 + $0x4] sm:$0xf]
  %v604 = vld [vmem:[%s3 + $0x8] sm:$0xf]
  %v605 = vld [vmem:[%s3 + $0xc] sm:$0xf]
  %v610 = vunpack.c.l.b16 %v602
  %v611 = vunpack.c.l.b16 %v603
  %v612 = vunpack.c.l.b16 %v604
  %v613 = vunpack.c.l.b16 %v605
  %v614 = vpack.c.b16 %v611, %v610
  %v615 = vpack.c.b16 %v613, %v612
  %618 = vmatprep.subr.bf16.mxu0 0
  %619 = vmatpush1.bf16.msra.mxu0 0
  %620 = vmatprep.subr.bf16.mxu0 0
  %621 = vmatpush1.bf16.msra.mxu0 0
  %622 = vmatprep.subr.bf16.mxu0 0
  %623 = vmatpush1.bf16.msra.mxu0 0
  %624 = vmatprep.subr.bf16.mxu0 0
  %625 = vmatpush1.bf16.msra.mxu0 0
  %626 = vmatprep.subr.bf16.mxu0 0
  %627 = vmatpush1.bf16.msra.mxu0 0
  %628 = vmatprep.subr.bf16.mxu0 0
  %629 = vmatpush1.bf16.msra.mxu0 0
  %630 = vmatprep.subr.bf16.mxu0 0
  %631 = vmatpush1.bf16.msra.mxu0 %v615
  %632 = vmatprep.subr.bf16.mxu0 0
  %633 = vmatpush1.bf16.msra.mxu0 %v614
  %634 = vmatprep.subr.bf16.mxu0 0
  %635 = vmatpush2.bf16.msra.mxu0 0
  %636 = vmatprep.subr.bf16.mxu0 0
  %637 = vmatpush2.bf16.msra.mxu0 0
  %638 = vmatprep.subr.bf16.mxu0 0
  %639 = vmatpush2.bf16.msra.mxu0 0
  %640 = vmatprep.subr.bf16.mxu0 0
  %641 = vmatpush2.bf16.msra.mxu0 0
  %642 = vmatprep.subr.bf16.mxu0 0
  %643 = vmatpush2.bf16.msra.mxu0 0
  %644 = vmatprep.subr.bf16.mxu0 0
  %645 = vmatpush2.bf16.msra.mxu0 0
  %646 = vmatprep.subr.bf16.mxu0 0
  %647 = vmatpush2.bf16.msra.mxu0 0
  %648 = vmatprep.subr.bf16.mxu0 0
  %649 = vmatpush2.bf16.msra.mxu0 0
  %650 = vmatprep.mubr.bf16.mxu0 0
  %651 = vmatmul.mubr.bf16.gmra.mxu0 %v138
  %v652 = vpop.f32.mrf.mxu0
  %v653 = vadd.f32 0.0, %v652
  %v654 = vpop.f32.mrf.mxu0
  %v655 = vpop.f32.mrf.mxu0
  %v656 = vpop.f32.mrf.mxu0
  %657 = vdwg.mxu0
  %658 = vmatprep.subr.bf16.mxu0 0
  %659 = vmatpush1.bf16.msra.mxu0 0
  %660 = vmatprep.subr.bf16.mxu0 0
  %661 = vmatpush1.bf16.msra.mxu0 0
  %662 = vmatprep.subr.bf16.mxu0 0
  %663 = vmatpush1.bf16.msra.mxu0 0
  %664 = vmatprep.subr.bf16.mxu0 0
  %665 = vmatpush1.bf16.msra.mxu0 0
  %666 = vmatprep.subr.bf16.mxu0 0
  %667 = vmatpush1.bf16.msra.mxu0 0
  %668 = vmatprep.subr.bf16.mxu0 0
  %669 = vmatpush1.bf16.msra.mxu0 0
  %670 = vmatprep.subr.bf16.mxu0 0
  %671 = vmatpush1.bf16.msra.mxu0 %v615
  %672 = vmatprep.subr.bf16.mxu0 0
  %673 = vmatpush1.bf16.msra.mxu0 %v614
  %674 = vmatprep.subr.bf16.mxu0 0
  %675 = vmatpush2.bf16.msra.mxu0 0
  %676 = vmatprep.subr.bf16.mxu0 0
  %677 = vmatpush2.bf16.msra.mxu0 0
  %678 = vmatprep.subr.bf16.mxu0 0
  %679 = vmatpush2.bf16.msra.mxu0 0
  %680 = vmatprep.subr.bf16.mxu0 0
  %681 = vmatpush2.bf16.msra.mxu0 0
  %682 = vmatprep.subr.bf16.mxu0 0
  %683 = vmatpush2.bf16.msra.mxu0 0
  %684 = vmatprep.subr.bf16.mxu0 0
  %685 = vmatpush2.bf16.msra.mxu0 0
  %686 = vmatprep.subr.bf16.mxu0 0
  %687 = vmatpush2.bf16.msra.mxu0 0
  %688 = vmatprep.subr.bf16.mxu0 0
  %689 = vmatpush2.bf16.msra.mxu0 0
  %690 = vmatprep.mubr.bf16.mxu0 0
  %691 = vmatmul.mubr.bf16.gmra.mxu0 %v184
  %v692 = vpop.f32.mrf.mxu0
  %v693 = vadd.f32 0.0, %v692
  %v694 = vpop.f32.mrf.mxu0
  %v695 = vpop.f32.mrf.mxu0
  %v696 = vpop.f32.mrf.mxu0
  %697 = vdwg.mxu0
  %698 = vmatprep.subr.bf16.mxu0 0
  %699 = vmatpush1.bf16.msra.mxu0 0
  %700 = vmatprep.subr.bf16.mxu0 0
  %701 = vmatpush1.bf16.msra.mxu0 0
  %702 = vmatprep.subr.bf16.mxu0 0
  %703 = vmatpush1.bf16.msra.mxu0 0
  %704 = vmatprep.subr.bf16.mxu0 0
  %705 = vmatpush1.bf16.msra.mxu0 0
  %706 = vmatprep.subr.bf16.mxu0 0
  %707 = vmatpush1.bf16.msra.mxu0 0
  %708 = vmatprep.subr.bf16.mxu0 0
  %709 = vmatpush1.bf16.msra.mxu0 0
  %710 = vmatprep.subr.bf16.mxu0 0
  %711 = vmatpush1.bf16.msra.mxu0 %v615
  %712 = vmatprep.subr.bf16.mxu0 0
  %713 = vmatpush1.bf16.msra.mxu0 %v614
  %714 = vmatprep.subr.bf16.mxu0 0
  %715 = vmatpush2.bf16.msra.mxu0 0
  %716 = vmatprep.subr.bf16.mxu0 0
  %717 = vmatpush2.bf16.msra.mxu0 0
  %718 = vmatprep.subr.bf16.mxu0 0
  %719 = vmatpush2.bf16.msra.mxu0 0
  %720 = vmatprep.subr.bf16.mxu0 0
  %721 = vmatpush2.bf16.msra.mxu0 0
  %722 = vmatprep.subr.bf16.mxu0 0
  %723 = vmatpush2.bf16.msra.mxu0 0
  %724 = vmatprep.subr.bf16.mxu0 0
  %725 = vmatpush2.bf16.msra.mxu0 0
  %726 = vmatprep.subr.bf16.mxu0 0
  %727 = vmatpush2.bf16.msra.mxu0 0
  %728 = vmatprep.subr.bf16.mxu0 0
  %729 = vmatpush2.bf16.msra.mxu0 0
  %730 = vmatprep.mubr.bf16.mxu0 0
  %731 = vmatmul.mubr.bf16.gmra.mxu0 %v230
  %v732 = vpop.f32.mrf.mxu0
  %v733 = vadd.f32 0.0, %v732
  %v734 = vpop.f32.mrf.mxu0
  %v735 = vpop.f32.mrf.mxu0
  %v736 = vpop.f32.mrf.mxu0
  %737 = vdwg.mxu0
  %738 = vmatprep.subr.bf16.mxu0 0
  %739 = vmatpush1.bf16.msra.mxu0 0
  %740 = vmatprep.subr.bf16.mxu0 0
  %741 = vmatpush1.bf16.msra.mxu0 0
  %742 = vmatprep.subr.bf16.mxu0 0
  %743 = vmatpush1.bf16.msra.mxu0 0
  %744 = vmatprep.subr.bf16.mxu0 0
  %745 = vmatpush1.bf16.msra.mxu0 0
  %746 = vmatprep.subr.bf16.mxu0 0
  %747 = vmatpush1.bf16.msra.mxu0 0
  %748 = vmatprep.subr.bf16.mxu0 0
  %749 = vmatpush1.bf16.msra.mxu0 0
  %750 = vmatprep.subr.bf16.mxu0 0
  %751 = vmatpush1.bf16.msra.mxu0 %v615
  %752 = vmatprep.subr.bf16.mxu0 0
  %753 = vmatpush1.bf16.msra.mxu0 %v614
  %754 = vmatprep.subr.bf16.mxu0 0
  %755 = vmatpush2.bf16.msra.mxu0 0
  %756 = vmatprep.subr.bf16.mxu0 0
  %757 = vmatpush2.bf16.msra.mxu0 0
  %758 = vmatprep.subr.bf16.mxu0 0
  %759 = vmatpush2.bf16.msra.mxu0 0
  %760 = vmatprep.subr.bf16.mxu0 0
  %761 = vmatpush2.bf16.msra.mxu0 0
  %762 = vmatprep.subr.bf16.mxu0 0
  %763 = vmatpush2.bf16.msra.mxu0 0
  %764 = vmatprep.subr.bf16.mxu0 0
  %765 = vmatpush2.bf16.msra.mxu0 0
  %766 = vmatprep.subr.bf16.mxu0 0
  %767 = vmatpush2.bf16.msra.mxu0 0
  %768 = vmatprep.subr.bf16.mxu0 0
  %769 = vmatpush2.bf16.msra.mxu0 0
  %770 = vmatprep.mubr.bf16.mxu0 0
  %771 = vmatmul.mubr.bf16.gmra.mxu0 %v276
  %v772 = vpop.f32.mrf.mxu0
  %v773 = vadd.f32 0.0, %v772
  %v774 = vpop.f32.mrf.mxu0
  %v775 = vpop.f32.mrf.mxu0
  %v776 = vpop.f32.mrf.mxu0
  %777 = vdwg.mxu0
  %778 = vmatprep.subr.bf16.mxu0 0
  %779 = vmatpush1.bf16.msra.mxu0 0
  %780 = vmatprep.subr.bf16.mxu0 0
  %781 = vmatpush1.bf16.msra.mxu0 0
  %782 = vmatprep.subr.bf16.mxu0 0
  %783 = vmatpush1.bf16.msra.mxu0 0
  %784 = vmatprep.subr.bf16.mxu0 0
  %785 = vmatpush1.bf16.msra.mxu0 0
  %786 = vmatprep.subr.bf16.mxu0 0
  %787 = vmatpush1.bf16.msra.mxu0 0
  %788 = vmatprep.subr.bf16.mxu0 0
  %789 = vmatpush1.bf16.msra.mxu0 0
  %790 = vmatprep.subr.bf16.mxu0 0
  %791 = vmatpush1.bf16.msra.mxu0 %v615
  %792 = vmatprep.subr.bf16.mxu0 0
  %793 = vmatpush1.bf16.msra.mxu0 %v614
  %794 = vmatprep.subr.bf16.mxu0 0
  %795 = vmatpush2.bf16.msra.mxu0 0
  %796 = vmatprep.subr.bf16.mxu0 0
  %797 = vmatpush2.bf16.msra.mxu0 0
  %798 = vmatprep.subr.bf16.mxu0 0
  %799 = vmatpush2.bf16.msra.mxu0 0
  %800 = vmatprep.subr.bf16.mxu0 0
  %801 = vmatpush2.bf16.msra.mxu0 0
  %802 = vmatprep.subr.bf16.mxu0 0
  %803 = vmatpush2.bf16.msra.mxu0 0
  %804 = vmatprep.subr.bf16.mxu0 0
  %805 = vmatpush2.bf16.msra.mxu0 0
  %806 = vmatprep.subr.bf16.mxu0 0
  %807 = vmatpush2.bf16.msra.mxu0 0
  %808 = vmatprep.subr.bf16.mxu0 0
  %809 = vmatpush2.bf16.msra.mxu0 0
  %810 = vmatprep.mubr.bf16.mxu0 0
  %811 = vmatmul.mubr.bf16.gmra.mxu0 %v322
  %v812 = vpop.f32.mrf.mxu0
  %v813 = vadd.f32 0.0, %v812
  %v814 = vpop.f32.mrf.mxu0
  %v815 = vpop.f32.mrf.mxu0
  %v816 = vpop.f32.mrf.mxu0
  %817 = vdwg.mxu0
  %818 = vmatprep.subr.bf16.mxu0 0
  %819 = vmatpush1.bf16.msra.mxu0 0
  %820 = vmatprep.subr.bf16.mxu0 0
  %821 = vmatpush1.bf16.msra.mxu0 0
  %822 = vmatprep.subr.bf16.mxu0 0
  %823 = vmatpush1.bf16.msra.mxu0 0
  %824 = vmatprep.subr.bf16.mxu0 0
  %825 = vmatpush1.bf16.msra.mxu0 0
  %826 = vmatprep.subr.bf16.mxu0 0
  %827 = vmatpush1.bf16.msra.mxu0 0
  %828 = vmatprep.subr.bf16.mxu0 0
  %829 = vmatpush1.bf16.msra.mxu0 0
  %830 = vmatprep.subr.bf16.mxu0 0
  %831 = vmatpush1.bf16.msra.mxu0 %v615
  %832 = vmatprep.subr.bf16.mxu0 0
  %833 = vmatpush1.bf16.msra.mxu0 %v614
  %834 = vmatprep.subr.bf16.mxu0 0
  %835 = vmatpush2.bf16.msra.mxu0 0
  %836 = vmatprep.subr.bf16.mxu0 0
  %837 = vmatpush2.bf16.msra.mxu0 0
  %838 = vmatprep.subr.bf16.mxu0 0
  %839 = vmatpush2.bf16.msra.mxu0 0
  %840 = vmatprep.subr.bf16.mxu0 0
  %841 = vmatpush2.bf16.msra.mxu0 0
  %842 = vmatprep.subr.bf16.mxu0 0
  %843 = vmatpush2.bf16.msra.mxu0 0
  %844 = vmatprep.subr.bf16.mxu0 0
  %845 = vmatpush2.bf16.msra.mxu0 0
  %846 = vmatprep.subr.bf16.mxu0 0
  %847 = vmatpush2.bf16.msra.mxu0 0
  %848 = vmatprep.subr.bf16.mxu0 0
  %849 = vmatpush2.bf16.msra.mxu0 0
  %850 = vmatprep.mubr.bf16.mxu0 0
  %851 = vmatmul.mubr.bf16.gmra.mxu0 %v368
  %v852 = vpop.f32.mrf.mxu0
  %v853 = vadd.f32 0.0, %v852
  %v854 = vpop.f32.mrf.mxu0
  %v855 = vpop.f32.mrf.mxu0
  %v856 = vpop.f32.mrf.mxu0
  %857 = vdwg.mxu0
  %858 = vmatprep.subr.bf16.mxu0 0
  %859 = vmatpush1.bf16.msra.mxu0 0
  %860 = vmatprep.subr.bf16.mxu0 0
  %861 = vmatpush1.bf16.msra.mxu0 0
  %862 = vmatprep.subr.bf16.mxu0 0
  %863 = vmatpush1.bf16.msra.mxu0 0
  %864 = vmatprep.subr.bf16.mxu0 0
  %865 = vmatpush1.bf16.msra.mxu0 0
  %866 = vmatprep.subr.bf16.mxu0 0
  %867 = vmatpush1.bf16.msra.mxu0 0
  %868 = vmatprep.subr.bf16.mxu0 0
  %869 = vmatpush1.bf16.msra.mxu0 0
  %870 = vmatprep.subr.bf16.mxu0 0
  %871 = vmatpush1.bf16.msra.mxu0 %v615
  %872 = vmatprep.subr.bf16.mxu0 0
  %873 = vmatpush1.bf16.msra.mxu0 %v614
  %874 = vmatprep.subr.bf16.mxu0 0
  %875 = vmatpush2.bf16.msra.mxu0 0
  %876 = vmatprep.subr.bf16.mxu0 0
  %877 = vmatpush2.bf16.msra.mxu0 0
  %878 = vmatprep.subr.bf16.mxu0 0
  %879 = vmatpush2.bf16.msra.mxu0 0
  %880 = vmatprep.subr.bf16.mxu0 0
  %881 = vmatpush2.bf16.msra.mxu0 0
  %882 = vmatprep.subr.bf16.mxu0 0
  %883 = vmatpush2.bf16.msra.mxu0 0
  %884 = vmatprep.subr.bf16.mxu0 0
  %885 = vmatpush2.bf16.msra.mxu0 0
  %886 = vmatprep.subr.bf16.mxu0 0
  %887 = vmatpush2.bf16.msra.mxu0 0
  %888 = vmatprep.subr.bf16.mxu0 0
  %889 = vmatpush2.bf16.msra.mxu0 0
  %890 = vmatprep.mubr.bf16.mxu0 0
  %891 = vmatmul.mubr.bf16.gmra.mxu0 %v414
  %v892 = vpop.f32.mrf.mxu0
  %v893 = vadd.f32 0.0, %v892
  %v894 = vpop.f32.mrf.mxu0
  %v895 = vpop.f32.mrf.mxu0
  %v896 = vpop.f32.mrf.mxu0
  %897 = vdwg.mxu0
  %898 = vmatprep.subr.bf16.mxu0 0
  %899 = vmatpush1.bf16.msra.mxu0 0
  %900 = vmatprep.subr.bf16.mxu0 0
  %901 = vmatpush1.bf16.msra.mxu0 0
  %902 = vmatprep.subr.bf16.mxu0 0
  %903 = vmatpush1.bf16.msra.mxu0 0
  %904 = vmatprep.subr.bf16.mxu0 0
  %905 = vmatpush1.bf16.msra.mxu0 0
  %906 = vmatprep.subr.bf16.mxu0 0
  %907 = vmatpush1.bf16.msra.mxu0 0
  %908 = vmatprep.subr.bf16.mxu0 0
  %909 = vmatpush1.bf16.msra.mxu0 0
  %910 = vmatprep.subr.bf16.mxu0 0
  %911 = vmatpush1.bf16.msra.mxu0 %v615
  %912 = vmatprep.subr.bf16.mxu0 0
  %913 = vmatpush1.bf16.msra.mxu0 %v614
  %914 = vmatprep.subr.bf16.mxu0 0
  %915 = vmatpush2.bf16.msra.mxu0 0
  %916 = vmatprep.subr.bf16.mxu0 0
  %917 = vmatpush2.bf16.msra.mxu0 0
  %918 = vmatprep.subr.bf16.mxu0 0
  %919 = vmatpush2.bf16.msra.mxu0 0
  %920 = vmatprep.subr.bf16.mxu0 0
  %921 = vmatpush2.bf16.msra.mxu0 0
  %922 = vmatprep.subr.bf16.mxu0 0
  %923 = vmatpush2.bf16.msra.mxu0 0
  %924 = vmatprep.subr.bf16.mxu0 0
  %925 = vmatpush2.bf16.msra.mxu0 0
  %926 = vmatprep.subr.bf16.mxu0 0
  %927 = vmatpush2.bf16.msra.mxu0 0
  %928 = vmatprep.subr.bf16.mxu0 0
  %929 = vmatpush2.bf16.msra.mxu0 0
  %930 = vmatprep.mubr.bf16.mxu0 0
  %931 = vmatmul.mubr.bf16.gmra.mxu0 %v460
  %v932 = vpop.f32.mrf.mxu0
  %v933 = vadd.f32 0.0, %v932
  %v934 = vpop.f32.mrf.mxu0
  %v935 = vpop.f32.mrf.mxu0
  %v936 = vpop.f32.mrf.mxu0
  %937 = vdwg.mxu0
  %v939 = vsel %vm505, %v594, 0
  %vm941 = vcmask 1041408
  %v943 = vsel %vm941, %v37, 0
  %945 = vmatprep.subr.bf16.mxu0 0
  %946 = vmatpush1.bf16.msra.mxu0 0
  %947 = vmatprep.subr.bf16.mxu0 0
  %948 = vmatpush1.bf16.msra.mxu0 0
  %949 = vmatprep.subr.bf16.mxu0 0
  %950 = vmatpush1.bf16.msra.mxu0 0
  %951 = vmatprep.subr.bf16.mxu0 0
  %952 = vmatpush1.bf16.msra.mxu0 0
  %953 = vmatprep.subr.bf16.mxu0 0
  %954 = vmatpush1.bf16.msra.mxu0 0
  %955 = vmatprep.subr.bf16.mxu0 0
  %956 = vmatpush1.bf16.msra.mxu0 0
  %957 = vmatprep.subr.bf16.mxu0 0
  %958 = vmatpush1.bf16.msra.mxu0 0
  %959 = vmatprep.subr.bf16.mxu0 0
  %960 = vmatpush1.bf16.msra.mxu0 %v943
  %961 = vmatprep.subr.bf16.mxu0 0
  %962 = vmatpush2.bf16.msra.mxu0 0
  %963 = vmatprep.subr.bf16.mxu0 0
  %964 = vmatpush2.bf16.msra.mxu0 0
  %965 = vmatprep.subr.bf16.mxu0 0
  %966 = vmatpush2.bf16.msra.mxu0 0
  %967 = vmatprep.subr.bf16.mxu0 0
  %968 = vmatpush2.bf16.msra.mxu0 0
  %969 = vmatprep.subr.bf16.mxu0 0
  %970 = vmatpush2.bf16.msra.mxu0 0
  %971 = vmatprep.subr.bf16.mxu0 0
  %972 = vmatpush2.bf16.msra.mxu0 0
  %973 = vmatprep.subr.bf16.mxu0 0
  %974 = vmatpush2.bf16.msra.mxu0 0
  %975 = vmatprep.subr.bf16.mxu0 0
  %976 = vmatpush2.bf16.msra.mxu0 0
  %977 = vmatprep.mubr.bf16.mxu0 0
  %978 = vmatmul.mubr.bf16.gmra.mxu0 %v939
  %v979 = vpop.f32.mrf.mxu0
  %v980 = vadd.f32 %v653, %v979
  %v981 = vpop.f32.mrf.mxu0
  %v982 = vpop.f32.mrf.mxu0
  %v983 = vpop.f32.mrf.mxu0
  %984 = vdwg.mxu0
  %v986 = vsel %vm505, %v595, 0
  %v989 = vsel %vm941, %v38, 0
  %991 = vmatprep.subr.bf16.mxu0 0
  %992 = vmatpush1.bf16.msra.mxu0 0
  %993 = vmatprep.subr.bf16.mxu0 0
  %994 = vmatpush1.bf16.msra.mxu0 0
  %995 = vmatprep.subr.bf16.mxu0 0
  %996 = vmatpush1.bf16.msra.mxu0 0
  %997 = vmatprep.subr.bf16.mxu0 0
  %998 = vmatpush1.bf16.msra.mxu0 0
  %999 = vmatprep.subr.bf16.mxu0 0
  %1000 = vmatpush1.bf16.msra.mxu0 0
  %1001 = vmatprep.subr.bf16.mxu0 0
  %1002 = vmatpush1.bf16.msra.mxu0 0
  %1003 = vmatprep.subr.bf16.mxu0 0
  %1004 = vmatpush1.bf16.msra.mxu0 0
  %1005 = vmatprep.subr.bf16.mxu0 0
  %1006 = vmatpush1.bf16.msra.mxu0 %v989
  %1007 = vmatprep.subr.bf16.mxu0 0
  %1008 = vmatpush2.bf16.msra.mxu0 0
  %1009 = vmatprep.subr.bf16.mxu0 0
  %1010 = vmatpush2.bf16.msra.mxu0 0
  %1011 = vmatprep.subr.bf16.mxu0 0
  %1012 = vmatpush2.bf16.msra.mxu0 0
  %1013 = vmatprep.subr.bf16.mxu0 0
  %1014 = vmatpush2.bf16.msra.mxu0 0
  %1015 = vmatprep.subr.bf16.mxu0 0
  %1016 = vmatpush2.bf16.msra.mxu0 0
  %1017 = vmatprep.subr.bf16.mxu0 0
  %1018 = vmatpush2.bf16.msra.mxu0 0
  %1019 = vmatprep.subr.bf16.mxu0 0
  %1020 = vmatpush2.bf16.msra.mxu0 0
  %1021 = vmatprep.subr.bf16.mxu0 0
  %1022 = vmatpush2.bf16.msra.mxu0 0
  %1023 = vmatprep.mubr.bf16.mxu0 0
  %1024 = vmatmul.mubr.bf16.gmra.mxu0 %v986
  %v1025 = vpop.f32.mrf.mxu0
  %v1026 = vadd.f32 %v693, %v1025
  %v1027 = vpop.f32.mrf.mxu0
  %v1028 = vpop.f32.mrf.mxu0
  %v1029 = vpop.f32.mrf.mxu0
  %1030 = vdwg.mxu0
  %v1032 = vsel %vm505, %v596, 0
  %v1035 = vsel %vm941, %v39, 0
  %1037 = vmatprep.subr.bf16.mxu0 0
  %1038 = vmatpush1.bf16.msra.mxu0 0
  %1039 = vmatprep.subr.bf16.mxu0 0
  %1040 = vmatpush1.bf16.msra.mxu0 0
  %1041 = vmatprep.subr.bf16.mxu0 0
  %1042 = vmatpush1.bf16.msra.mxu0 0
  %1043 = vmatprep.subr.bf16.mxu0 0
  %1044 = vmatpush1.bf16.msra.mxu0 0
  %1045 = vmatprep.subr.bf16.mxu0 0
  %1046 = vmatpush1.bf16.msra.mxu0 0
  %1047 = vmatprep.subr.bf16.mxu0 0
  %1048 = vmatpush1.bf16.msra.mxu0 0
  %1049 = vmatprep.subr.bf16.mxu0 0
  %1050 = vmatpush1.bf16.msra.mxu0 0
  %1051 = vmatprep.subr.bf16.mxu0 0
  %1052 = vmatpush1.bf16.msra.mxu0 %v1035
  %1053 = vmatprep.subr.bf16.mxu0 0
  %1054 = vmatpush2.bf16.msra.mxu0 0
  %1055 = vmatprep.subr.bf16.mxu0 0
  %1056 = vmatpush2.bf16.msra.mxu0 0
  %1057 = vmatprep.subr.bf16.mxu0 0
  %1058 = vmatpush2.bf16.msra.mxu0 0
  %1059 = vmatprep.subr.bf16.mxu0 0
  %1060 = vmatpush2.bf16.msra.mxu0 0
  %1061 = vmatprep.subr.bf16.mxu0 0
  %1062 = vmatpush2.bf16.msra.mxu0 0
  %1063 = vmatprep.subr.bf16.mxu0 0
  %1064 = vmatpush2.bf16.msra.mxu0 0
  %1065 = vmatprep.subr.bf16.mxu0 0
  %1066 = vmatpush2.bf16.msra.mxu0 0
  %1067 = vmatprep.subr.bf16.mxu0 0
  %1068 = vmatpush2.bf16.msra.mxu0 0
  %1069 = vmatprep.mubr.bf16.mxu0 0
  %1070 = vmatmul.mubr.bf16.gmra.mxu0 %v1032
  %v1071 = vpop.f32.mrf.mxu0
  %v1072 = vadd.f32 %v733, %v1071
  %v1073 = vpop.f32.mrf.mxu0
  %v1074 = vpop.f32.mrf.mxu0
  %v1075 = vpop.f32.mrf.mxu0
  %1076 = vdwg.mxu0
  %v1078 = vsel %vm505, %v597, 0
  %v1081 = vsel %vm941, %v40, 0
  %1083 = vmatprep.subr.bf16.mxu0 0
  %1084 = vmatpush1.bf16.msra.mxu0 0
  %1085 = vmatprep.subr.bf16.mxu0 0
  %1086 = vmatpush1.bf16.msra.mxu0 0
  %1087 = vmatprep.subr.bf16.mxu0 0
  %1088 = vmatpush1.bf16.msra.mxu0 0
  %1089 = vmatprep.subr.bf16.mxu0 0
  %1090 = vmatpush1.bf16.msra.mxu0 0
  %1091 = vmatprep.subr.bf16.mxu0 0
  %1092 = vmatpush1.bf16.msra.mxu0 0
  %1093 = vmatprep.subr.bf16.mxu0 0
  %1094 = vmatpush1.bf16.msra.mxu0 0
  %1095 = vmatprep.subr.bf16.mxu0 0
  %1096 = vmatpush1.bf16.msra.mxu0 0
  %1097 = vmatprep.subr.bf16.mxu0 0
  %1098 = vmatpush1.bf16.msra.mxu0 %v1081
  %1099 = vmatprep.subr.bf16.mxu0 0
  %1100 = vmatpush2.bf16.msra.mxu0 0
  %1101 = vmatprep.subr.bf16.mxu0 0
  %1102 = vmatpush2.bf16.msra.mxu0 0
  %1103 = vmatprep.subr.bf16.mxu0 0
  %1104 = vmatpush2.bf16.msra.mxu0 0
  %1105 = vmatprep.subr.bf16.mxu0 0
  %1106 = vmatpush2.bf16.msra.mxu0 0
  %1107 = vmatprep.subr.bf16.mxu0 0
  %1108 = vmatpush2.bf16.msra.mxu0 0
  %1109 = vmatprep.subr.bf16.mxu0 0
  %1110 = vmatpush2.bf16.msra.mxu0 0
  %1111 = vmatprep.subr.bf16.mxu0 0
  %1112 = vmatpush2.bf16.msra.mxu0 0
  %1113 = vmatprep.subr.bf16.mxu0 0
  %1114 = vmatpush2.bf16.msra.mxu0 0
  %1115 = vmatprep.mubr.bf16.mxu0 0
  %1116 = vmatmul.mubr.bf16.gmra.mxu0 %v1078
  %v1117 = vpop.f32.mrf.mxu0
  %v1118 = vadd.f32 %v773, %v1117
  %v1119 = vpop.f32.mrf.mxu0
  %v1120 = vpop.f32.mrf.mxu0
  %v1121 = vpop.f32.mrf.mxu0
  %1122 = vdwg.mxu0
  %v1124 = vsel %vm505, %v598, 0
  %v1127 = vsel %vm941, %v41, 0
  %1129 = vmatprep.subr.bf16.mxu0 0
  %1130 = vmatpush1.bf16.msra.mxu0 0
  %1131 = vmatprep.subr.bf16.mxu0 0
  %1132 = vmatpush1.bf16.msra.mxu0 0
  %1133 = vmatprep.subr.bf16.mxu0 0
  %1134 = vmatpush1.bf16.msra.mxu0 0
  %1135 = vmatprep.subr.bf16.mxu0 0
  %1136 = vmatpush1.bf16.msra.mxu0 0
  %1137 = vmatprep.subr.bf16.mxu0 0
  %1138 = vmatpush1.bf16.msra.mxu0 0
  %1139 = vmatprep.subr.bf16.mxu0 0
  %1140 = vmatpush1.bf16.msra.mxu0 0
  %1141 = vmatprep.subr.bf16.mxu0 0
  %1142 = vmatpush1.bf16.msra.mxu0 0
  %1143 = vmatprep.subr.bf16.mxu0 0
  %1144 = vmatpush1.bf16.msra.mxu0 %v1127
  %1145 = vmatprep.subr.bf16.mxu0 0
  %1146 = vmatpush2.bf16.msra.mxu0 0
  %1147 = vmatprep.subr.bf16.mxu0 0
  %1148 = vmatpush2.bf16.msra.mxu0 0
  %1149 = vmatprep.subr.bf16.mxu0 0
  %1150 = vmatpush2.bf16.msra.mxu0 0
  %1151 = vmatprep.subr.bf16.mxu0 0
  %1152 = vmatpush2.bf16.msra.mxu0 0
  %1153 = vmatprep.subr.bf16.mxu0 0
  %1154 = vmatpush2.bf16.msra.mxu0 0
  %1155 = vmatprep.subr.bf16.mxu0 0
  %1156 = vmatpush2.bf16.msra.mxu0 0
  %1157 = vmatprep.subr.bf16.mxu0 0
  %1158 = vmatpush2.bf16.msra.mxu0 0
  %1159 = vmatprep.subr.bf16.mxu0 0
  %1160 = vmatpush2.bf16.msra.mxu0 0
  %1161 = vmatprep.mubr.bf16.mxu0 0
  %1162 = vmatmul.mubr.bf16.gmra.mxu0 %v1124
  %v1163 = vpop.f32.mrf.mxu0
  %v1164 = vadd.f32 %v813, %v1163
  %v1165 = vpop.f32.mrf.mxu0
  %v1166 = vpop.f32.mrf.mxu0
  %v1167 = vpop.f32.mrf.mxu0
  %1168 = vdwg.mxu0
  %v1170 = vsel %vm505, %v599, 0
  %v1173 = vsel %vm941, %v42, 0
  %1175 = vmatprep.subr.bf16.mxu0 0
  %1176 = vmatpush1.bf16.msra.mxu0 0
  %1177 = vmatprep.subr.bf16.mxu0 0
  %1178 = vmatpush1.bf16.msra.mxu0 0
  %1179 = vmatprep.subr.bf16.mxu0 0
  %1180 = vmatpush1.bf16.msra.mxu0 0
  %1181 = vmatprep.subr.bf16.mxu0 0
  %1182 = vmatpush1.bf16.msra.mxu0 0
  %1183 = vmatprep.subr.bf16.mxu0 0
  %1184 = vmatpush1.bf16.msra.mxu0 0
  %1185 = vmatprep.subr.bf16.mxu0 0
  %1186 = vmatpush1.bf16.msra.mxu0 0
  %1187 = vmatprep.subr.bf16.mxu0 0
  %1188 = vmatpush1.bf16.msra.mxu0 0
  %1189 = vmatprep.subr.bf16.mxu0 0
  %1190 = vmatpush1.bf16.msra.mxu0 %v1173
  %1191 = vmatprep.subr.bf16.mxu0 0
  %1192 = vmatpush2.bf16.msra.mxu0 0
  %1193 = vmatprep.subr.bf16.mxu0 0
  %1194 = vmatpush2.bf16.msra.mxu0 0
  %1195 = vmatprep.subr.bf16.mxu0 0
  %1196 = vmatpush2.bf16.msra.mxu0 0
  %1197 = vmatprep.subr.bf16.mxu0 0
  %1198 = vmatpush2.bf16.msra.mxu0 0
  %1199 = vmatprep.subr.bf16.mxu0 0
  %1200 = vmatpush2.bf16.msra.mxu0 0
  %1201 = vmatprep.subr.bf16.mxu0 0
  %1202 = vmatpush2.bf16.msra.mxu0 0
  %1203 = vmatprep.subr.bf16.mxu0 0
  %1204 = vmatpush2.bf16.msra.mxu0 0
  %1205 = vmatprep.subr.bf16.mxu0 0
  %1206 = vmatpush2.bf16.msra.mxu0 0
  %1207 = vmatprep.mubr.bf16.mxu0 0
  %1208 = vmatmul.mubr.bf16.gmra.mxu0 %v1170
  %v1209 = vpop.f32.mrf.mxu0
  %v1210 = vadd.f32 %v853, %v1209
  %v1211 = vpop.f32.mrf.mxu0
  %v1212 = vpop.f32.mrf.mxu0
  %v1213 = vpop.f32.mrf.mxu0
  %1214 = vdwg.mxu0
  %v1216 = vsel %vm505, %v600, 0
  %v1219 = vsel %vm941, %v43, 0
  %1221 = vmatprep.subr.bf16.mxu0 0
  %1222 = vmatpush1.bf16.msra.mxu0 0
  %1223 = vmatprep.subr.bf16.mxu0 0
  %1224 = vmatpush1.bf16.msra.mxu0 0
  %1225 = vmatprep.subr.bf16.mxu0 0
  %1226 = vmatpush1.bf16.msra.mxu0 0
  %1227 = vmatprep.subr.bf16.mxu0 0
  %1228 = vmatpush1.bf16.msra.mxu0 0
  %1229 = vmatprep.subr.bf16.mxu0 0
  %1230 = vmatpush1.bf16.msra.mxu0 0
  %1231 = vmatprep.subr.bf16.mxu0 0
  %1232 = vmatpush1.bf16.msra.mxu0 0
  %1233 = vmatprep.subr.bf16.mxu0 0
  %1234 = vmatpush1.bf16.msra.mxu0 0
  %1235 = vmatprep.subr.bf16.mxu0 0
  %1236 = vmatpush1.bf16.msra.mxu0 %v1219
  %1237 = vmatprep.subr.bf16.mxu0 0
  %1238 = vmatpush2.bf16.msra.mxu0 0
  %1239 = vmatprep.subr.bf16.mxu0 0
  %1240 = vmatpush2.bf16.msra.mxu0 0
  %1241 = vmatprep.subr.bf16.mxu0 0
  %1242 = vmatpush2.bf16.msra.mxu0 0
  %1243 = vmatprep.subr.bf16.mxu0 0
  %1244 = vmatpush2.bf16.msra.mxu0 0
  %1245 = vmatprep.subr.bf16.mxu0 0
  %1246 = vmatpush2.bf16.msra.mxu0 0
  %1247 = vmatprep.subr.bf16.mxu0 0
  %1248 = vmatpush2.bf16.msra.mxu0 0
  %1249 = vmatprep.subr.bf16.mxu0 0
  %1250 = vmatpush2.bf16.msra.mxu0 0
  %1251 = vmatprep.subr.bf16.mxu0 0
  %1252 = vmatpush2.bf16.msra.mxu0 0
  %1253 = vmatprep.mubr.bf16.mxu0 0
  %1254 = vmatmul.mubr.bf16.gmra.mxu0 %v1216
  %v1255 = vpop.f32.mrf.mxu0
  %v1256 = vadd.f32 %v893, %v1255
  %v1257 = vpop.f32.mrf.mxu0
  %v1258 = vpop.f32.mrf.mxu0
  %v1259 = vpop.f32.mrf.mxu0
  %1260 = vdwg.mxu0
  %v1262 = vsel %vm505, %v601, 0
  %v1265 = vsel %vm941, %v44, 0
  %1267 = vmatprep.subr.bf16.mxu0 0
  %1268 = vmatpush1.bf16.msra.mxu0 0
  %1269 = vmatprep.subr.bf16.mxu0 0
  %1270 = vmatpush1.bf16.msra.mxu0 0
  %1271 = vmatprep.subr.bf16.mxu0 0
  %1272 = vmatpush1.bf16.msra.mxu0 0
  %1273 = vmatprep.subr.bf16.mxu0 0
  %1274 = vmatpush1.bf16.msra.mxu0 0
  %1275 = vmatprep.subr.bf16.mxu0 0
  %1276 = vmatpush1.bf16.msra.mxu0 0
  %1277 = vmatprep.subr.bf16.mxu0 0
  %1278 = vmatpush1.bf16.msra.mxu0 0
  %1279 = vmatprep.subr.bf16.mxu0 0
  %1280 = vmatpush1.bf16.msra.mxu0 0
  %1281 = vmatprep.subr.bf16.mxu0 0
  %1282 = vmatpush1.bf16.msra.mxu0 %v1265
  %1283 = vmatprep.subr.bf16.mxu0 0
  %1284 = vmatpush2.bf16.msra.mxu0 0
  %1285 = vmatprep.subr.bf16.mxu0 0
  %1286 = vmatpush2.bf16.msra.mxu0 0
  %1287 = vmatprep.subr.bf16.mxu0 0
  %1288 = vmatpush2.bf16.msra.mxu0 0
  %1289 = vmatprep.subr.bf16.mxu0 0
  %1290 = vmatpush2.bf16.msra.mxu0 0
  %1291 = vmatprep.subr.bf16.mxu0 0
  %1292 = vmatpush2.bf16.msra.mxu0 0
  %1293 = vmatprep.subr.bf16.mxu0 0
  %1294 = vmatpush2.bf16.msra.mxu0 0
  %1295 = vmatprep.subr.bf16.mxu0 0
  %1296 = vmatpush2.bf16.msra.mxu0 0
  %1297 = vmatprep.subr.bf16.mxu0 0
  %1298 = vmatpush2.bf16.msra.mxu0 0
  %1299 = vmatprep.mubr.bf16.mxu0 0
  %1300 = vmatmul.mubr.bf16.gmra.mxu0 %v1262
  %v1301 = vpop.f32.mrf.mxu0
  %v1302 = vadd.f32 %v933, %v1301
  %v1303 = vpop.f32.mrf.mxu0
  %v1304 = vpop.f32.mrf.mxu0
  %v1305 = vpop.f32.mrf.mxu0
  %1306 = vdwg.mxu0
  %v1307 = vtanh.pop %v980
  %v1308 = vtanh.pop %v1026
  %v1309 = vtanh.pop %v1072
  %v1310 = vtanh.pop %v1118
  %v1311 = vtanh.pop %v1164
  %v1312 = vtanh.pop %v1210
  %v1313 = vtanh.pop %v1256
  %v1314 = vtanh.pop %v1302
  %1315 = vst.msk [vmem:[%s4] sm:$0xff] %vm136, %v1307
  %1316 = vst.msk [vmem:[%s4 + $0x8] sm:$0xff] %vm136, %v1308
  %1317 = vst.msk [vmem:[%s4 + $0x10] sm:$0xff] %vm136, %v1309
  %1318 = vst.msk [vmem:[%s4 + $0x18] sm:$0xff] %vm136, %v1310
  %1319 = vst.msk [vmem:[%s4 + $0x20] sm:$0xff] %vm136, %v1311
  %1320 = vst.msk [vmem:[%s4 + $0x28] sm:$0xff] %vm136, %v1312
  %1321 = vst.msk [vmem:[%s4 + $0x30] sm:$0xff] %vm136, %v1313
  %1322 = vst.msk [vmem:[%s4 + $0x38] sm:$0xff] %vm136, %v1314
  %1323 = vst.msk [vmem:[%s5] sm:$0xff] %vm505, %v586
  %1324 = vst.msk [vmem:[%s5 + $0x8] sm:$0xff] %vm505, %v587
  %1325 = vst.msk [vmem:[%s5 + $0x10] sm:$0xff] %vm505, %v588
  %1326 = vst.msk [vmem:[%s5 + $0x18] sm:$0xff] %vm505, %v589
  %1327 = vst.msk [vmem:[%s5 + $0x20] sm:$0xff] %vm505, %v590
  %1328 = vst.msk [vmem:[%s5 + $0x28] sm:$0xff] %vm505, %v591
  %1329 = vst.msk [vmem:[%s5 + $0x30] sm:$0xff] %vm505, %v592
  %1330 = vst.msk [vmem:[%s5 + $0x38] sm:$0xff] %vm505, %v593
  // Predicated region
  $region18: #{asr_forward.19} parent=0 // pred_check
    _
  $region19: #{asr_forward.19} parent=0 // pred_check_branch
    %1332 = sbr.rel (0) target = $region21
  $region20: #{asr_forward.19} parent=0 // pred_region
    _
  $region21: #{asr_forward.19} parent=0 // pred_fallthru
    _
  // Predicated region
  $region22: #{asr_forward.19} parent=0 // pred_check
    _
  $region23: #{asr_forward.19} parent=0 // pred_check_branch
    %1334 = sbr.rel (0) target = $region25
  $region24: #{asr_forward.19} parent=0 // pred_region
    _
  $region25: #{asr_forward.19} parent=0 // pred_fallthru
    _
  // Predicated region
  $region26: #{asr_forward.19} parent=0 // pred_check
    _
  $region27: #{asr_forward.19} parent=0 // pred_check_branch
    %1336 = sbr.rel (0) target = $region29
  $region28: #{asr_forward.19} parent=0 // pred_region
    _
  $region29: #{asr_forward.19} parent=0 // pred_fallthru
    _
  // Predicated region
  $region30: #{asr_forward.19} parent=0 // pred_check
    _
  $region31: #{asr_forward.19} parent=0 // pred_check_branch
    %1338 = sbr.rel (0) target = $region33
  $region32: #{asr_forward.19} parent=0 // pred_region
    _
  $region33: #{asr_forward.19} parent=0 // pred_fallthru
    _

</llo_original>
